<compile_context>
chip_gen: v7x
topology: tpu7x:2x2x1
jax: 0.10.0
libtpu: 0.0.40
codegen_flags: <defaults>
</compile_context>

<pallas_src>
import math
import functools

import jax
import jax.numpy as jnp
from jax import lax
from jax.experimental import pallas as pl
from jax.experimental.pallas import tpu as pltpu

D_LAYERS = 8
SKIPS = (4,)

# NT ("a @ b.T") contraction, same pattern as flash-attention q @ k.T — lets us emit
# the output already transposed (lane-dense) without an XLU transpose of h.
_NT_DIMS = (((1,), (1,)), ((), ()))


def _deformation_mlp_kernel(
    x_ref,      # (tile_b, C)   bf16, pre-cast in the wrapper
    wx_ref,     # (2, C, W)     bf16: [w0, w4x]
    wh_ref,     # (7, W, W)     bf16: [w1, w2, w3, w4h, w5, w6, w7]
    b_ref,      # (8, W)        f32 : [b0..b7]
    wot_ref,    # (2, W)        bf16: wo.T
    bo_ref,     # (2, 1)        f32
    out_ref,    # (2, tile_b)   f32 (lane-dense, transposed)
):
    x = x_ref[...]            # already bf16
    b = b_ref[...]            # (8, W) f32 — exactly one vreg at W=128

    def dense_relu(h, w, j):
        return jnp.maximum(
            jnp.dot(h.astype(jnp.bfloat16), w, preferred_element_type=jnp.float32)
            + b[j:j + 1, :],
            0.0,
        )

    # Layer 0.
    h = dense_relu(x, wx_ref[0], 0)
    # Layers 1..3.
    h = dense_relu(h, wh_ref[0], 1)
    h = dense_relu(h, wh_ref[1], 2)
    h = dense_relu(h, wh_ref[2], 3)

    # Layer 4 (skip): relu(cat([x, h]) @ W4 + b4) == relu(x @ W4x + h @ W4h + b4).
    # x @ W4x is recomputed here (K=C matmul) rather than carried from layer 0,
    # so no (tile_b, W) f32 value stays live (and spills) across layers 1-3.
    h = jnp.maximum(
        jnp.dot(x, wx_ref[1], preferred_element_type=jnp.float32)
        + jnp.dot(h.astype(jnp.bfloat16), wh_ref[3],
                  preferred_element_type=jnp.float32)
        + b[4:5, :],
        0.0,
    )

    # Layers 5..7.
    h = dense_relu(h, wh_ref[4], 5)
    h = dense_relu(h, wh_ref[5], 6)
    h = dense_relu(h, wh_ref[6], 7)

    # Output layer (no activation, N=2 — negligible flops), emitted lane-dense:
    # wot(2,W) · h(tile_b,W)^T -> (2, tile_b).  NT form keeps h un-transposed
    # (transposed-RHS MXU matmul, same as the flash-attention q @ k.T pattern).
    out_t = lax.dot_general(
        wot_ref[...], h.astype(jnp.bfloat16),
        dimension_numbers=_NT_DIMS, preferred_element_type=jnp.float32,
    ) + bo_ref[...]
    out_ref[...] = out_t.astype(out_ref.dtype)


def _round_up(n, m):
    return ((n + m - 1) // m) * m


def _pick_tile(B, tile_b):
    """Pick a 128-aligned batch tile and padded batch size (even grid when grid>1)."""
    tile_b = _round_up(max(128, min(int(tile_b), 4096)), 128)
    padded = _round_up(B, 128)
    if padded <= tile_b:
        # Batch fits in one tile: use two equal tiles when big enough so both v7x
        # TensorCores get work; otherwise a single full-batch tile.
        half = padded // 2
        if half >= 256 and half % 128 == 0:
            tile_b = half
        else:
            tile_b = padded
    steps = (padded + tile_b - 1) // tile_b
    # Even number of (parallel) grid steps so the 2 v7x TensorCores split evenly.
    if steps > 1 and steps % 2 == 1:
        steps += 1
    return tile_b, steps * tile_b


def pack_params(params, compute_dtype=jnp.bfloat16):
    """Repack init_params() output for the kernel (call ONCE at model setup, not per
    step): stack weights, bf16 weights, f32 biases, transposed output weight."""
    (w0, b0, w1, b1, w2, b2, w3, b3,
     w4x, w4h, b4, w5, b5, w6, b6, w7, b7, wo, bo) = params
    c = compute_dtype
    f = jnp.float32
    wx_stack = jnp.stack([w0, w4x]).astype(c)                       # (2, C, W)
    wh_stack = jnp.stack([w1, w2, w3, w4h, w5, w6, w7]).astype(c)   # (7, W, W)
    b_stack = jnp.concatenate([b0, b1, b2, b3, b4, b5, b6, b7], axis=0).astype(f)  # (8, W)
    return [wx_stack, wh_stack, b_stack,
            wo.T.astype(c),                                         # (2, W)
            bo.reshape(2, 1).astype(f)]                             # (2, 1)


def deformation_mlp(x, packed, *, tile_b=2048):
    """x: (B, C) f32.  packed: output of pack_params() (pre-packed once at setup)."""
    B, C = x.shape
    wx_stack, wh_stack, b_stack, wot, bo = packed
    W = b_stack.shape[-1]
    compute_dtype = wx_stack.dtype

    tile_b, padded_B = _pick_tile(B, tile_b)
    x = x.astype(compute_dtype)            # pre-cast: halves the x DMA per tile
    if padded_B != B:
        x = jnp.pad(x, ((0, padded_B - B), (0, 0)))
    grid = (padded_B // tile_b,)

    # x tiled over batch; every parameter is a full, grid-invariant (resident) block.
    x_spec = pl.BlockSpec((tile_b, C), lambda i: (i, 0))

    def _full_block(p):
        nd = p.ndim
        return pl.BlockSpec(p.shape, lambda i, _nd=nd: (0,) * _nd)

    param_specs = [_full_block(p) for p in packed]
    # Lane-dense output: last block dim is tile_b (multiple of 128) -> unmasked stores.
    out_spec = pl.BlockSpec((2, tile_b), lambda i: (0, i))

    param_bytes = sum(int(p.size) * p.dtype.itemsize for p in packed)
    flops = int(2 * padded_B * (2 * C * W + 7 * W * W + 2 * W))
    bytes_accessed = int(padded_B * C * 2 + padded_B * 2 * 4 + param_bytes)

    # VMEM budget: resident params (x2 buffers), x / out tiles (x2 buffers), plus
    # generous headroom for the f32/bf16 layer intermediates.  Capped at 48 MiB —
    # well under v7x's 64 MiB physical VMEM per TensorCore.
    vmem_limit = (2 * param_bytes
                  + 2 * tile_b * C * 2
                  + 2 * 2 * tile_b * 4
                  + 10 * tile_b * W * 4
                  + (4 << 20))
    vmem_limit = max(24 << 20, min(int(vmem_limit), 48 << 20))

    out_t = pl.pallas_call(
        _deformation_mlp_kernel,
        out_shape=jax.ShapeDtypeStruct((2, padded_B), jnp.float32),
        grid_spec=pltpu.PrefetchScalarGridSpec(
            num_scalar_prefetch=0,
            grid=grid,
            in_specs=[x_spec] + param_specs,
            out_specs=out_spec,
        ),
        compiler_params=pltpu.CompilerParams(
            dimension_semantics=("parallel",),
            vmem_limit_bytes=vmem_limit,
        ),
        cost_estimate=pl.CostEstimate(
            flops=flops, transcendentals=0, bytes_accessed=bytes_accessed),
    )(x, *packed)

    return out_t[:, :B].T


def init_params(key, in_channels, W=128):
    """Matches the PyTorch module's __init__: xavier_uniform_ hidden weights, zero
    biases, uniform(-1e-4, 1e-4) output weight, zero output bias.  Weights stored
    transposed to (in_features, out_features)."""
    params = []
    keys = jax.random.split(key, D_LAYERS + 1)

    def xavier(k, fan_in, fan_out):
        bound = math.sqrt(6.0 / (fan_in + fan_out))
        return jax.random.uniform(
            k, (fan_in, fan_out), jnp.float32, minval=-bound, maxval=bound)

    for i in range(D_LAYERS):
        if i == 0:
            w = xavier(keys[i], in_channels, W)
            params += [w, jnp.zeros((1, W), jnp.float32)]
        elif i in SKIPS:
            w_full = xavier(keys[i], W + in_channels, W)   # rows: [input_xyz ; hidden]
            params += [w_full[:in_channels], w_full[in_channels:],
                       jnp.zeros((1, W), jnp.float32)]
        else:
            w = xavier(keys[i], W, W)
            params += [w, jnp.zeros((1, W), jnp.float32)]

    wo = jax.random.uniform(keys[D_LAYERS], (W, 2), jnp.float32,
                            minval=-1e-4, maxval=1e-4)
    params += [wo, jnp.zeros((1, 2), jnp.float32)]
    return params


def reference_mlp(x, params, dot_dtype=jnp.float32):
    """Pure-JAX reference identical to the PyTorch forward.

    With dot_dtype=jnp.bfloat16 it mirrors the kernel's numerics
    (bf16 matmul operands, f32 accumulation, f32 bias/ReLU)."""
    cast = lambda a: a.astype(dot_dtype)
    mm = lambda a, b: jnp.dot(cast(a), cast(b), preferred_element_type=jnp.float32)
    idx = 0
    h = x
    x_in = x
    for i in range(D_LAYERS):
        if i in SKIPS:
            w_x, w_h, b = params[idx], params[idx + 1], params[idx + 2]
            idx += 3
            h = jnp.maximum(mm(x_in, w_x) + mm(h, w_h) + b, 0.0)
        else:
            w, b = params[idx], params[idx + 1]
            idx += 2
            h = jnp.maximum(mm(h, w) + b, 0.0)
    wo, bo = params[idx], params[idx + 1]
    return mm(h, wo) + bo


if __name__ == "__main__":
    IN_CHANNELS = 32   # embedded xyz+dir channels
    W = 128
    B = 300            # deliberately NOT tile-aligned (exercises the padding path)

    key = jax.random.PRNGKey(0)
    k_x, k_p = jax.random.split(key)
    x = jax.random.normal(k_x, (B, IN_CHANNELS), jnp.float32)
    params = init_params(k_p, IN_CHANNELS, W)

    # Pre-pack once (hot-path hoist): the concat / casts / transpose don't run per call.
    packed = pack_params(params)

    fn = jax.jit(functools.partial(deformation_mlp, tile_b=2048))
    dudv = jax.block_until_ready(fn(x, packed))
    assert dudv.shape == (B, 2)

    # Tight check vs a reference using the same bf16-operand / f32-accum math.
    ref_bf16 = reference_mlp(x, params, dot_dtype=jnp.bfloat16)
    assert jnp.allclose(dudv, ref_bf16, atol=1e-5, rtol=1e-2), "mismatch vs bf16 reference"

    # Loose check vs the full-f32 reference (bf16 quantization error is ~1e-5 here).
    ref_f32 = reference_mlp(x, params, dot_dtype=jnp.float32)
    assert jnp.allclose(dudv, ref_f32, atol=1e-3, rtol=0.5), "mismatch vs f32 reference"

    print("KERNEL_OK")
</pallas_src>

<mosaic_0001>
module attributes {stable_mosaic.version = 11 : i64} {
  func.func @_deformation_mlp_kernel(%arg0: i32, %arg1: memref<384x32xbf16, #tpu.memory_space<vmem>>, %arg2: memref<2x32x128xbf16, #tpu.memory_space<vmem>>, %arg3: memref<7x128x128xbf16, #tpu.memory_space<vmem>>, %arg4: memref<8x128xf32, #tpu.memory_space<vmem>>, %arg5: memref<2x128xbf16, #tpu.memory_space<vmem>>, %arg6: memref<2x1xf32, #tpu.memory_space<vmem>>, %arg7: memref<2x384xf32, #tpu.memory_space<vmem>>) attributes {dimension_semantics = [#tpu.dimension_semantics<parallel>], iteration_bounds = array<i64: 1>, scalar_prefetch = 0 : i64, scratch_operands = 0 : i64, tpu.core_type = #tpu.core_type<tc>, window_params = [{transform_indices = @transform_0, window_bounds = array<i64: 384, 32>}, {pipeline_mode = #tpu.pipeline_mode<synchronous>, transform_indices = @transform_1, window_bounds = array<i64: 2, 32, 128>}, {pipeline_mode = #tpu.pipeline_mode<synchronous>, transform_indices = @transform_2, window_bounds = array<i64: 7, 128, 128>}, {pipeline_mode = #tpu.pipeline_mode<synchronous>, transform_indices = @transform_3, window_bounds = array<i64: 8, 128>}, {pipeline_mode = #tpu.pipeline_mode<synchronous>, transform_indices = @transform_4, window_bounds = array<i64: 2, 128>}, {pipeline_mode = #tpu.pipeline_mode<synchronous>, transform_indices = @transform_5, window_bounds = array<i64: 2, 1>}, {transform_indices = @transform_6, window_bounds = array<i64: 2, 384>}]} {
    %c0 = arith.constant 0 : index
    %c0_0 = arith.constant 0 : index
    %0 = vector.load %arg1[%c0, %c0_0] : memref<384x32xbf16, #tpu.memory_space<vmem>>, vector<384x32xbf16>
    %c0_1 = arith.constant 0 : index
    %c0_2 = arith.constant 0 : index
    %1 = vector.load %arg4[%c0_1, %c0_2] : memref<8x128xf32, #tpu.memory_space<vmem>>, vector<8x128xf32>
    %c0_3 = arith.constant 0 : index
    %c0_4 = arith.constant 0 : index
    %c0_5 = arith.constant 0 : index
    %2 = vector.load %arg2[%c0_3, %c0_4, %c0_5] : memref<2x32x128xbf16, #tpu.memory_space<vmem>>, vector<1x32x128xbf16>
    %3 = vector.shape_cast %2 : vector<1x32x128xbf16> to vector<32x128xbf16>
    %cst = arith.constant dense<0.000000e+00> : vector<384x128xf32>
    %4 = tpu.matmul %0, %3, %cst {dimension_numbers = #tpu.dot_dimension_numbers<[1], [0], [0], [1], [0, 0, 1, 1], [], []>} : vector<384x32xbf16>, vector<32x128xbf16>, vector<384x128xf32> -> vector<384x128xf32>
    %5 = vector.extract_strided_slice %1 {offsets = [0, 0], sizes = [1, 128], strides = [1, 1]} : vector<8x128xf32> to vector<1x128xf32>
    %6 = vector.broadcast %5 : vector<1x128xf32> to vector<384x128xf32>
    %7 = arith.addf %4, %6 : vector<384x128xf32>
    %cst_6 = arith.constant 0.000000e+00 : f32
    %8 = vector.broadcast %cst_6 : f32 to vector<384x128xf32>
    %9 = arith.maximumf %7, %8 : vector<384x128xf32>
    %c0_7 = arith.constant 0 : index
    %c0_8 = arith.constant 0 : index
    %c0_9 = arith.constant 0 : index
    %10 = vector.load %arg3[%c0_7, %c0_8, %c0_9] : memref<7x128x128xbf16, #tpu.memory_space<vmem>>, vector<1x128x128xbf16>
    %11 = vector.shape_cast %10 : vector<1x128x128xbf16> to vector<128x128xbf16>
    %12 = arith.truncf %9 : vector<384x128xf32> to vector<384x128xbf16>
    %cst_10 = arith.constant dense<0.000000e+00> : vector<384x128xf32>
    %13 = tpu.matmul %12, %11, %cst_10 {dimension_numbers = #tpu.dot_dimension_numbers<[1], [0], [0], [1], [0, 0, 1, 1], [], []>} : vector<384x128xbf16>, vector<128x128xbf16>, vector<384x128xf32> -> vector<384x128xf32>
    %14 = vector.extract_strided_slice %1 {offsets = [1, 0], sizes = [1, 128], strides = [1, 1]} : vector<8x128xf32> to vector<1x128xf32>
    %15 = vector.broadcast %14 : vector<1x128xf32> to vector<384x128xf32>
    %16 = arith.addf %13, %15 : vector<384x128xf32>
    %cst_11 = arith.constant 0.000000e+00 : f32
    %17 = vector.broadcast %cst_11 : f32 to vector<384x128xf32>
    %18 = arith.maximumf %16, %17 : vector<384x128xf32>
    %c1 = arith.constant 1 : index
    %c0_12 = arith.constant 0 : index
    %c0_13 = arith.constant 0 : index
    %19 = vector.load %arg3[%c1, %c0_12, %c0_13] : memref<7x128x128xbf16, #tpu.memory_space<vmem>>, vector<1x128x128xbf16>
    %20 = vector.shape_cast %19 : vector<1x128x128xbf16> to vector<128x128xbf16>
    %21 = arith.truncf %18 : vector<384x128xf32> to vector<384x128xbf16>
    %cst_14 = arith.constant dense<0.000000e+00> : vector<384x128xf32>
    %22 = tpu.matmul %21, %20, %cst_14 {dimension_numbers = #tpu.dot_dimension_numbers<[1], [0], [0], [1], [0, 0, 1, 1], [], []>} : vector<384x128xbf16>, vector<128x128xbf16>, vector<384x128xf32> -> vector<384x128xf32>
    %23 = vector.extract_strided_slice %1 {offsets = [2, 0], sizes = [1, 128], strides = [1, 1]} : vector<8x128xf32> to vector<1x128xf32>
    %24 = vector.broadcast %23 : vector<1x128xf32> to vector<384x128xf32>
    %25 = arith.addf %22, %24 : vector<384x128xf32>
    %cst_15 = arith.constant 0.000000e+00 : f32
    %26 = vector.broadcast %cst_15 : f32 to vector<384x128xf32>
    %27 = arith.maximumf %25, %26 : vector<384x128xf32>
    %c2 = arith.constant 2 : index
    %c0_16 = arith.constant 0 : index
    %c0_17 = arith.constant 0 : index
    %28 = vector.load %arg3[%c2, %c0_16, %c0_17] : memref<7x128x128xbf16, #tpu.memory_space<vmem>>, vector<1x128x128xbf16>
    %29 = vector.shape_cast %28 : vector<1x128x128xbf16> to vector<128x128xbf16>
    %30 = arith.truncf %27 : vector<384x128xf32> to vector<384x128xbf16>
    %cst_18 = arith.constant dense<0.000000e+00> : vector<384x128xf32>
    %31 = tpu.matmul %30, %29, %cst_18 {dimension_numbers = #tpu.dot_dimension_numbers<[1], [0], [0], [1], [0, 0, 1, 1], [], []>} : vector<384x128xbf16>, vector<128x128xbf16>, vector<384x128xf32> -> vector<384x128xf32>
    %32 = vector.extract_strided_slice %1 {offsets = [3, 0], sizes = [1, 128], strides = [1, 1]} : vector<8x128xf32> to vector<1x128xf32>
    %33 = vector.broadcast %32 : vector<1x128xf32> to vector<384x128xf32>
    %34 = arith.addf %31, %33 : vector<384x128xf32>
    %cst_19 = arith.constant 0.000000e+00 : f32
    %35 = vector.broadcast %cst_19 : f32 to vector<384x128xf32>
    %36 = arith.maximumf %34, %35 : vector<384x128xf32>
    %c1_20 = arith.constant 1 : index
    %c0_21 = arith.constant 0 : index
    %c0_22 = arith.constant 0 : index
    %37 = vector.load %arg2[%c1_20, %c0_21, %c0_22] : memref<2x32x128xbf16, #tpu.memory_space<vmem>>, vector<1x32x128xbf16>
    %38 = vector.shape_cast %37 : vector<1x32x128xbf16> to vector<32x128xbf16>
    %cst_23 = arith.constant dense<0.000000e+00> : vector<384x128xf32>
    %39 = tpu.matmul %0, %38, %cst_23 {dimension_numbers = #tpu.dot_dimension_numbers<[1], [0], [0], [1], [0, 0, 1, 1], [], []>} : vector<384x32xbf16>, vector<32x128xbf16>, vector<384x128xf32> -> vector<384x128xf32>
    %40 = arith.truncf %36 : vector<384x128xf32> to vector<384x128xbf16>
    %c3 = arith.constant 3 : index
    %c0_24 = arith.constant 0 : index
    %c0_25 = arith.constant 0 : index
    %41 = vector.load %arg3[%c3, %c0_24, %c0_25] : memref<7x128x128xbf16, #tpu.memory_space<vmem>>, vector<1x128x128xbf16>
    %42 = vector.shape_cast %41 : vector<1x128x128xbf16> to vector<128x128xbf16>
    %cst_26 = arith.constant dense<0.000000e+00> : vector<384x128xf32>
    %43 = tpu.matmul %40, %42, %cst_26 {dimension_numbers = #tpu.dot_dimension_numbers<[1], [0], [0], [1], [0, 0, 1, 1], [], []>} : vector<384x128xbf16>, vector<128x128xbf16>, vector<384x128xf32> -> vector<384x128xf32>
    %44 = arith.addf %39, %43 : vector<384x128xf32>
    %45 = vector.extract_strided_slice %1 {offsets = [4, 0], sizes = [1, 128], strides = [1, 1]} : vector<8x128xf32> to vector<1x128xf32>
    %46 = vector.broadcast %45 : vector<1x128xf32> to vector<384x128xf32>
    %47 = arith.addf %44, %46 : vector<384x128xf32>
    %cst_27 = arith.constant 0.000000e+00 : f32
    %48 = vector.broadcast %cst_27 : f32 to vector<384x128xf32>
    %49 = arith.maximumf %47, %48 : vector<384x128xf32>
    %c4 = arith.constant 4 : index
    %c0_28 = arith.constant 0 : index
    %c0_29 = arith.constant 0 : index
    %50 = vector.load %arg3[%c4, %c0_28, %c0_29] : memref<7x128x128xbf16, #tpu.memory_space<vmem>>, vector<1x128x128xbf16>
    %51 = vector.shape_cast %50 : vector<1x128x128xbf16> to vector<128x128xbf16>
    %52 = arith.truncf %49 : vector<384x128xf32> to vector<384x128xbf16>
    %cst_30 = arith.constant dense<0.000000e+00> : vector<384x128xf32>
    %53 = tpu.matmul %52, %51, %cst_30 {dimension_numbers = #tpu.dot_dimension_numbers<[1], [0], [0], [1], [0, 0, 1, 1], [], []>} : vector<384x128xbf16>, vector<128x128xbf16>, vector<384x128xf32> -> vector<384x128xf32>
    %54 = vector.extract_strided_slice %1 {offsets = [5, 0], sizes = [1, 128], strides = [1, 1]} : vector<8x128xf32> to vector<1x128xf32>
    %55 = vector.broadcast %54 : vector<1x128xf32> to vector<384x128xf32>
    %56 = arith.addf %53, %55 : vector<384x128xf32>
    %cst_31 = arith.constant 0.000000e+00 : f32
    %57 = vector.broadcast %cst_31 : f32 to vector<384x128xf32>
    %58 = arith.maximumf %56, %57 : vector<384x128xf32>
    %c5 = arith.constant 5 : index
    %c0_32 = arith.constant 0 : index
    %c0_33 = arith.constant 0 : index
    %59 = vector.load %arg3[%c5, %c0_32, %c0_33] : memref<7x128x128xbf16, #tpu.memory_space<vmem>>, vector<1x128x128xbf16>
    %60 = vector.shape_cast %59 : vector<1x128x128xbf16> to vector<128x128xbf16>
    %61 = arith.truncf %58 : vector<384x128xf32> to vector<384x128xbf16>
    %cst_34 = arith.constant dense<0.000000e+00> : vector<384x128xf32>
    %62 = tpu.matmul %61, %60, %cst_34 {dimension_numbers = #tpu.dot_dimension_numbers<[1], [0], [0], [1], [0, 0, 1, 1], [], []>} : vector<384x128xbf16>, vector<128x128xbf16>, vector<384x128xf32> -> vector<384x128xf32>
    %63 = vector.extract_strided_slice %1 {offsets = [6, 0], sizes = [1, 128], strides = [1, 1]} : vector<8x128xf32> to vector<1x128xf32>
    %64 = vector.broadcast %63 : vector<1x128xf32> to vector<384x128xf32>
    %65 = arith.addf %62, %64 : vector<384x128xf32>
    %cst_35 = arith.constant 0.000000e+00 : f32
    %66 = vector.broadcast %cst_35 : f32 to vector<384x128xf32>
    %67 = arith.maximumf %65, %66 : vector<384x128xf32>
    %c6 = arith.constant 6 : index
    %c0_36 = arith.constant 0 : index
    %c0_37 = arith.constant 0 : index
    %68 = vector.load %arg3[%c6, %c0_36, %c0_37] : memref<7x128x128xbf16, #tpu.memory_space<vmem>>, vector<1x128x128xbf16>
    %69 = vector.shape_cast %68 : vector<1x128x128xbf16> to vector<128x128xbf16>
    %70 = arith.truncf %67 : vector<384x128xf32> to vector<384x128xbf16>
    %cst_38 = arith.constant dense<0.000000e+00> : vector<384x128xf32>
    %71 = tpu.matmul %70, %69, %cst_38 {dimension_numbers = #tpu.dot_dimension_numbers<[1], [0], [0], [1], [0, 0, 1, 1], [], []>} : vector<384x128xbf16>, vector<128x128xbf16>, vector<384x128xf32> -> vector<384x128xf32>
    %72 = vector.extract_strided_slice %1 {offsets = [7, 0], sizes = [1, 128], strides = [1, 1]} : vector<8x128xf32> to vector<1x128xf32>
    %73 = vector.broadcast %72 : vector<1x128xf32> to vector<384x128xf32>
    %74 = arith.addf %71, %73 : vector<384x128xf32>
    %cst_39 = arith.constant 0.000000e+00 : f32
    %75 = vector.broadcast %cst_39 : f32 to vector<384x128xf32>
    %76 = arith.maximumf %74, %75 : vector<384x128xf32>
    %c0_40 = arith.constant 0 : index
    %c0_41 = arith.constant 0 : index
    %77 = vector.load %arg5[%c0_40, %c0_41] : memref<2x128xbf16, #tpu.memory_space<vmem>>, vector<2x128xbf16>
    %78 = arith.truncf %76 : vector<384x128xf32> to vector<384x128xbf16>
    %cst_42 = arith.constant dense<0.000000e+00> : vector<2x384xf32>
    %79 = tpu.matmul %77, %78, %cst_42 {dimension_numbers = #tpu.dot_dimension_numbers<[1], [1], [0], [0], [0, 0, 1, 0], [], []>} : vector<2x128xbf16>, vector<384x128xbf16>, vector<2x384xf32> -> vector<2x384xf32>
    %c0_43 = arith.constant 0 : index
    %c0_44 = arith.constant 0 : index
    %80 = vector.load %arg6[%c0_43, %c0_44] : memref<2x1xf32, #tpu.memory_space<vmem>>, vector<2x1xf32>
    %81 = vector.broadcast %80 : vector<2x1xf32> to vector<2x384xf32>
    %82 = arith.addf %79, %81 : vector<2x384xf32>
    %c0_45 = arith.constant 0 : index
    %c0_46 = arith.constant 0 : index
    %83 = vector.load %arg7[%c0_45, %c0_46] : memref<2x384xf32, #tpu.memory_space<vmem>>, vector<2x384xf32>
    tpu.vector_store %arg7[%c0_45, %c0_46], %82 {strides = array<i32>} : memref<2x384xf32, #tpu.memory_space<vmem>>, vector<2x384xf32>,
    return
  }
  func.func @transform_0(%arg0: i32) -> (i32, i32) {
    %c0_i32 = arith.constant 0 : i32
    %c0_i32_0 = arith.constant 0 : i32
    return %arg0, %c0_i32 : i32, i32
  }
  func.func @transform_1(%arg0: i32) -> (i32, i32, i32) {
    %c0_i32 = arith.constant 0 : i32
    %c0_i32_0 = arith.constant 0 : i32
    %c0_i32_1 = arith.constant 0 : i32
    %c0_i32_2 = arith.constant 0 : i32
    return %c0_i32, %c0_i32_0, %c0_i32_1 : i32, i32, i32
  }
  func.func @transform_2(%arg0: i32) -> (i32, i32, i32) {
    %c0_i32 = arith.constant 0 : i32
    %c0_i32_0 = arith.constant 0 : i32
    %c0_i32_1 = arith.constant 0 : i32
    %c0_i32_2 = arith.constant 0 : i32
    return %c0_i32, %c0_i32_0, %c0_i32_1 : i32, i32, i32
  }
  func.func @transform_3(%arg0: i32) -> (i32, i32) {
    %c0_i32 = arith.constant 0 : i32
    %c0_i32_0 = arith.constant 0 : i32
    %c0_i32_1 = arith.constant 0 : i32
    return %c0_i32, %c0_i32_0 : i32, i32
  }
  func.func @transform_4(%arg0: i32) -> (i32, i32) {
    %c0_i32 = arith.constant 0 : i32
    %c0_i32_0 = arith.constant 0 : i32
    %c0_i32_1 = arith.constant 0 : i32
    return %c0_i32, %c0_i32_0 : i32, i32
  }
  func.func @transform_5(%arg0: i32) -> (i32, i32) {
    %c0_i32 = arith.constant 0 : i32
    %c0_i32_0 = arith.constant 0 : i32
    %c0_i32_1 = arith.constant 0 : i32
    return %c0_i32, %c0_i32_0 : i32, i32
  }
  func.func @transform_6(%arg0: i32) -> (i32, i32) {
    %c0_i32 = arith.constant 0 : i32
    %c0_i32_0 = arith.constant 0 : i32
    return %c0_i32, %arg0 : i32, i32
  }
}

</mosaic_0001>

<llo_original>
// kernel: deformation_mlp.1
$region0: #{deformation_mlp.1}
  #allocation0 [shape = 'u32[]', space=smem, size = 0x4, offset = 0x4, fixed_abs, tag = 'smem constant byte address 0x4 - core index']
  #allocation1 [shape = 'u32[144,128]{1,0:T(1,128)}', space=vmem, size = 0x12000, scoped, tag = 'internal scratch']
  %s0 = inlined_call_operand.vmem [shape: bf16[384,32], index: 0, kind: input, shape index: {}]
  %s1 = inlined_call_operand.vmem [shape: bf16[2,32,128], index: 1, kind: input, shape index: {}]
  %s2 = inlined_call_operand.vmem [shape: bf16[7,128,128], index: 2, kind: input, shape index: {}]
  %s3 = inlined_call_operand.vmem [shape: f32[8,128], index: 3, kind: input, shape index: {}]
  %s4 = inlined_call_operand.vmem [shape: bf16[2,128], index: 4, kind: input, shape index: {}]
  %s5 = inlined_call_operand.vmem [shape: f32[2,1], index: 5, kind: input, shape index: {}]
  %s6 = inlined_call_operand.vmem [shape: f32[2,384], index: 6, kind: output, shape index: {}]
  %s7 = sld [smem:[#allocation0]]
  $region34: #{deformation_mlp.1} parent=0
    _
  %s9 = ssub.s32 1, %s7
  %s10 = scalar_select 0, %s9, %s7
  // Predicated region
  $region2: #{deformation_mlp.1} parent=0 // pred_check
    _
  $region3: #{deformation_mlp.1} parent=0 // pred_check_branch
    %12 = sbr.rel (0) target = $region5
  $region4: #{deformation_mlp.1} parent=0 // pred_region
    _
  $region5: #{deformation_mlp.1} parent=0 // pred_fallthru
    _
  // Predicated region
  $region6: #{deformation_mlp.1} parent=0 // pred_check
    _
  $region7: #{deformation_mlp.1} parent=0 // pred_check_branch
    %14 = sbr.rel (0) target = $region9
  $region8: #{deformation_mlp.1} parent=0 // pred_region
    _
  $region9: #{deformation_mlp.1} parent=0 // pred_fallthru
    _
  // Predicated region
  $region10: #{deformation_mlp.1} parent=0 // pred_check
    _
  $region11: #{deformation_mlp.1} parent=0 // pred_check_branch
    %16 = sbr.rel (0) target = $region13
  $region12: #{deformation_mlp.1} parent=0 // pred_region
    _
  $region13: #{deformation_mlp.1} parent=0 // pred_fallthru
    _
  // Predicated region
  $region14: #{deformation_mlp.1} parent=0 // pred_check
    _
  $region15: #{deformation_mlp.1} parent=0 // pred_check_branch
    %18 = sbr.rel (0) target = $region17
  $region16: #{deformation_mlp.1} parent=0 // pred_region
    _
  $region17: #{deformation_mlp.1} parent=0 // pred_fallthru
    _
  // Predicated region
  $region18: #{deformation_mlp.1} parent=0 // pred_check
    _
  $region19: #{deformation_mlp.1} parent=0 // pred_check_branch
    %20 = sbr.rel (0) target = $region21
  $region20: #{deformation_mlp.1} parent=0 // pred_region
    _
  $region21: #{deformation_mlp.1} parent=0 // pred_fallthru
    _
  // Predicated region
  $region22: #{deformation_mlp.1} parent=0 // pred_check
    _
  $region23: #{deformation_mlp.1} parent=0 // pred_check_branch
    %22 = sbr.rel (0) target = $region25
  $region24: #{deformation_mlp.1} parent=0 // pred_region
    _
  $region25: #{deformation_mlp.1} parent=0 // pred_fallthru
    _
  %v24 = vld [vmem:[%s0] sm:$0xf]
  %v25 = vld [vmem:[%s0 + $0x4] sm:$0xf]
  %v26 = vld [vmem:[%s0 + $0x8] sm:$0xf]
  %v27 = vld [vmem:[%s0 + $0xc] sm:$0xf]
  %v28 = vld [vmem:[%s0 + $0x10] sm:$0xf]
  %v29 = vld [vmem:[%s0 + $0x14] sm:$0xf]
  %v30 = vld [vmem:[%s0 + $0x18] sm:$0xf]
  %v31 = vld [vmem:[%s0 + $0x1c] sm:$0xf]
  %v32 = vld [vmem:[%s0 + $0x20] sm:$0xf]
  %v33 = vld [vmem:[%s0 + $0x24] sm:$0xf]
  %v34 = vld [vmem:[%s0 + $0x28] sm:$0xf]
  %v35 = vld [vmem:[%s0 + $0x2c] sm:$0xf]
  %v36 = vld [vmem:[%s0 + $0x30] sm:$0xf]
  %v37 = vld [vmem:[%s0 + $0x34] sm:$0xf]
  %v38 = vld [vmem:[%s0 + $0x38] sm:$0xf]
  %v39 = vld [vmem:[%s0 + $0x3c] sm:$0xf]
  %v40 = vld [vmem:[%s0 + $0x40] sm:$0xf]
  %v41 = vld [vmem:[%s0 + $0x44] sm:$0xf]
  %v42 = vld [vmem:[%s0 + $0x48] sm:$0xf]
  %v43 = vld [vmem:[%s0 + $0x4c] sm:$0xf]
  %v44 = vld [vmem:[%s0 + $0x50] sm:$0xf]
  %v45 = vld [vmem:[%s0 + $0x54] sm:$0xf]
  %v46 = vld [vmem:[%s0 + $0x58] sm:$0xf]
  %v47 = vld [vmem:[%s0 + $0x5c] sm:$0xf]
  %v48 = vld [vmem:[%s0 + $0x60] sm:$0xf]
  %v49 = vld [vmem:[%s0 + $0x64] sm:$0xf]
  %v50 = vld [vmem:[%s0 + $0x68] sm:$0xf]
  %v51 = vld [vmem:[%s0 + $0x6c] sm:$0xf]
  %v52 = vld [vmem:[%s0 + $0x70] sm:$0xf]
  %v53 = vld [vmem:[%s0 + $0x74] sm:$0xf]
  %v54 = vld [vmem:[%s0 + $0x78] sm:$0xf]
  %v55 = vld [vmem:[%s0 + $0x7c] sm:$0xf]
  %v56 = vld [vmem:[%s0 + $0x80] sm:$0xf]
  %v57 = vld [vmem:[%s0 + $0x84] sm:$0xf]
  %v58 = vld [vmem:[%s0 + $0x88] sm:$0xf]
  %v59 = vld [vmem:[%s0 + $0x8c] sm:$0xf]
  %v60 = vld [vmem:[%s0 + $0x90] sm:$0xf]
  %v61 = vld [vmem:[%s0 + $0x94] sm:$0xf]
  %v62 = vld [vmem:[%s0 + $0x98] sm:$0xf]
  %v63 = vld [vmem:[%s0 + $0x9c] sm:$0xf]
  %v64 = vld [vmem:[%s0 + $0xa0] sm:$0xf]
  %v65 = vld [vmem:[%s0 + $0xa4] sm:$0xf]
  %v66 = vld [vmem:[%s0 + $0xa8] sm:$0xf]
  %v67 = vld [vmem:[%s0 + $0xac] sm:$0xf]
  %v68 = vld [vmem:[%s0 + $0xb0] sm:$0xf]
  %v69 = vld [vmem:[%s0 + $0xb4] sm:$0xf]
  %v70 = vld [vmem:[%s0 + $0xb8] sm:$0xf]
  %v71 = vld [vmem:[%s0 + $0xbc] sm:$0xf]
  %v72 = vld [vmem:[%s3] sm:$0xff]
  %v73 = vld [vmem:[%s1] sm:$0xf]
  %v74 = vld [vmem:[%s1 + $0x4] sm:$0xf]
  %v75 = vld [vmem:[%s1 + $0x8] sm:$0xf]
  %v76 = vld [vmem:[%s1 + $0xc] sm:$0xf]
  %v77 = vlaneseq
  %v78 = vshrl.u32 %v77, 7
  %v79 = vsub.s32 0, %v78
  %v80 = vrot.slane %v72, %v79
  %v129 = vunpack.c.l.b16 %v24
  %v130 = vunpack.c.l.b16 %v25
  %v131 = vunpack.c.l.b16 %v26
  %v132 = vunpack.c.l.b16 %v27
  %v133 = vunpack.c.l.b16 %v28
  %v134 = vunpack.c.l.b16 %v29
  %v135 = vunpack.c.l.b16 %v30
  %v136 = vunpack.c.l.b16 %v31
  %v137 = vunpack.c.l.b16 %v32
  %v138 = vunpack.c.l.b16 %v33
  %v139 = vunpack.c.l.b16 %v34
  %v140 = vunpack.c.l.b16 %v35
  %v141 = vunpack.c.l.b16 %v36
  %v142 = vunpack.c.l.b16 %v37
  %v143 = vunpack.c.l.b16 %v38
  %v144 = vunpack.c.l.b16 %v39
  %v145 = vunpack.c.l.b16 %v40
  %v146 = vunpack.c.l.b16 %v41
  %v147 = vunpack.c.l.b16 %v42
  %v148 = vunpack.c.l.b16 %v43
  %v149 = vunpack.c.l.b16 %v44
  %v150 = vunpack.c.l.b16 %v45
  %v151 = vunpack.c.l.b16 %v46
  %v152 = vunpack.c.l.b16 %v47
  %v153 = vunpack.c.l.b16 %v48
  %v154 = vunpack.c.l.b16 %v49
  %v155 = vunpack.c.l.b16 %v50
  %v156 = vunpack.c.l.b16 %v51
  %v157 = vunpack.c.l.b16 %v52
  %v158 = vunpack.c.l.b16 %v53
  %v159 = vunpack.c.l.b16 %v54
  %v160 = vunpack.c.l.b16 %v55
  %v161 = vunpack.c.l.b16 %v56
  %v162 = vunpack.c.l.b16 %v57
  %v163 = vunpack.c.l.b16 %v58
  %v164 = vunpack.c.l.b16 %v59
  %v165 = vunpack.c.l.b16 %v60
  %v166 = vunpack.c.l.b16 %v61
  %v167 = vunpack.c.l.b16 %v62
  %v168 = vunpack.c.l.b16 %v63
  %v169 = vunpack.c.l.b16 %v64
  %v170 = vunpack.c.l.b16 %v65
  %v171 = vunpack.c.l.b16 %v66
  %v172 = vunpack.c.l.b16 %v67
  %v173 = vunpack.c.l.b16 %v68
  %v174 = vunpack.c.l.b16 %v69
  %v175 = vunpack.c.l.b16 %v70
  %v176 = vunpack.c.l.b16 %v71
  %v177 = vpack.c.b16 %v130, %v129
  %v178 = vpack.c.b16 %v132, %v131
  %v179 = vpack.c.b16 %v134, %v133
  %v180 = vpack.c.b16 %v136, %v135
  %v181 = vpack.c.b16 %v138, %v137
  %v182 = vpack.c.b16 %v140, %v139
  %v183 = vpack.c.b16 %v142, %v141
  %v184 = vpack.c.b16 %v144, %v143
  %v185 = vpack.c.b16 %v146, %v145
  %v186 = vpack.c.b16 %v148, %v147
  %v187 = vpack.c.b16 %v150, %v149
  %v188 = vpack.c.b16 %v152, %v151
  %v189 = vpack.c.b16 %v154, %v153
  %v190 = vpack.c.b16 %v156, %v155
  %v191 = vpack.c.b16 %v158, %v157
  %v192 = vpack.c.b16 %v160, %v159
  %v193 = vpack.c.b16 %v162, %v161
  %v194 = vpack.c.b16 %v164, %v163
  %v195 = vpack.c.b16 %v166, %v165
  %v196 = vpack.c.b16 %v168, %v167
  %v197 = vpack.c.b16 %v170, %v169
  %v198 = vpack.c.b16 %v172, %v171
  %v199 = vpack.c.b16 %v174, %v173
  %v200 = vpack.c.b16 %v176, %v175
  %v205 = vunpack.c.l.b16 %v73
  %v206 = vunpack.c.l.b16 %v74
  %v207 = vunpack.c.l.b16 %v75
  %v208 = vunpack.c.l.b16 %v76
  %v209 = vpack.c.b16 %v206, %v205
  %v210 = vpack.c.b16 %v208, %v207
  %vm213 = vcmask 261120
  %v215 = vsel %vm213, %v177, 0
  %v218 = vsel %vm213, %v178, 0
  %v221 = vsel %vm213, %v179, 0
  %v224 = vsel %vm213, %v180, 0
  %v227 = vsel %vm213, %v181, 0
  %v230 = vsel %vm213, %v182, 0
  %v233 = vsel %vm213, %v183, 0
  %v236 = vsel %vm213, %v184, 0
  %v239 = vsel %vm213, %v185, 0
  %v242 = vsel %vm213, %v186, 0
  %v245 = vsel %vm213, %v187, 0
  %v248 = vsel %vm213, %v188, 0
  %v251 = vsel %vm213, %v189, 0
  %v254 = vsel %vm213, %v190, 0
  %v257 = vsel %vm213, %v191, 0
  %v260 = vsel %vm213, %v192, 0
  %v263 = vsel %vm213, %v193, 0
  %v266 = vsel %vm213, %v194, 0
  %v269 = vsel %vm213, %v195, 0
  %v272 = vsel %vm213, %v196, 0
  %v275 = vsel %vm213, %v197, 0
  %v278 = vsel %vm213, %v198, 0
  %v281 = vsel %vm213, %v199, 0
  %v284 = vsel %vm213, %v200, 0
  %286 = vmatprep.subr.bf16.mxu0 0
  %287 = vmatpush1.bf16.msra.mxu0 %v209
  %288 = vmatprep.subr.bf16.mxu0 0
  %289 = vmatpush1.bf16.msra.mxu0 %v210
  %290 = vmatprep.subr.bf16.mxu0 0
  %291 = vmatpush1.bf16.msra.mxu0 0
  %292 = vmatprep.subr.bf16.mxu0 0
  %293 = vmatpush1.bf16.msra.mxu0 0
  %294 = vmatprep.subr.bf16.mxu0 0
  %295 = vmatpush1.bf16.msra.mxu0 0
  %296 = vmatprep.subr.bf16.mxu0 0
  %297 = vmatpush1.bf16.msra.mxu0 0
  %298 = vmatprep.subr.bf16.mxu0 0
  %299 = vmatpush1.bf16.msra.mxu0 0
  %300 = vmatprep.subr.bf16.mxu0 0
  %301 = vmatpush1.bf16.msra.mxu0 0
  %302 = vmatprep.subr.bf16.mxu0 0
  %303 = vmatpush1.bf16.msra.mxu0 0
  %304 = vmatprep.subr.bf16.mxu0 0
  %305 = vmatpush1.bf16.msra.mxu0 0
  %306 = vmatprep.subr.bf16.mxu0 0
  %307 = vmatpush1.bf16.msra.mxu0 0
  %308 = vmatprep.subr.bf16.mxu0 0
  %309 = vmatpush1.bf16.msra.mxu0 0
  %310 = vmatprep.subr.bf16.mxu0 0
  %311 = vmatpush1.bf16.msra.mxu0 0
  %312 = vmatprep.subr.bf16.mxu0 0
  %313 = vmatpush1.bf16.msra.mxu0 0
  %314 = vmatprep.subr.bf16.mxu0 0
  %315 = vmatpush1.bf16.msra.mxu0 0
  %316 = vmatprep.subr.bf16.mxu0 0
  %317 = vmatpush1.bf16.msra.mxu0 0
  %318 = vmatprep.mubr.bf16.mxu0 0
  %319 = vmatmul.mubr.bf16.gmra.mrb[0].mxu0 %v215
  %v320 = vpop.f32.mrb[0].mxu0
  %v321 = vadd.f32 %v80, %v320
  %v322 = vpop.f32.mrb[0].mxu0
  %v323 = vpop.f32.mrb[0].mxu0
  %v324 = vadd.f32 %v80, %v323
  %v325 = vpop.f32.mrb[0].mxu0
  %326 = vmatprep.mubr.bf16.mxu0 0
  %327 = vmatmul.mubr.bf16.gmra.mrb[0].mxu0 %v218
  %v328 = vpop.f32.mrb[0].mxu0
  %v329 = vadd.f32 %v80, %v328
  %v330 = vpop.f32.mrb[0].mxu0
  %v331 = vpop.f32.mrb[0].mxu0
  %v332 = vadd.f32 %v80, %v331
  %v333 = vpop.f32.mrb[0].mxu0
  %334 = vmatprep.mubr.bf16.mxu0 0
  %335 = vmatmul.mubr.bf16.gmra.mrb[0].mxu0 %v221
  %v336 = vpop.f32.mrb[0].mxu0
  %v337 = vadd.f32 %v80, %v336
  %v338 = vpop.f32.mrb[0].mxu0
  %v339 = vpop.f32.mrb[0].mxu0
  %v340 = vadd.f32 %v80, %v339
  %v341 = vpop.f32.mrb[0].mxu0
  %342 = vmatprep.mubr.bf16.mxu0 0
  %343 = vmatmul.mubr.bf16.gmra.mrb[0].mxu0 %v224
  %v344 = vpop.f32.mrb[0].mxu0
  %v345 = vadd.f32 %v80, %v344
  %v346 = vpop.f32.mrb[0].mxu0
  %v347 = vpop.f32.mrb[0].mxu0
  %v348 = vadd.f32 %v80, %v347
  %v349 = vpop.f32.mrb[0].mxu0
  %350 = vmatprep.mubr.bf16.mxu0 0
  %351 = vmatmul.mubr.bf16.gmra.mrb[0].mxu0 %v227
  %v352 = vpop.f32.mrb[0].mxu0
  %v353 = vadd.f32 %v80, %v352
  %v354 = vpop.f32.mrb[0].mxu0
  %v355 = vpop.f32.mrb[0].mxu0
  %v356 = vadd.f32 %v80, %v355
  %v357 = vpop.f32.mrb[0].mxu0
  %358 = vmatprep.mubr.bf16.mxu0 0
  %359 = vmatmul.mubr.bf16.gmra.mrb[0].mxu0 %v230
  %v360 = vpop.f32.mrb[0].mxu0
  %v361 = vadd.f32 %v80, %v360
  %v362 = vpop.f32.mrb[0].mxu0
  %v363 = vpop.f32.mrb[0].mxu0
  %v364 = vadd.f32 %v80, %v363
  %v365 = vpop.f32.mrb[0].mxu0
  %366 = vmatprep.mubr.bf16.mxu0 0
  %367 = vmatmul.mubr.bf16.gmra.mrb[0].mxu0 %v233
  %v368 = vpop.f32.mrb[0].mxu0
  %v369 = vadd.f32 %v80, %v368
  %v370 = vpop.f32.mrb[0].mxu0
  %v371 = vpop.f32.mrb[0].mxu0
  %v372 = vadd.f32 %v80, %v371
  %v373 = vpop.f32.mrb[0].mxu0
  %374 = vmatprep.mubr.bf16.mxu0 0
  %375 = vmatmul.mubr.bf16.gmra.mrb[0].mxu0 %v236
  %v376 = vpop.f32.mrb[0].mxu0
  %v377 = vadd.f32 %v80, %v376
  %v378 = vpop.f32.mrb[0].mxu0
  %v379 = vpop.f32.mrb[0].mxu0
  %v380 = vadd.f32 %v80, %v379
  %v381 = vpop.f32.mrb[0].mxu0
  %382 = vmatprep.mubr.bf16.mxu0 0
  %383 = vmatmul.mubr.bf16.gmra.mrb[0].mxu0 %v239
  %v384 = vpop.f32.mrb[0].mxu0
  %v385 = vadd.f32 %v80, %v384
  %v386 = vpop.f32.mrb[0].mxu0
  %v387 = vpop.f32.mrb[0].mxu0
  %v388 = vadd.f32 %v80, %v387
  %v389 = vpop.f32.mrb[0].mxu0
  %390 = vmatprep.mubr.bf16.mxu0 0
  %391 = vmatmul.mubr.bf16.gmra.mrb[0].mxu0 %v242
  %v392 = vpop.f32.mrb[0].mxu0
  %v393 = vadd.f32 %v80, %v392
  %v394 = vpop.f32.mrb[0].mxu0
  %v395 = vpop.f32.mrb[0].mxu0
  %v396 = vadd.f32 %v80, %v395
  %v397 = vpop.f32.mrb[0].mxu0
  %398 = vmatprep.mubr.bf16.mxu0 0
  %399 = vmatmul.mubr.bf16.gmra.mrb[0].mxu0 %v245
  %v400 = vpop.f32.mrb[0].mxu0
  %v401 = vadd.f32 %v80, %v400
  %v402 = vpop.f32.mrb[0].mxu0
  %v403 = vpop.f32.mrb[0].mxu0
  %v404 = vadd.f32 %v80, %v403
  %v405 = vpop.f32.mrb[0].mxu0
  %406 = vmatprep.mubr.bf16.mxu0 0
  %407 = vmatmul.mubr.bf16.gmra.mrb[0].mxu0 %v248
  %v408 = vpop.f32.mrb[0].mxu0
  %v409 = vadd.f32 %v80, %v408
  %v410 = vpop.f32.mrb[0].mxu0
  %v411 = vpop.f32.mrb[0].mxu0
  %v412 = vadd.f32 %v80, %v411
  %v413 = vpop.f32.mrb[0].mxu0
  %414 = vmatprep.mubr.bf16.mxu0 0
  %415 = vmatmul.mubr.bf16.gmra.mrb[0].mxu0 %v251
  %v416 = vpop.f32.mrb[0].mxu0
  %v417 = vadd.f32 %v80, %v416
  %v418 = vpop.f32.mrb[0].mxu0
  %v419 = vpop.f32.mrb[0].mxu0
  %v420 = vadd.f32 %v80, %v419
  %v421 = vpop.f32.mrb[0].mxu0
  %422 = vmatprep.mubr.bf16.mxu0 0
  %423 = vmatmul.mubr.bf16.gmra.mrb[0].mxu0 %v254
  %v424 = vpop.f32.mrb[0].mxu0
  %v425 = vadd.f32 %v80, %v424
  %v426 = vpop.f32.mrb[0].mxu0
  %v427 = vpop.f32.mrb[0].mxu0
  %v428 = vadd.f32 %v80, %v427
  %v429 = vpop.f32.mrb[0].mxu0
  %430 = vmatprep.mubr.bf16.mxu0 0
  %431 = vmatmul.mubr.bf16.gmra.mrb[0].mxu0 %v257
  %v432 = vpop.f32.mrb[0].mxu0
  %v433 = vadd.f32 %v80, %v432
  %v434 = vpop.f32.mrb[0].mxu0
  %v435 = vpop.f32.mrb[0].mxu0
  %v436 = vadd.f32 %v80, %v435
  %v437 = vpop.f32.mrb[0].mxu0
  %438 = vmatprep.mubr.bf16.mxu0 0
  %439 = vmatmul.mubr.bf16.gmra.mrb[0].mxu0 %v260
  %v440 = vpop.f32.mrb[0].mxu0
  %v441 = vadd.f32 %v80, %v440
  %v442 = vpop.f32.mrb[0].mxu0
  %v443 = vpop.f32.mrb[0].mxu0
  %v444 = vadd.f32 %v80, %v443
  %v445 = vpop.f32.mrb[0].mxu0
  %446 = vmatprep.mubr.bf16.mxu0 0
  %447 = vmatmul.mubr.bf16.gmra.mrb[0].mxu0 %v263
  %v448 = vpop.f32.mrb[0].mxu0
  %v449 = vadd.f32 %v80, %v448
  %v450 = vpop.f32.mrb[0].mxu0
  %v451 = vpop.f32.mrb[0].mxu0
  %v452 = vadd.f32 %v80, %v451
  %v453 = vpop.f32.mrb[0].mxu0
  %454 = vmatprep.mubr.bf16.mxu0 0
  %455 = vmatmul.mubr.bf16.gmra.mrb[0].mxu0 %v266
  %v456 = vpop.f32.mrb[0].mxu0
  %v457 = vadd.f32 %v80, %v456
  %v458 = vpop.f32.mrb[0].mxu0
  %v459 = vpop.f32.mrb[0].mxu0
  %v460 = vadd.f32 %v80, %v459
  %v461 = vpop.f32.mrb[0].mxu0
  %462 = vmatprep.mubr.bf16.mxu0 0
  %463 = vmatmul.mubr.bf16.gmra.mrb[0].mxu0 %v269
  %v464 = vpop.f32.mrb[0].mxu0
  %v465 = vadd.f32 %v80, %v464
  %v466 = vpop.f32.mrb[0].mxu0
  %v467 = vpop.f32.mrb[0].mxu0
  %v468 = vadd.f32 %v80, %v467
  %v469 = vpop.f32.mrb[0].mxu0
  %470 = vmatprep.mubr.bf16.mxu0 0
  %471 = vmatmul.mubr.bf16.gmra.mrb[0].mxu0 %v272
  %v472 = vpop.f32.mrb[0].mxu0
  %v473 = vadd.f32 %v80, %v472
  %v474 = vpop.f32.mrb[0].mxu0
  %v475 = vpop.f32.mrb[0].mxu0
  %v476 = vadd.f32 %v80, %v475
  %v477 = vpop.f32.mrb[0].mxu0
  %478 = vmatprep.mubr.bf16.mxu0 0
  %479 = vmatmul.mubr.bf16.gmra.mrb[0].mxu0 %v275
  %v480 = vpop.f32.mrb[0].mxu0
  %v481 = vadd.f32 %v80, %v480
  %v482 = vpop.f32.mrb[0].mxu0
  %v483 = vpop.f32.mrb[0].mxu0
  %v484 = vadd.f32 %v80, %v483
  %v485 = vpop.f32.mrb[0].mxu0
  %486 = vmatprep.mubr.bf16.mxu0 0
  %487 = vmatmul.mubr.bf16.gmra.mrb[0].mxu0 %v278
  %v488 = vpop.f32.mrb[0].mxu0
  %v489 = vadd.f32 %v80, %v488
  %v490 = vpop.f32.mrb[0].mxu0
  %v491 = vpop.f32.mrb[0].mxu0
  %v492 = vadd.f32 %v80, %v491
  %v493 = vpop.f32.mrb[0].mxu0
  %494 = vmatprep.mubr.bf16.mxu0 0
  %495 = vmatmul.mubr.bf16.gmra.mrb[0].mxu0 %v281
  %v496 = vpop.f32.mrb[0].mxu0
  %v497 = vadd.f32 %v80, %v496
  %v498 = vpop.f32.mrb[0].mxu0
  %v499 = vpop.f32.mrb[0].mxu0
  %v500 = vadd.f32 %v80, %v499
  %v501 = vpop.f32.mrb[0].mxu0
  %502 = vmatprep.mubr.bf16.mxu0 0
  %503 = vmatmul.mubr.bf16.gmra.mrb[0].mxu0 %v284
  %v504 = vpop.f32.mrb[0].mxu0
  %v505 = vadd.f32 %v80, %v504
  %v506 = vpop.f32.mrb[0].mxu0
  %v507 = vpop.f32.mrb[0].mxu0
  %v508 = vadd.f32 %v80, %v507
  %v509 = vpop.f32.mrb[0].mxu0
  %510 = vdwg.mxu0
  %v511 = vmax.f32 %v321, 0.0
  %v512 = vmax.f32 %v324, 0.0
  %v513 = vmax.f32 %v329, 0.0
  %v514 = vmax.f32 %v332, 0.0
  %v515 = vmax.f32 %v337, 0.0
  %v516 = vmax.f32 %v340, 0.0
  %v517 = vmax.f32 %v345, 0.0
  %v518 = vmax.f32 %v348, 0.0
  %v519 = vmax.f32 %v353, 0.0
  %v520 = vmax.f32 %v356, 0.0
  %v521 = vmax.f32 %v361, 0.0
  %v522 = vmax.f32 %v364, 0.0
  %v523 = vmax.f32 %v369, 0.0
  %v524 = vmax.f32 %v372, 0.0
  %v525 = vmax.f32 %v377, 0.0
  %v526 = vmax.f32 %v380, 0.0
  %v527 = vmax.f32 %v385, 0.0
  %v528 = vmax.f32 %v388, 0.0
  %v529 = vmax.f32 %v393, 0.0
  %v530 = vmax.f32 %v396, 0.0
  %v531 = vmax.f32 %v401, 0.0
  %v532 = vmax.f32 %v404, 0.0
  %v533 = vmax.f32 %v409, 0.0
  %v534 = vmax.f32 %v412, 0.0
  %v535 = vmax.f32 %v417, 0.0
  %v536 = vmax.f32 %v420, 0.0
  %v537 = vmax.f32 %v425, 0.0
  %v538 = vmax.f32 %v428, 0.0
  %v539 = vmax.f32 %v433, 0.0
  %v540 = vmax.f32 %v436, 0.0
  %v541 = vmax.f32 %v441, 0.0
  %v542 = vmax.f32 %v444, 0.0
  %v543 = vmax.f32 %v449, 0.0
  %v544 = vmax.f32 %v452, 0.0
  %v545 = vmax.f32 %v457, 0.0
  %v546 = vmax.f32 %v460, 0.0
  %v547 = vmax.f32 %v465, 0.0
  %v548 = vmax.f32 %v468, 0.0
  %v549 = vmax.f32 %v473, 0.0
  %v550 = vmax.f32 %v476, 0.0
  %v551 = vmax.f32 %v481, 0.0
  %v552 = vmax.f32 %v484, 0.0
  %v553 = vmax.f32 %v489, 0.0
  %v554 = vmax.f32 %v492, 0.0
  %v555 = vmax.f32 %v497, 0.0
  %v556 = vmax.f32 %v500, 0.0
  %v557 = vmax.f32 %v505, 0.0
  %v558 = vmax.f32 %v508, 0.0
  %v559 = vld [vmem:[%s2] sm:$0xf]
  %v560 = vld [vmem:[%s2 + $0x4] sm:$0xf]
  %v561 = vld [vmem:[%s2 + $0x8] sm:$0xf]
  %v562 = vld [vmem:[%s2 + $0xc] sm:$0xf]
  %v563 = vld [vmem:[%s2 + $0x10] sm:$0xf]
  %v564 = vld [vmem:[%s2 + $0x14] sm:$0xf]
  %v565 = vld [vmem:[%s2 + $0x18] sm:$0xf]
  %v566 = vld [vmem:[%s2 + $0x1c] sm:$0xf]
  %v567 = vld [vmem:[%s2 + $0x20] sm:$0xf]
  %v568 = vld [vmem:[%s2 + $0x24] sm:$0xf]
  %v569 = vld [vmem:[%s2 + $0x28] sm:$0xf]
  %v570 = vld [vmem:[%s2 + $0x2c] sm:$0xf]
  %v571 = vld [vmem:[%s2 + $0x30] sm:$0xf]
  %v572 = vld [vmem:[%s2 + $0x34] sm:$0xf]
  %v573 = vld [vmem:[%s2 + $0x38] sm:$0xf]
  %v574 = vld [vmem:[%s2 + $0x3c] sm:$0xf]
  %v575 = vpack.c.bf16 %v512, %v511
  %v576 = vpack.c.bf16 %v514, %v513
  %v577 = vpack.c.bf16 %v516, %v515
  %v578 = vpack.c.bf16 %v518, %v517
  %v579 = vpack.c.bf16 %v520, %v519
  %v580 = vpack.c.bf16 %v522, %v521
  %v581 = vpack.c.bf16 %v524, %v523
  %v582 = vpack.c.bf16 %v526, %v525
  %v583 = vpack.c.bf16 %v528, %v527
  %v584 = vpack.c.bf16 %v530, %v529
  %v585 = vpack.c.bf16 %v532, %v531
  %v586 = vpack.c.bf16 %v534, %v533
  %v587 = vpack.c.bf16 %v536, %v535
  %v588 = vpack.c.bf16 %v538, %v537
  %v589 = vpack.c.bf16 %v540, %v539
  %v590 = vpack.c.bf16 %v542, %v541
  %v591 = vpack.c.bf16 %v544, %v543
  %v592 = vpack.c.bf16 %v546, %v545
  %v593 = vpack.c.bf16 %v548, %v547
  %v594 = vpack.c.bf16 %v550, %v549
  %v595 = vpack.c.bf16 %v552, %v551
  %v596 = vpack.c.bf16 %v554, %v553
  %v597 = vpack.c.bf16 %v556, %v555
  %v598 = vpack.c.bf16 %v558, %v557
  %v599 = vlaneseq
  %v600 = vshrl.u32 %v599, 7
  %v601 = vsub.s32 1, %v600
  %v602 = vrot.slane %v72, %v601
  %v619 = vunpack.c.l.b16 %v559
  %v620 = vunpack.c.l.b16 %v560
  %v621 = vunpack.c.l.b16 %v561
  %v622 = vunpack.c.l.b16 %v562
  %v623 = vunpack.c.l.b16 %v563
  %v624 = vunpack.c.l.b16 %v564
  %v625 = vunpack.c.l.b16 %v565
  %v626 = vunpack.c.l.b16 %v566
  %v627 = vunpack.c.l.b16 %v567
  %v628 = vunpack.c.l.b16 %v568
  %v629 = vunpack.c.l.b16 %v569
  %v630 = vunpack.c.l.b16 %v570
  %v631 = vunpack.c.l.b16 %v571
  %v632 = vunpack.c.l.b16 %v572
  %v633 = vunpack.c.l.b16 %v573
  %v634 = vunpack.c.l.b16 %v574
  %v635 = vpack.c.b16 %v620, %v619
  %v636 = vpack.c.b16 %v622, %v621
  %v637 = vpack.c.b16 %v624, %v623
  %v638 = vpack.c.b16 %v626, %v625
  %v639 = vpack.c.b16 %v628, %v627
  %v640 = vpack.c.b16 %v630, %v629
  %v641 = vpack.c.b16 %v632, %v631
  %v642 = vpack.c.b16 %v634, %v633
  %651 = vmatprep.subr.bf16.mxu0 0
  %652 = vmatpush1.bf16.msra.mxu0 %v635
  %653 = vmatprep.subr.bf16.mxu0 0
  %654 = vmatpush1.bf16.msra.mxu0 %v636
  %655 = vmatprep.subr.bf16.mxu0 0
  %656 = vmatpush1.bf16.msra.mxu0 %v637
  %657 = vmatprep.subr.bf16.mxu0 0
  %658 = vmatpush1.bf16.msra.mxu0 %v638
  %659 = vmatprep.subr.bf16.mxu0 0
  %660 = vmatpush1.bf16.msra.mxu0 %v639
  %661 = vmatprep.subr.bf16.mxu0 0
  %662 = vmatpush1.bf16.msra.mxu0 %v640
  %663 = vmatprep.subr.bf16.mxu0 0
  %664 = vmatpush1.bf16.msra.mxu0 %v641
  %665 = vmatprep.subr.bf16.mxu0 0
  %666 = vmatpush1.bf16.msra.mxu0 %v642
  %667 = vmatprep.subr.bf16.mxu0 0
  %668 = vmatpush1.bf16.msra.mxu0 0
  %669 = vmatprep.subr.bf16.mxu0 0
  %670 = vmatpush1.bf16.msra.mxu0 0
  %671 = vmatprep.subr.bf16.mxu0 0
  %672 = vmatpush1.bf16.msra.mxu0 0
  %673 = vmatprep.subr.bf16.mxu0 0
  %674 = vmatpush1.bf16.msra.mxu0 0
  %675 = vmatprep.subr.bf16.mxu0 0
  %676 = vmatpush1.bf16.msra.mxu0 0
  %677 = vmatprep.subr.bf16.mxu0 0
  %678 = vmatpush1.bf16.msra.mxu0 0
  %679 = vmatprep.subr.bf16.mxu0 0
  %680 = vmatpush1.bf16.msra.mxu0 0
  %681 = vmatprep.subr.bf16.mxu0 0
  %682 = vmatpush1.bf16.msra.mxu0 0
  %683 = vmatprep.mubr.bf16.mxu0 0
  %684 = vmatmul.mubr.bf16.gmra.mrb[0].mxu0 %v575
  %v685 = vpop.f32.mrb[0].mxu0
  %v686 = vadd.f32 %v602, %v685
  %v687 = vpop.f32.mrb[0].mxu0
  %v688 = vpop.f32.mrb[0].mxu0
  %v689 = vadd.f32 %v602, %v688
  %v690 = vpop.f32.mrb[0].mxu0
  %691 = vmatprep.mubr.bf16.mxu0 0
  %692 = vmatmul.mubr.bf16.gmra.mrb[0].mxu0 %v576
  %v693 = vpop.f32.mrb[0].mxu0
  %v694 = vadd.f32 %v602, %v693
  %v695 = vpop.f32.mrb[0].mxu0
  %v696 = vpop.f32.mrb[0].mxu0
  %v697 = vadd.f32 %v602, %v696
  %v698 = vpop.f32.mrb[0].mxu0
  %699 = vmatprep.mubr.bf16.mxu0 0
  %700 = vmatmul.mubr.bf16.gmra.mrb[0].mxu0 %v577
  %v701 = vpop.f32.mrb[0].mxu0
  %v702 = vadd.f32 %v602, %v701
  %v703 = vpop.f32.mrb[0].mxu0
  %v704 = vpop.f32.mrb[0].mxu0
  %v705 = vadd.f32 %v602, %v704
  %v706 = vpop.f32.mrb[0].mxu0
  %707 = vmatprep.mubr.bf16.mxu0 0
  %708 = vmatmul.mubr.bf16.gmra.mrb[0].mxu0 %v578
  %v709 = vpop.f32.mrb[0].mxu0
  %v710 = vadd.f32 %v602, %v709
  %v711 = vpop.f32.mrb[0].mxu0
  %v712 = vpop.f32.mrb[0].mxu0
  %v713 = vadd.f32 %v602, %v712
  %v714 = vpop.f32.mrb[0].mxu0
  %715 = vmatprep.mubr.bf16.mxu0 0
  %716 = vmatmul.mubr.bf16.gmra.mrb[0].mxu0 %v579
  %v717 = vpop.f32.mrb[0].mxu0
  %v718 = vadd.f32 %v602, %v717
  %v719 = vpop.f32.mrb[0].mxu0
  %v720 = vpop.f32.mrb[0].mxu0
  %v721 = vadd.f32 %v602, %v720
  %v722 = vpop.f32.mrb[0].mxu0
  %723 = vmatprep.mubr.bf16.mxu0 0
  %724 = vmatmul.mubr.bf16.gmra.mrb[0].mxu0 %v580
  %v725 = vpop.f32.mrb[0].mxu0
  %v726 = vadd.f32 %v602, %v725
  %v727 = vpop.f32.mrb[0].mxu0
  %v728 = vpop.f32.mrb[0].mxu0
  %v729 = vadd.f32 %v602, %v728
  %v730 = vpop.f32.mrb[0].mxu0
  %731 = vmatprep.mubr.bf16.mxu0 0
  %732 = vmatmul.mubr.bf16.gmra.mrb[0].mxu0 %v581
  %v733 = vpop.f32.mrb[0].mxu0
  %v734 = vadd.f32 %v602, %v733
  %v735 = vpop.f32.mrb[0].mxu0
  %v736 = vpop.f32.mrb[0].mxu0
  %v737 = vadd.f32 %v602, %v736
  %v738 = vpop.f32.mrb[0].mxu0
  %739 = vmatprep.mubr.bf16.mxu0 0
  %740 = vmatmul.mubr.bf16.gmra.mrb[0].mxu0 %v582
  %v741 = vpop.f32.mrb[0].mxu0
  %v742 = vadd.f32 %v602, %v741
  %v743 = vpop.f32.mrb[0].mxu0
  %v744 = vpop.f32.mrb[0].mxu0
  %v745 = vadd.f32 %v602, %v744
  %v746 = vpop.f32.mrb[0].mxu0
  %747 = vmatprep.mubr.bf16.mxu0 0
  %748 = vmatmul.mubr.bf16.gmra.mrb[0].mxu0 %v583
  %v749 = vpop.f32.mrb[0].mxu0
  %v750 = vadd.f32 %v602, %v749
  %v751 = vpop.f32.mrb[0].mxu0
  %v752 = vpop.f32.mrb[0].mxu0
  %v753 = vadd.f32 %v602, %v752
  %v754 = vpop.f32.mrb[0].mxu0
  %755 = vmatprep.mubr.bf16.mxu0 0
  %756 = vmatmul.mubr.bf16.gmra.mrb[0].mxu0 %v584
  %v757 = vpop.f32.mrb[0].mxu0
  %v758 = vadd.f32 %v602, %v757
  %v759 = vpop.f32.mrb[0].mxu0
  %v760 = vpop.f32.mrb[0].mxu0
  %v761 = vadd.f32 %v602, %v760
  %v762 = vpop.f32.mrb[0].mxu0
  %763 = vmatprep.mubr.bf16.mxu0 0
  %764 = vmatmul.mubr.bf16.gmra.mrb[0].mxu0 %v585
  %v765 = vpop.f32.mrb[0].mxu0
  %v766 = vadd.f32 %v602, %v765
  %v767 = vpop.f32.mrb[0].mxu0
  %v768 = vpop.f32.mrb[0].mxu0
  %v769 = vadd.f32 %v602, %v768
  %v770 = vpop.f32.mrb[0].mxu0
  %771 = vmatprep.mubr.bf16.mxu0 0
  %772 = vmatmul.mubr.bf16.gmra.mrb[0].mxu0 %v586
  %v773 = vpop.f32.mrb[0].mxu0
  %v774 = vadd.f32 %v602, %v773
  %v775 = vpop.f32.mrb[0].mxu0
  %v776 = vpop.f32.mrb[0].mxu0
  %v777 = vadd.f32 %v602, %v776
  %v778 = vpop.f32.mrb[0].mxu0
  %779 = vmatprep.mubr.bf16.mxu0 0
  %780 = vmatmul.mubr.bf16.gmra.mrb[0].mxu0 %v587
  %v781 = vpop.f32.mrb[0].mxu0
  %v782 = vadd.f32 %v602, %v781
  %v783 = vpop.f32.mrb[0].mxu0
  %v784 = vpop.f32.mrb[0].mxu0
  %v785 = vadd.f32 %v602, %v784
  %v786 = vpop.f32.mrb[0].mxu0
  %787 = vmatprep.mubr.bf16.mxu0 0
  %788 = vmatmul.mubr.bf16.gmra.mrb[0].mxu0 %v588
  %v789 = vpop.f32.mrb[0].mxu0
  %v790 = vadd.f32 %v602, %v789
  %v791 = vpop.f32.mrb[0].mxu0
  %v792 = vpop.f32.mrb[0].mxu0
  %v793 = vadd.f32 %v602, %v792
  %v794 = vpop.f32.mrb[0].mxu0
  %795 = vmatprep.mubr.bf16.mxu0 0
  %796 = vmatmul.mubr.bf16.gmra.mrb[0].mxu0 %v589
  %v797 = vpop.f32.mrb[0].mxu0
  %v798 = vadd.f32 %v602, %v797
  %v799 = vpop.f32.mrb[0].mxu0
  %v800 = vpop.f32.mrb[0].mxu0
  %v801 = vadd.f32 %v602, %v800
  %v802 = vpop.f32.mrb[0].mxu0
  %803 = vmatprep.mubr.bf16.mxu0 0
  %804 = vmatmul.mubr.bf16.gmra.mrb[0].mxu0 %v590
  %v805 = vpop.f32.mrb[0].mxu0
  %v806 = vadd.f32 %v602, %v805
  %v807 = vpop.f32.mrb[0].mxu0
  %v808 = vpop.f32.mrb[0].mxu0
  %v809 = vadd.f32 %v602, %v808
  %v810 = vpop.f32.mrb[0].mxu0
  %811 = vmatprep.mubr.bf16.mxu0 0
  %812 = vmatmul.mubr.bf16.gmra.mrb[0].mxu0 %v591
  %v813 = vpop.f32.mrb[0].mxu0
  %v814 = vadd.f32 %v602, %v813
  %v815 = vpop.f32.mrb[0].mxu0
  %v816 = vpop.f32.mrb[0].mxu0
  %v817 = vadd.f32 %v602, %v816
  %v818 = vpop.f32.mrb[0].mxu0
  %819 = vmatprep.mubr.bf16.mxu0 0
  %820 = vmatmul.mubr.bf16.gmra.mrb[0].mxu0 %v592
  %v821 = vpop.f32.mrb[0].mxu0
  %v822 = vadd.f32 %v602, %v821
  %v823 = vpop.f32.mrb[0].mxu0
  %v824 = vpop.f32.mrb[0].mxu0
  %v825 = vadd.f32 %v602, %v824
  %v826 = vpop.f32.mrb[0].mxu0
  %827 = vmatprep.mubr.bf16.mxu0 0
  %828 = vmatmul.mubr.bf16.gmra.mrb[0].mxu0 %v593
  %v829 = vpop.f32.mrb[0].mxu0
  %v830 = vadd.f32 %v602, %v829
  %v831 = vpop.f32.mrb[0].mxu0
  %v832 = vpop.f32.mrb[0].mxu0
  %v833 = vadd.f32 %v602, %v832
  %v834 = vpop.f32.mrb[0].mxu0
  %835 = vmatprep.mubr.bf16.mxu0 0
  %836 = vmatmul.mubr.bf16.gmra.mrb[0].mxu0 %v594
  %v837 = vpop.f32.mrb[0].mxu0
  %v838 = vadd.f32 %v602, %v837
  %v839 = vpop.f32.mrb[0].mxu0
  %v840 = vpop.f32.mrb[0].mxu0
  %v841 = vadd.f32 %v602, %v840
  %v842 = vpop.f32.mrb[0].mxu0
  %843 = vmatprep.mubr.bf16.mxu0 0
  %844 = vmatmul.mubr.bf16.gmra.mrb[0].mxu0 %v595
  %v845 = vpop.f32.mrb[0].mxu0
  %v846 = vadd.f32 %v602, %v845
  %v847 = vpop.f32.mrb[0].mxu0
  %v848 = vpop.f32.mrb[0].mxu0
  %v849 = vadd.f32 %v602, %v848
  %v850 = vpop.f32.mrb[0].mxu0
  %851 = vmatprep.mubr.bf16.mxu0 0
  %852 = vmatmul.mubr.bf16.gmra.mrb[0].mxu0 %v596
  %v853 = vpop.f32.mrb[0].mxu0
  %v854 = vadd.f32 %v602, %v853
  %v855 = vpop.f32.mrb[0].mxu0
  %v856 = vpop.f32.mrb[0].mxu0
  %v857 = vadd.f32 %v602, %v856
  %v858 = vpop.f32.mrb[0].mxu0
  %859 = vmatprep.mubr.bf16.mxu0 0
  %860 = vmatmul.mubr.bf16.gmra.mrb[0].mxu0 %v597
  %v861 = vpop.f32.mrb[0].mxu0
  %v862 = vadd.f32 %v602, %v861
  %v863 = vpop.f32.mrb[0].mxu0
  %v864 = vpop.f32.mrb[0].mxu0
  %v865 = vadd.f32 %v602, %v864
  %v866 = vpop.f32.mrb[0].mxu0
  %867 = vmatprep.mubr.bf16.mxu0 0
  %868 = vmatmul.mubr.bf16.gmra.mrb[0].mxu0 %v598
  %v869 = vpop.f32.mrb[0].mxu0
  %v870 = vadd.f32 %v602, %v869
  %v871 = vpop.f32.mrb[0].mxu0
  %v872 = vpop.f32.mrb[0].mxu0
  %v873 = vadd.f32 %v602, %v872
  %v874 = vpop.f32.mrb[0].mxu0
  %875 = vdwg.mxu0
  %v876 = vmax.f32 %v686, 0.0
  %v877 = vmax.f32 %v689, 0.0
  %v878 = vmax.f32 %v694, 0.0
  %v879 = vmax.f32 %v697, 0.0
  %v880 = vmax.f32 %v702, 0.0
  %v881 = vmax.f32 %v705, 0.0
  %v882 = vmax.f32 %v710, 0.0
  %v883 = vmax.f32 %v713, 0.0
  %v884 = vmax.f32 %v718, 0.0
  %v885 = vmax.f32 %v721, 0.0
  %v886 = vmax.f32 %v726, 0.0
  %v887 = vmax.f32 %v729, 0.0
  %v888 = vmax.f32 %v734, 0.0
  %v889 = vmax.f32 %v737, 0.0
  %v890 = vmax.f32 %v742, 0.0
  %v891 = vmax.f32 %v745, 0.0
  %v892 = vmax.f32 %v750, 0.0
  %v893 = vmax.f32 %v753, 0.0
  %v894 = vmax.f32 %v758, 0.0
  %v895 = vmax.f32 %v761, 0.0
  %v896 = vmax.f32 %v766, 0.0
  %v897 = vmax.f32 %v769, 0.0
  %v898 = vmax.f32 %v774, 0.0
  %v899 = vmax.f32 %v777, 0.0
  %v900 = vmax.f32 %v782, 0.0
  %v901 = vmax.f32 %v785, 0.0
  %v902 = vmax.f32 %v790, 0.0
  %v903 = vmax.f32 %v793, 0.0
  %v904 = vmax.f32 %v798, 0.0
  %v905 = vmax.f32 %v801, 0.0
  %v906 = vmax.f32 %v806, 0.0
  %v907 = vmax.f32 %v809, 0.0
  %v908 = vmax.f32 %v814, 0.0
  %v909 = vmax.f32 %v817, 0.0
  %v910 = vmax.f32 %v822, 0.0
  %v911 = vmax.f32 %v825, 0.0
  %v912 = vmax.f32 %v830, 0.0
  %v913 = vmax.f32 %v833, 0.0
  %v914 = vmax.f32 %v838, 0.0
  %v915 = vmax.f32 %v841, 0.0
  %v916 = vmax.f32 %v846, 0.0
  %v917 = vmax.f32 %v849, 0.0
  %v918 = vmax.f32 %v854, 0.0
  %v919 = vmax.f32 %v857, 0.0
  %v920 = vmax.f32 %v862, 0.0
  %v921 = vmax.f32 %v865, 0.0
  %v922 = vmax.f32 %v870, 0.0
  %v923 = vmax.f32 %v873, 0.0
  %s924 = scalar_lea.vmem %s2, 64
  %v925 = vld [vmem:[%s924] sm:$0xf]
  %v926 = vld [vmem:[%s924 + $0x4] sm:$0xf]
  %v927 = vld [vmem:[%s924 + $0x8] sm:$0xf]
  %v928 = vld [vmem:[%s924 + $0xc] sm:$0xf]
  %v929 = vld [vmem:[%s924 + $0x10] sm:$0xf]
  %v930 = vld [vmem:[%s924 + $0x14] sm:$0xf]
  %v931 = vld [vmem:[%s924 + $0x18] sm:$0xf]
  %v932 = vld [vmem:[%s924 + $0x1c] sm:$0xf]
  %v933 = vld [vmem:[%s924 + $0x20] sm:$0xf]
  %v934 = vld [vmem:[%s924 + $0x24] sm:$0xf]
  %v935 = vld [vmem:[%s924 + $0x28] sm:$0xf]
  %v936 = vld [vmem:[%s924 + $0x2c] sm:$0xf]
  %v937 = vld [vmem:[%s924 + $0x30] sm:$0xf]
  %v938 = vld [vmem:[%s924 + $0x34] sm:$0xf]
  %v939 = vld [vmem:[%s924 + $0x38] sm:$0xf]
  %v940 = vld [vmem:[%s924 + $0x3c] sm:$0xf]
  %v941 = vpack.c.bf16 %v877, %v876
  %v942 = vpack.c.bf16 %v879, %v878
  %v943 = vpack.c.bf16 %v881, %v880
  %v944 = vpack.c.bf16 %v883, %v882
  %v945 = vpack.c.bf16 %v885, %v884
  %v946 = vpack.c.bf16 %v887, %v886
  %v947 = vpack.c.bf16 %v889, %v888
  %v948 = vpack.c.bf16 %v891, %v890
  %v949 = vpack.c.bf16 %v893, %v892
  %v950 = vpack.c.bf16 %v895, %v894
  %v951 = vpack.c.bf16 %v897, %v896
  %v952 = vpack.c.bf16 %v899, %v898
  %v953 = vpack.c.bf16 %v901, %v900
  %v954 = vpack.c.bf16 %v903, %v902
  %v955 = vpack.c.bf16 %v905, %v904
  %v956 = vpack.c.bf16 %v907, %v906
  %v957 = vpack.c.bf16 %v909, %v908
  %v958 = vpack.c.bf16 %v911, %v910
  %v959 = vpack.c.bf16 %v913, %v912
  %v960 = vpack.c.bf16 %v915, %v914
  %v961 = vpack.c.bf16 %v917, %v916
  %v962 = vpack.c.bf16 %v919, %v918
  %v963 = vpack.c.bf16 %v921, %v920
  %v964 = vpack.c.bf16 %v923, %v922
  %v965 = vlaneseq
  %v966 = vshrl.u32 %v965, 7
  %v967 = vsub.s32 2, %v966
  %v968 = vrot.slane %v72, %v967
  %v985 = vunpack.c.l.b16 %v925
  %v986 = vunpack.c.l.b16 %v926
  %v987 = vunpack.c.l.b16 %v927
  %v988 = vunpack.c.l.b16 %v928
  %v989 = vunpack.c.l.b16 %v929
  %v990 = vunpack.c.l.b16 %v930
  %v991 = vunpack.c.l.b16 %v931
  %v992 = vunpack.c.l.b16 %v932
  %v993 = vunpack.c.l.b16 %v933
  %v994 = vunpack.c.l.b16 %v934
  %v995 = vunpack.c.l.b16 %v935
  %v996 = vunpack.c.l.b16 %v936
  %v997 = vunpack.c.l.b16 %v937
  %v998 = vunpack.c.l.b16 %v938
  %v999 = vunpack.c.l.b16 %v939
  %v1000 = vunpack.c.l.b16 %v940
  %v1001 = vpack.c.b16 %v986, %v985
  %v1002 = vpack.c.b16 %v988, %v987
  %v1003 = vpack.c.b16 %v990, %v989
  %v1004 = vpack.c.b16 %v992, %v991
  %v1005 = vpack.c.b16 %v994, %v993
  %v1006 = vpack.c.b16 %v996, %v995
  %v1007 = vpack.c.b16 %v998, %v997
  %v1008 = vpack.c.b16 %v1000, %v999
  %1017 = vmatprep.subr.bf16.mxu0 0
  %1018 = vmatpush1.bf16.msra.mxu0 %v1001
  %1019 = vmatprep.subr.bf16.mxu0 0
  %1020 = vmatpush1.bf16.msra.mxu0 %v1002
  %1021 = vmatprep.subr.bf16.mxu0 0
  %1022 = vmatpush1.bf16.msra.mxu0 %v1003
  %1023 = vmatprep.subr.bf16.mxu0 0
  %1024 = vmatpush1.bf16.msra.mxu0 %v1004
  %1025 = vmatprep.subr.bf16.mxu0 0
  %1026 = vmatpush1.bf16.msra.mxu0 %v1005
  %1027 = vmatprep.subr.bf16.mxu0 0
  %1028 = vmatpush1.bf16.msra.mxu0 %v1006
  %1029 = vmatprep.subr.bf16.mxu0 0
  %1030 = vmatpush1.bf16.msra.mxu0 %v1007
  %1031 = vmatprep.subr.bf16.mxu0 0
  %1032 = vmatpush1.bf16.msra.mxu0 %v1008
  %1033 = vmatprep.subr.bf16.mxu0 0
  %1034 = vmatpush1.bf16.msra.mxu0 0
  %1035 = vmatprep.subr.bf16.mxu0 0
  %1036 = vmatpush1.bf16.msra.mxu0 0
  %1037 = vmatprep.subr.bf16.mxu0 0
  %1038 = vmatpush1.bf16.msra.mxu0 0
  %1039 = vmatprep.subr.bf16.mxu0 0
  %1040 = vmatpush1.bf16.msra.mxu0 0
  %1041 = vmatprep.subr.bf16.mxu0 0
  %1042 = vmatpush1.bf16.msra.mxu0 0
  %1043 = vmatprep.subr.bf16.mxu0 0
  %1044 = vmatpush1.bf16.msra.mxu0 0
  %1045 = vmatprep.subr.bf16.mxu0 0
  %1046 = vmatpush1.bf16.msra.mxu0 0
  %1047 = vmatprep.subr.bf16.mxu0 0
  %1048 = vmatpush1.bf16.msra.mxu0 0
  %1049 = vmatprep.mubr.bf16.mxu0 0
  %1050 = vmatmul.mubr.bf16.gmra.mrb[0].mxu0 %v941
  %v1051 = vpop.f32.mrb[0].mxu0
  %v1052 = vadd.f32 %v968, %v1051
  %v1053 = vpop.f32.mrb[0].mxu0
  %v1054 = vpop.f32.mrb[0].mxu0
  %v1055 = vadd.f32 %v968, %v1054
  %v1056 = vpop.f32.mrb[0].mxu0
  %1057 = vmatprep.mubr.bf16.mxu0 0
  %1058 = vmatmul.mubr.bf16.gmra.mrb[0].mxu0 %v942
  %v1059 = vpop.f32.mrb[0].mxu0
  %v1060 = vadd.f32 %v968, %v1059
  %v1061 = vpop.f32.mrb[0].mxu0
  %v1062 = vpop.f32.mrb[0].mxu0
  %v1063 = vadd.f32 %v968, %v1062
  %v1064 = vpop.f32.mrb[0].mxu0
  %1065 = vmatprep.mubr.bf16.mxu0 0
  %1066 = vmatmul.mubr.bf16.gmra.mrb[0].mxu0 %v943
  %v1067 = vpop.f32.mrb[0].mxu0
  %v1068 = vadd.f32 %v968, %v1067
  %v1069 = vpop.f32.mrb[0].mxu0
  %v1070 = vpop.f32.mrb[0].mxu0
  %v1071 = vadd.f32 %v968, %v1070
  %v1072 = vpop.f32.mrb[0].mxu0
  %1073 = vmatprep.mubr.bf16.mxu0 0
  %1074 = vmatmul.mubr.bf16.gmra.mrb[0].mxu0 %v944
  %v1075 = vpop.f32.mrb[0].mxu0
  %v1076 = vadd.f32 %v968, %v1075
  %v1077 = vpop.f32.mrb[0].mxu0
  %v1078 = vpop.f32.mrb[0].mxu0
  %v1079 = vadd.f32 %v968, %v1078
  %v1080 = vpop.f32.mrb[0].mxu0
  %1081 = vmatprep.mubr.bf16.mxu0 0
  %1082 = vmatmul.mubr.bf16.gmra.mrb[0].mxu0 %v945
  %v1083 = vpop.f32.mrb[0].mxu0
  %v1084 = vadd.f32 %v968, %v1083
  %v1085 = vpop.f32.mrb[0].mxu0
  %v1086 = vpop.f32.mrb[0].mxu0
  %v1087 = vadd.f32 %v968, %v1086
  %v1088 = vpop.f32.mrb[0].mxu0
  %1089 = vmatprep.mubr.bf16.mxu0 0
  %1090 = vmatmul.mubr.bf16.gmra.mrb[0].mxu0 %v946
  %v1091 = vpop.f32.mrb[0].mxu0
  %v1092 = vadd.f32 %v968, %v1091
  %v1093 = vpop.f32.mrb[0].mxu0
  %v1094 = vpop.f32.mrb[0].mxu0
  %v1095 = vadd.f32 %v968, %v1094
  %v1096 = vpop.f32.mrb[0].mxu0
  %1097 = vmatprep.mubr.bf16.mxu0 0
  %1098 = vmatmul.mubr.bf16.gmra.mrb[0].mxu0 %v947
  %v1099 = vpop.f32.mrb[0].mxu0
  %v1100 = vadd.f32 %v968, %v1099
  %v1101 = vpop.f32.mrb[0].mxu0
  %v1102 = vpop.f32.mrb[0].mxu0
  %v1103 = vadd.f32 %v968, %v1102
  %v1104 = vpop.f32.mrb[0].mxu0
  %1105 = vmatprep.mubr.bf16.mxu0 0
  %1106 = vmatmul.mubr.bf16.gmra.mrb[0].mxu0 %v948
  %v1107 = vpop.f32.mrb[0].mxu0
  %v1108 = vadd.f32 %v968, %v1107
  %v1109 = vpop.f32.mrb[0].mxu0
  %v1110 = vpop.f32.mrb[0].mxu0
  %v1111 = vadd.f32 %v968, %v1110
  %v1112 = vpop.f32.mrb[0].mxu0
  %1113 = vmatprep.mubr.bf16.mxu0 0
  %1114 = vmatmul.mubr.bf16.gmra.mrb[0].mxu0 %v949
  %v1115 = vpop.f32.mrb[0].mxu0
  %v1116 = vadd.f32 %v968, %v1115
  %v1117 = vpop.f32.mrb[0].mxu0
  %v1118 = vpop.f32.mrb[0].mxu0
  %v1119 = vadd.f32 %v968, %v1118
  %v1120 = vpop.f32.mrb[0].mxu0
  %1121 = vmatprep.mubr.bf16.mxu0 0
  %1122 = vmatmul.mubr.bf16.gmra.mrb[0].mxu0 %v950
  %v1123 = vpop.f32.mrb[0].mxu0
  %v1124 = vadd.f32 %v968, %v1123
  %v1125 = vpop.f32.mrb[0].mxu0
  %v1126 = vpop.f32.mrb[0].mxu0
  %v1127 = vadd.f32 %v968, %v1126
  %v1128 = vpop.f32.mrb[0].mxu0
  %1129 = vmatprep.mubr.bf16.mxu0 0
  %1130 = vmatmul.mubr.bf16.gmra.mrb[0].mxu0 %v951
  %v1131 = vpop.f32.mrb[0].mxu0
  %v1132 = vadd.f32 %v968, %v1131
  %v1133 = vpop.f32.mrb[0].mxu0
  %v1134 = vpop.f32.mrb[0].mxu0
  %v1135 = vadd.f32 %v968, %v1134
  %v1136 = vpop.f32.mrb[0].mxu0
  %1137 = vmatprep.mubr.bf16.mxu0 0
  %1138 = vmatmul.mubr.bf16.gmra.mrb[0].mxu0 %v952
  %v1139 = vpop.f32.mrb[0].mxu0
  %v1140 = vadd.f32 %v968, %v1139
  %v1141 = vpop.f32.mrb[0].mxu0
  %v1142 = vpop.f32.mrb[0].mxu0
  %v1143 = vadd.f32 %v968, %v1142
  %v1144 = vpop.f32.mrb[0].mxu0
  %1145 = vmatprep.mubr.bf16.mxu0 0
  %1146 = vmatmul.mubr.bf16.gmra.mrb[0].mxu0 %v953
  %v1147 = vpop.f32.mrb[0].mxu0
  %v1148 = vadd.f32 %v968, %v1147
  %v1149 = vpop.f32.mrb[0].mxu0
  %v1150 = vpop.f32.mrb[0].mxu0
  %v1151 = vadd.f32 %v968, %v1150
  %v1152 = vpop.f32.mrb[0].mxu0
  %1153 = vmatprep.mubr.bf16.mxu0 0
  %1154 = vmatmul.mubr.bf16.gmra.mrb[0].mxu0 %v954
  %v1155 = vpop.f32.mrb[0].mxu0
  %v1156 = vadd.f32 %v968, %v1155
  %v1157 = vpop.f32.mrb[0].mxu0
  %v1158 = vpop.f32.mrb[0].mxu0
  %v1159 = vadd.f32 %v968, %v1158
  %v1160 = vpop.f32.mrb[0].mxu0
  %1161 = vmatprep.mubr.bf16.mxu0 0
  %1162 = vmatmul.mubr.bf16.gmra.mrb[0].mxu0 %v955
  %v1163 = vpop.f32.mrb[0].mxu0
  %v1164 = vadd.f32 %v968, %v1163
  %v1165 = vpop.f32.mrb[0].mxu0
  %v1166 = vpop.f32.mrb[0].mxu0
  %v1167 = vadd.f32 %v968, %v1166
  %v1168 = vpop.f32.mrb[0].mxu0
  %1169 = vmatprep.mubr.bf16.mxu0 0
  %1170 = vmatmul.mubr.bf16.gmra.mrb[0].mxu0 %v956
  %v1171 = vpop.f32.mrb[0].mxu0
  %v1172 = vadd.f32 %v968, %v1171
  %v1173 = vpop.f32.mrb[0].mxu0
  %v1174 = vpop.f32.mrb[0].mxu0
  %v1175 = vadd.f32 %v968, %v1174
  %v1176 = vpop.f32.mrb[0].mxu0
  %1177 = vmatprep.mubr.bf16.mxu0 0
  %1178 = vmatmul.mubr.bf16.gmra.mrb[0].mxu0 %v957
  %v1179 = vpop.f32.mrb[0].mxu0
  %v1180 = vadd.f32 %v968, %v1179
  %v1181 = vpop.f32.mrb[0].mxu0
  %v1182 = vpop.f32.mrb[0].mxu0
  %v1183 = vadd.f32 %v968, %v1182
  %v1184 = vpop.f32.mrb[0].mxu0
  %1185 = vmatprep.mubr.bf16.mxu0 0
  %1186 = vmatmul.mubr.bf16.gmra.mrb[0].mxu0 %v958
  %v1187 = vpop.f32.mrb[0].mxu0
  %v1188 = vadd.f32 %v968, %v1187
  %v1189 = vpop.f32.mrb[0].mxu0
  %v1190 = vpop.f32.mrb[0].mxu0
  %v1191 = vadd.f32 %v968, %v1190
  %v1192 = vpop.f32.mrb[0].mxu0
  %1193 = vmatprep.mubr.bf16.mxu0 0
  %1194 = vmatmul.mubr.bf16.gmra.mrb[0].mxu0 %v959
  %v1195 = vpop.f32.mrb[0].mxu0
  %v1196 = vadd.f32 %v968, %v1195
  %v1197 = vpop.f32.mrb[0].mxu0
  %v1198 = vpop.f32.mrb[0].mxu0
  %v1199 = vadd.f32 %v968, %v1198
  %v1200 = vpop.f32.mrb[0].mxu0
  %1201 = vmatprep.mubr.bf16.mxu0 0
  %1202 = vmatmul.mubr.bf16.gmra.mrb[0].mxu0 %v960
  %v1203 = vpop.f32.mrb[0].mxu0
  %v1204 = vadd.f32 %v968, %v1203
  %v1205 = vpop.f32.mrb[0].mxu0
  %v1206 = vpop.f32.mrb[0].mxu0
  %v1207 = vadd.f32 %v968, %v1206
  %v1208 = vpop.f32.mrb[0].mxu0
  %1209 = vmatprep.mubr.bf16.mxu0 0
  %1210 = vmatmul.mubr.bf16.gmra.mrb[0].mxu0 %v961
  %v1211 = vpop.f32.mrb[0].mxu0
  %v1212 = vadd.f32 %v968, %v1211
  %v1213 = vpop.f32.mrb[0].mxu0
  %v1214 = vpop.f32.mrb[0].mxu0
  %v1215 = vadd.f32 %v968, %v1214
  %v1216 = vpop.f32.mrb[0].mxu0
  %1217 = vmatprep.mubr.bf16.mxu0 0
  %1218 = vmatmul.mubr.bf16.gmra.mrb[0].mxu0 %v962
  %v1219 = vpop.f32.mrb[0].mxu0
  %v1220 = vadd.f32 %v968, %v1219
  %v1221 = vpop.f32.mrb[0].mxu0
  %v1222 = vpop.f32.mrb[0].mxu0
  %v1223 = vadd.f32 %v968, %v1222
  %v1224 = vpop.f32.mrb[0].mxu0
  %1225 = vmatprep.mubr.bf16.mxu0 0
  %1226 = vmatmul.mubr.bf16.gmra.mrb[0].mxu0 %v963
  %v1227 = vpop.f32.mrb[0].mxu0
  %v1228 = vadd.f32 %v968, %v1227
  %v1229 = vpop.f32.mrb[0].mxu0
  %v1230 = vpop.f32.mrb[0].mxu0
  %v1231 = vadd.f32 %v968, %v1230
  %v1232 = vpop.f32.mrb[0].mxu0
  %1233 = vmatprep.mubr.bf16.mxu0 0
  %1234 = vmatmul.mubr.bf16.gmra.mrb[0].mxu0 %v964
  %v1235 = vpop.f32.mrb[0].mxu0
  %v1236 = vadd.f32 %v968, %v1235
  %v1237 = vpop.f32.mrb[0].mxu0
  %v1238 = vpop.f32.mrb[0].mxu0
  %v1239 = vadd.f32 %v968, %v1238
  %v1240 = vpop.f32.mrb[0].mxu0
  %1241 = vdwg.mxu0
  %v1242 = vmax.f32 %v1052, 0.0
  %v1243 = vmax.f32 %v1055, 0.0
  %v1244 = vmax.f32 %v1060, 0.0
  %v1245 = vmax.f32 %v1063, 0.0
  %v1246 = vmax.f32 %v1068, 0.0
  %v1247 = vmax.f32 %v1071, 0.0
  %v1248 = vmax.f32 %v1076, 0.0
  %v1249 = vmax.f32 %v1079, 0.0
  %v1250 = vmax.f32 %v1084, 0.0
  %v1251 = vmax.f32 %v1087, 0.0
  %v1252 = vmax.f32 %v1092, 0.0
  %v1253 = vmax.f32 %v1095, 0.0
  %v1254 = vmax.f32 %v1100, 0.0
  %v1255 = vmax.f32 %v1103, 0.0
  %v1256 = vmax.f32 %v1108, 0.0
  %v1257 = vmax.f32 %v1111, 0.0
  %v1258 = vmax.f32 %v1116, 0.0
  %v1259 = vmax.f32 %v1119, 0.0
  %v1260 = vmax.f32 %v1124, 0.0
  %v1261 = vmax.f32 %v1127, 0.0
  %v1262 = vmax.f32 %v1132, 0.0
  %v1263 = vmax.f32 %v1135, 0.0
  %v1264 = vmax.f32 %v1140, 0.0
  %v1265 = vmax.f32 %v1143, 0.0
  %v1266 = vmax.f32 %v1148, 0.0
  %v1267 = vmax.f32 %v1151, 0.0
  %v1268 = vmax.f32 %v1156, 0.0
  %v1269 = vmax.f32 %v1159, 0.0
  %v1270 = vmax.f32 %v1164, 0.0
  %v1271 = vmax.f32 %v1167, 0.0
  %v1272 = vmax.f32 %v1172, 0.0
  %v1273 = vmax.f32 %v1175, 0.0
  %v1274 = vmax.f32 %v1180, 0.0
  %v1275 = vmax.f32 %v1183, 0.0
  %v1276 = vmax.f32 %v1188, 0.0
  %v1277 = vmax.f32 %v1191, 0.0
  %v1278 = vmax.f32 %v1196, 0.0
  %v1279 = vmax.f32 %v1199, 0.0
  %v1280 = vmax.f32 %v1204, 0.0
  %v1281 = vmax.f32 %v1207, 0.0
  %v1282 = vmax.f32 %v1212, 0.0
  %v1283 = vmax.f32 %v1215, 0.0
  %v1284 = vmax.f32 %v1220, 0.0
  %v1285 = vmax.f32 %v1223, 0.0
  %v1286 = vmax.f32 %v1228, 0.0
  %v1287 = vmax.f32 %v1231, 0.0
  %v1288 = vmax.f32 %v1236, 0.0
  %v1289 = vmax.f32 %v1239, 0.0
  %s1290 = scalar_lea.vmem %s2, 128
  %v1291 = vld [vmem:[%s1290] sm:$0xf]
  %v1292 = vld [vmem:[%s1290 + $0x4] sm:$0xf]
  %v1293 = vld [vmem:[%s1290 + $0x8] sm:$0xf]
  %v1294 = vld [vmem:[%s1290 + $0xc] sm:$0xf]
  %v1295 = vld [vmem:[%s1290 + $0x10] sm:$0xf]
  %v1296 = vld [vmem:[%s1290 + $0x14] sm:$0xf]
  %v1297 = vld [vmem:[%s1290 + $0x18] sm:$0xf]
  %v1298 = vld [vmem:[%s1290 + $0x1c] sm:$0xf]
  %v1299 = vld [vmem:[%s1290 + $0x20] sm:$0xf]
  %v1300 = vld [vmem:[%s1290 + $0x24] sm:$0xf]
  %v1301 = vld [vmem:[%s1290 + $0x28] sm:$0xf]
  %v1302 = vld [vmem:[%s1290 + $0x2c] sm:$0xf]
  %v1303 = vld [vmem:[%s1290 + $0x30] sm:$0xf]
  %v1304 = vld [vmem:[%s1290 + $0x34] sm:$0xf]
  %v1305 = vld [vmem:[%s1290 + $0x38] sm:$0xf]
  %v1306 = vld [vmem:[%s1290 + $0x3c] sm:$0xf]
  %v1307 = vpack.c.bf16 %v1243, %v1242
  %v1308 = vpack.c.bf16 %v1245, %v1244
  %v1309 = vpack.c.bf16 %v1247, %v1246
  %v1310 = vpack.c.bf16 %v1249, %v1248
  %v1311 = vpack.c.bf16 %v1251, %v1250
  %v1312 = vpack.c.bf16 %v1253, %v1252
  %v1313 = vpack.c.bf16 %v1255, %v1254
  %v1314 = vpack.c.bf16 %v1257, %v1256
  %v1315 = vpack.c.bf16 %v1259, %v1258
  %v1316 = vpack.c.bf16 %v1261, %v1260
  %v1317 = vpack.c.bf16 %v1263, %v1262
  %v1318 = vpack.c.bf16 %v1265, %v1264
  %v1319 = vpack.c.bf16 %v1267, %v1266
  %v1320 = vpack.c.bf16 %v1269, %v1268
  %v1321 = vpack.c.bf16 %v1271, %v1270
  %v1322 = vpack.c.bf16 %v1273, %v1272
  %v1323 = vpack.c.bf16 %v1275, %v1274
  %v1324 = vpack.c.bf16 %v1277, %v1276
  %v1325 = vpack.c.bf16 %v1279, %v1278
  %v1326 = vpack.c.bf16 %v1281, %v1280
  %v1327 = vpack.c.bf16 %v1283, %v1282
  %v1328 = vpack.c.bf16 %v1285, %v1284
  %v1329 = vpack.c.bf16 %v1287, %v1286
  %v1330 = vpack.c.bf16 %v1289, %v1288
  %v1331 = vlaneseq
  %v1332 = vshrl.u32 %v1331, 7
  %v1333 = vsub.s32 3, %v1332
  %v1334 = vrot.slane %v72, %v1333
  %v1351 = vunpack.c.l.b16 %v1291
  %v1352 = vunpack.c.l.b16 %v1292
  %v1353 = vunpack.c.l.b16 %v1293
  %v1354 = vunpack.c.l.b16 %v1294
  %v1355 = vunpack.c.l.b16 %v1295
  %v1356 = vunpack.c.l.b16 %v1296
  %v1357 = vunpack.c.l.b16 %v1297
  %v1358 = vunpack.c.l.b16 %v1298
  %v1359 = vunpack.c.l.b16 %v1299
  %v1360 = vunpack.c.l.b16 %v1300
  %v1361 = vunpack.c.l.b16 %v1301
  %v1362 = vunpack.c.l.b16 %v1302
  %v1363 = vunpack.c.l.b16 %v1303
  %v1364 = vunpack.c.l.b16 %v1304
  %v1365 = vunpack.c.l.b16 %v1305
  %v1366 = vunpack.c.l.b16 %v1306
  %v1367 = vpack.c.b16 %v1352, %v1351
  %v1368 = vpack.c.b16 %v1354, %v1353
  %v1369 = vpack.c.b16 %v1356, %v1355
  %v1370 = vpack.c.b16 %v1358, %v1357
  %v1371 = vpack.c.b16 %v1360, %v1359
  %v1372 = vpack.c.b16 %v1362, %v1361
  %v1373 = vpack.c.b16 %v1364, %v1363
  %v1374 = vpack.c.b16 %v1366, %v1365
  %1383 = vmatprep.subr.bf16.mxu0 0
  %1384 = vmatpush1.bf16.msra.mxu0 %v1367
  %1385 = vmatprep.subr.bf16.mxu0 0
  %1386 = vmatpush1.bf16.msra.mxu0 %v1368
  %1387 = vmatprep.subr.bf16.mxu0 0
  %1388 = vmatpush1.bf16.msra.mxu0 %v1369
  %1389 = vmatprep.subr.bf16.mxu0 0
  %1390 = vmatpush1.bf16.msra.mxu0 %v1370
  %1391 = vmatprep.subr.bf16.mxu0 0
  %1392 = vmatpush1.bf16.msra.mxu0 %v1371
  %1393 = vmatprep.subr.bf16.mxu0 0
  %1394 = vmatpush1.bf16.msra.mxu0 %v1372
  %1395 = vmatprep.subr.bf16.mxu0 0
  %1396 = vmatpush1.bf16.msra.mxu0 %v1373
  %1397 = vmatprep.subr.bf16.mxu0 0
  %1398 = vmatpush1.bf16.msra.mxu0 %v1374
  %1399 = vmatprep.subr.bf16.mxu0 0
  %1400 = vmatpush1.bf16.msra.mxu0 0
  %1401 = vmatprep.subr.bf16.mxu0 0
  %1402 = vmatpush1.bf16.msra.mxu0 0
  %1403 = vmatprep.subr.bf16.mxu0 0
  %1404 = vmatpush1.bf16.msra.mxu0 0
  %1405 = vmatprep.subr.bf16.mxu0 0
  %1406 = vmatpush1.bf16.msra.mxu0 0
  %1407 = vmatprep.subr.bf16.mxu0 0
  %1408 = vmatpush1.bf16.msra.mxu0 0
  %1409 = vmatprep.subr.bf16.mxu0 0
  %1410 = vmatpush1.bf16.msra.mxu0 0
  %1411 = vmatprep.subr.bf16.mxu0 0
  %1412 = vmatpush1.bf16.msra.mxu0 0
  %1413 = vmatprep.subr.bf16.mxu0 0
  %1414 = vmatpush1.bf16.msra.mxu0 0
  %1415 = vmatprep.mubr.bf16.mxu0 0
  %1416 = vmatmul.mubr.bf16.gmra.mrb[0].mxu0 %v1307
  %v1417 = vpop.f32.mrb[0].mxu0
  %v1418 = vadd.f32 %v1334, %v1417
  %v1419 = vpop.f32.mrb[0].mxu0
  %v1420 = vpop.f32.mrb[0].mxu0
  %v1421 = vadd.f32 %v1334, %v1420
  %v1422 = vpop.f32.mrb[0].mxu0
  %1423 = vmatprep.mubr.bf16.mxu0 0
  %1424 = vmatmul.mubr.bf16.gmra.mrb[0].mxu0 %v1308
  %v1425 = vpop.f32.mrb[0].mxu0
  %v1426 = vadd.f32 %v1334, %v1425
  %v1427 = vpop.f32.mrb[0].mxu0
  %v1428 = vpop.f32.mrb[0].mxu0
  %v1429 = vadd.f32 %v1334, %v1428
  %v1430 = vpop.f32.mrb[0].mxu0
  %1431 = vmatprep.mubr.bf16.mxu0 0
  %1432 = vmatmul.mubr.bf16.gmra.mrb[0].mxu0 %v1309
  %v1433 = vpop.f32.mrb[0].mxu0
  %v1434 = vadd.f32 %v1334, %v1433
  %v1435 = vpop.f32.mrb[0].mxu0
  %v1436 = vpop.f32.mrb[0].mxu0
  %v1437 = vadd.f32 %v1334, %v1436
  %v1438 = vpop.f32.mrb[0].mxu0
  %1439 = vmatprep.mubr.bf16.mxu0 0
  %1440 = vmatmul.mubr.bf16.gmra.mrb[0].mxu0 %v1310
  %v1441 = vpop.f32.mrb[0].mxu0
  %v1442 = vadd.f32 %v1334, %v1441
  %v1443 = vpop.f32.mrb[0].mxu0
  %v1444 = vpop.f32.mrb[0].mxu0
  %v1445 = vadd.f32 %v1334, %v1444
  %v1446 = vpop.f32.mrb[0].mxu0
  %1447 = vmatprep.mubr.bf16.mxu0 0
  %1448 = vmatmul.mubr.bf16.gmra.mrb[0].mxu0 %v1311
  %v1449 = vpop.f32.mrb[0].mxu0
  %v1450 = vadd.f32 %v1334, %v1449
  %v1451 = vpop.f32.mrb[0].mxu0
  %v1452 = vpop.f32.mrb[0].mxu0
  %v1453 = vadd.f32 %v1334, %v1452
  %v1454 = vpop.f32.mrb[0].mxu0
  %1455 = vmatprep.mubr.bf16.mxu0 0
  %1456 = vmatmul.mubr.bf16.gmra.mrb[0].mxu0 %v1312
  %v1457 = vpop.f32.mrb[0].mxu0
  %v1458 = vadd.f32 %v1334, %v1457
  %v1459 = vpop.f32.mrb[0].mxu0
  %v1460 = vpop.f32.mrb[0].mxu0
  %v1461 = vadd.f32 %v1334, %v1460
  %v1462 = vpop.f32.mrb[0].mxu0
  %1463 = vmatprep.mubr.bf16.mxu0 0
  %1464 = vmatmul.mubr.bf16.gmra.mrb[0].mxu0 %v1313
  %v1465 = vpop.f32.mrb[0].mxu0
  %v1466 = vadd.f32 %v1334, %v1465
  %v1467 = vpop.f32.mrb[0].mxu0
  %v1468 = vpop.f32.mrb[0].mxu0
  %v1469 = vadd.f32 %v1334, %v1468
  %v1470 = vpop.f32.mrb[0].mxu0
  %1471 = vmatprep.mubr.bf16.mxu0 0
  %1472 = vmatmul.mubr.bf16.gmra.mrb[0].mxu0 %v1314
  %v1473 = vpop.f32.mrb[0].mxu0
  %v1474 = vadd.f32 %v1334, %v1473
  %v1475 = vpop.f32.mrb[0].mxu0
  %v1476 = vpop.f32.mrb[0].mxu0
  %v1477 = vadd.f32 %v1334, %v1476
  %v1478 = vpop.f32.mrb[0].mxu0
  %1479 = vmatprep.mubr.bf16.mxu0 0
  %1480 = vmatmul.mubr.bf16.gmra.mrb[0].mxu0 %v1315
  %v1481 = vpop.f32.mrb[0].mxu0
  %v1482 = vadd.f32 %v1334, %v1481
  %v1483 = vpop.f32.mrb[0].mxu0
  %v1484 = vpop.f32.mrb[0].mxu0
  %v1485 = vadd.f32 %v1334, %v1484
  %v1486 = vpop.f32.mrb[0].mxu0
  %1487 = vmatprep.mubr.bf16.mxu0 0
  %1488 = vmatmul.mubr.bf16.gmra.mrb[0].mxu0 %v1316
  %v1489 = vpop.f32.mrb[0].mxu0
  %v1490 = vadd.f32 %v1334, %v1489
  %v1491 = vpop.f32.mrb[0].mxu0
  %v1492 = vpop.f32.mrb[0].mxu0
  %v1493 = vadd.f32 %v1334, %v1492
  %v1494 = vpop.f32.mrb[0].mxu0
  %1495 = vmatprep.mubr.bf16.mxu0 0
  %1496 = vmatmul.mubr.bf16.gmra.mrb[0].mxu0 %v1317
  %v1497 = vpop.f32.mrb[0].mxu0
  %v1498 = vadd.f32 %v1334, %v1497
  %v1499 = vpop.f32.mrb[0].mxu0
  %v1500 = vpop.f32.mrb[0].mxu0
  %v1501 = vadd.f32 %v1334, %v1500
  %v1502 = vpop.f32.mrb[0].mxu0
  %1503 = vmatprep.mubr.bf16.mxu0 0
  %1504 = vmatmul.mubr.bf16.gmra.mrb[0].mxu0 %v1318
  %v1505 = vpop.f32.mrb[0].mxu0
  %v1506 = vadd.f32 %v1334, %v1505
  %v1507 = vpop.f32.mrb[0].mxu0
  %v1508 = vpop.f32.mrb[0].mxu0
  %v1509 = vadd.f32 %v1334, %v1508
  %v1510 = vpop.f32.mrb[0].mxu0
  %1511 = vmatprep.mubr.bf16.mxu0 0
  %1512 = vmatmul.mubr.bf16.gmra.mrb[0].mxu0 %v1319
  %v1513 = vpop.f32.mrb[0].mxu0
  %v1514 = vadd.f32 %v1334, %v1513
  %v1515 = vpop.f32.mrb[0].mxu0
  %v1516 = vpop.f32.mrb[0].mxu0
  %v1517 = vadd.f32 %v1334, %v1516
  %v1518 = vpop.f32.mrb[0].mxu0
  %1519 = vmatprep.mubr.bf16.mxu0 0
  %1520 = vmatmul.mubr.bf16.gmra.mrb[0].mxu0 %v1320
  %v1521 = vpop.f32.mrb[0].mxu0
  %v1522 = vadd.f32 %v1334, %v1521
  %v1523 = vpop.f32.mrb[0].mxu0
  %v1524 = vpop.f32.mrb[0].mxu0
  %v1525 = vadd.f32 %v1334, %v1524
  %v1526 = vpop.f32.mrb[0].mxu0
  %1527 = vmatprep.mubr.bf16.mxu0 0
  %1528 = vmatmul.mubr.bf16.gmra.mrb[0].mxu0 %v1321
  %v1529 = vpop.f32.mrb[0].mxu0
  %v1530 = vadd.f32 %v1334, %v1529
  %v1531 = vpop.f32.mrb[0].mxu0
  %v1532 = vpop.f32.mrb[0].mxu0
  %v1533 = vadd.f32 %v1334, %v1532
  %v1534 = vpop.f32.mrb[0].mxu0
  %1535 = vmatprep.mubr.bf16.mxu0 0
  %1536 = vmatmul.mubr.bf16.gmra.mrb[0].mxu0 %v1322
  %v1537 = vpop.f32.mrb[0].mxu0
  %v1538 = vadd.f32 %v1334, %v1537
  %v1539 = vpop.f32.mrb[0].mxu0
  %v1540 = vpop.f32.mrb[0].mxu0
  %v1541 = vadd.f32 %v1334, %v1540
  %v1542 = vpop.f32.mrb[0].mxu0
  %1543 = vmatprep.mubr.bf16.mxu0 0
  %1544 = vmatmul.mubr.bf16.gmra.mrb[0].mxu0 %v1323
  %v1545 = vpop.f32.mrb[0].mxu0
  %v1546 = vadd.f32 %v1334, %v1545
  %v1547 = vpop.f32.mrb[0].mxu0
  %v1548 = vpop.f32.mrb[0].mxu0
  %v1549 = vadd.f32 %v1334, %v1548
  %v1550 = vpop.f32.mrb[0].mxu0
  %1551 = vmatprep.mubr.bf16.mxu0 0
  %1552 = vmatmul.mubr.bf16.gmra.mrb[0].mxu0 %v1324
  %v1553 = vpop.f32.mrb[0].mxu0
  %v1554 = vadd.f32 %v1334, %v1553
  %v1555 = vpop.f32.mrb[0].mxu0
  %v1556 = vpop.f32.mrb[0].mxu0
  %v1557 = vadd.f32 %v1334, %v1556
  %v1558 = vpop.f32.mrb[0].mxu0
  %1559 = vmatprep.mubr.bf16.mxu0 0
  %1560 = vmatmul.mubr.bf16.gmra.mrb[0].mxu0 %v1325
  %v1561 = vpop.f32.mrb[0].mxu0
  %v1562 = vadd.f32 %v1334, %v1561
  %v1563 = vpop.f32.mrb[0].mxu0
  %v1564 = vpop.f32.mrb[0].mxu0
  %v1565 = vadd.f32 %v1334, %v1564
  %v1566 = vpop.f32.mrb[0].mxu0
  %1567 = vmatprep.mubr.bf16.mxu0 0
  %1568 = vmatmul.mubr.bf16.gmra.mrb[0].mxu0 %v1326
  %v1569 = vpop.f32.mrb[0].mxu0
  %v1570 = vadd.f32 %v1334, %v1569
  %v1571 = vpop.f32.mrb[0].mxu0
  %v1572 = vpop.f32.mrb[0].mxu0
  %v1573 = vadd.f32 %v1334, %v1572
  %v1574 = vpop.f32.mrb[0].mxu0
  %1575 = vmatprep.mubr.bf16.mxu0 0
  %1576 = vmatmul.mubr.bf16.gmra.mrb[0].mxu0 %v1327
  %v1577 = vpop.f32.mrb[0].mxu0
  %v1578 = vadd.f32 %v1334, %v1577
  %v1579 = vpop.f32.mrb[0].mxu0
  %v1580 = vpop.f32.mrb[0].mxu0
  %v1581 = vadd.f32 %v1334, %v1580
  %v1582 = vpop.f32.mrb[0].mxu0
  %1583 = vmatprep.mubr.bf16.mxu0 0
  %1584 = vmatmul.mubr.bf16.gmra.mrb[0].mxu0 %v1328
  %v1585 = vpop.f32.mrb[0].mxu0
  %v1586 = vadd.f32 %v1334, %v1585
  %v1587 = vpop.f32.mrb[0].mxu0
  %v1588 = vpop.f32.mrb[0].mxu0
  %v1589 = vadd.f32 %v1334, %v1588
  %v1590 = vpop.f32.mrb[0].mxu0
  %1591 = vmatprep.mubr.bf16.mxu0 0
  %1592 = vmatmul.mubr.bf16.gmra.mrb[0].mxu0 %v1329
  %v1593 = vpop.f32.mrb[0].mxu0
  %v1594 = vadd.f32 %v1334, %v1593
  %v1595 = vpop.f32.mrb[0].mxu0
  %v1596 = vpop.f32.mrb[0].mxu0
  %v1597 = vadd.f32 %v1334, %v1596
  %v1598 = vpop.f32.mrb[0].mxu0
  %1599 = vmatprep.mubr.bf16.mxu0 0
  %1600 = vmatmul.mubr.bf16.gmra.mrb[0].mxu0 %v1330
  %v1601 = vpop.f32.mrb[0].mxu0
  %v1602 = vadd.f32 %v1334, %v1601
  %v1603 = vpop.f32.mrb[0].mxu0
  %v1604 = vpop.f32.mrb[0].mxu0
  %v1605 = vadd.f32 %v1334, %v1604
  %v1606 = vpop.f32.mrb[0].mxu0
  %1607 = vdwg.mxu0
  %v1608 = vmax.f32 %v1418, 0.0
  %v1609 = vmax.f32 %v1421, 0.0
  %v1610 = vmax.f32 %v1426, 0.0
  %v1611 = vmax.f32 %v1429, 0.0
  %v1612 = vmax.f32 %v1434, 0.0
  %v1613 = vmax.f32 %v1437, 0.0
  %v1614 = vmax.f32 %v1442, 0.0
  %v1615 = vmax.f32 %v1445, 0.0
  %v1616 = vmax.f32 %v1450, 0.0
  %v1617 = vmax.f32 %v1453, 0.0
  %v1618 = vmax.f32 %v1458, 0.0
  %v1619 = vmax.f32 %v1461, 0.0
  %v1620 = vmax.f32 %v1466, 0.0
  %v1621 = vmax.f32 %v1469, 0.0
  %v1622 = vmax.f32 %v1474, 0.0
  %v1623 = vmax.f32 %v1477, 0.0
  %v1624 = vmax.f32 %v1482, 0.0
  %v1625 = vmax.f32 %v1485, 0.0
  %v1626 = vmax.f32 %v1490, 0.0
  %v1627 = vmax.f32 %v1493, 0.0
  %v1628 = vmax.f32 %v1498, 0.0
  %v1629 = vmax.f32 %v1501, 0.0
  %v1630 = vmax.f32 %v1506, 0.0
  %v1631 = vmax.f32 %v1509, 0.0
  %v1632 = vmax.f32 %v1514, 0.0
  %v1633 = vmax.f32 %v1517, 0.0
  %v1634 = vmax.f32 %v1522, 0.0
  %v1635 = vmax.f32 %v1525, 0.0
  %v1636 = vmax.f32 %v1530, 0.0
  %v1637 = vmax.f32 %v1533, 0.0
  %v1638 = vmax.f32 %v1538, 0.0
  %v1639 = vmax.f32 %v1541, 0.0
  %v1640 = vmax.f32 %v1546, 0.0
  %v1641 = vmax.f32 %v1549, 0.0
  %v1642 = vmax.f32 %v1554, 0.0
  %v1643 = vmax.f32 %v1557, 0.0
  %v1644 = vmax.f32 %v1562, 0.0
  %v1645 = vmax.f32 %v1565, 0.0
  %v1646 = vmax.f32 %v1570, 0.0
  %v1647 = vmax.f32 %v1573, 0.0
  %v1648 = vmax.f32 %v1578, 0.0
  %v1649 = vmax.f32 %v1581, 0.0
  %v1650 = vmax.f32 %v1586, 0.0
  %v1651 = vmax.f32 %v1589, 0.0
  %v1652 = vmax.f32 %v1594, 0.0
  %v1653 = vmax.f32 %v1597, 0.0
  %v1654 = vmax.f32 %v1602, 0.0
  %v1655 = vmax.f32 %v1605, 0.0
  %s1656 = scalar_lea.vmem %s1, 16
  %v1657 = vld [vmem:[%s1656] sm:$0xf]
  %v1658 = vld [vmem:[%s1656 + $0x4] sm:$0xf]
  %v1659 = vld [vmem:[%s1656 + $0x8] sm:$0xf]
  %v1660 = vld [vmem:[%s1656 + $0xc] sm:$0xf]
  %v1661 = vpack.c.bf16 %v1609, %v1608
  %v1662 = vpack.c.bf16 %v1611, %v1610
  %v1663 = vpack.c.bf16 %v1613, %v1612
  %v1664 = vpack.c.bf16 %v1615, %v1614
  %v1665 = vpack.c.bf16 %v1617, %v1616
  %v1666 = vpack.c.bf16 %v1619, %v1618
  %v1667 = vpack.c.bf16 %v1621, %v1620
  %v1668 = vpack.c.bf16 %v1623, %v1622
  %v1669 = vpack.c.bf16 %v1625, %v1624
  %v1670 = vpack.c.bf16 %v1627, %v1626
  %v1671 = vpack.c.bf16 %v1629, %v1628
  %v1672 = vpack.c.bf16 %v1631, %v1630
  %v1673 = vpack.c.bf16 %v1633, %v1632
  %v1674 = vpack.c.bf16 %v1635, %v1634
  %v1675 = vpack.c.bf16 %v1637, %v1636
  %v1676 = vpack.c.bf16 %v1639, %v1638
  %v1677 = vpack.c.bf16 %v1641, %v1640
  %v1678 = vpack.c.bf16 %v1643, %v1642
  %v1679 = vpack.c.bf16 %v1645, %v1644
  %v1680 = vpack.c.bf16 %v1647, %v1646
  %v1681 = vpack.c.bf16 %v1649, %v1648
  %v1682 = vpack.c.bf16 %v1651, %v1650
  %v1683 = vpack.c.bf16 %v1653, %v1652
  %v1684 = vpack.c.bf16 %v1655, %v1654
  %s1685 = scalar_lea.vmem %s2, 192
  %v1686 = vld [vmem:[%s1685] sm:$0xf]
  %v1687 = vld [vmem:[%s1685 + $0x4] sm:$0xf]
  %v1688 = vld [vmem:[%s1685 + $0x8] sm:$0xf]
  %v1689 = vld [vmem:[%s1685 + $0xc] sm:$0xf]
  %v1690 = vld [vmem:[%s1685 + $0x10] sm:$0xf]
  %v1691 = vld [vmem:[%s1685 + $0x14] sm:$0xf]
  %v1692 = vld [vmem:[%s1685 + $0x18] sm:$0xf]
  %v1693 = vld [vmem:[%s1685 + $0x1c] sm:$0xf]
  %v1694 = vld [vmem:[%s1685 + $0x20] sm:$0xf]
  %v1695 = vld [vmem:[%s1685 + $0x24] sm:$0xf]
  %v1696 = vld [vmem:[%s1685 + $0x28] sm:$0xf]
  %v1697 = vld [vmem:[%s1685 + $0x2c] sm:$0xf]
  %v1698 = vld [vmem:[%s1685 + $0x30] sm:$0xf]
  %v1699 = vld [vmem:[%s1685 + $0x34] sm:$0xf]
  %v1700 = vld [vmem:[%s1685 + $0x38] sm:$0xf]
  %v1701 = vld [vmem:[%s1685 + $0x3c] sm:$0xf]
  %v1718 = vunpack.c.l.b16 %v1686
  %v1719 = vunpack.c.l.b16 %v1687
  %v1720 = vunpack.c.l.b16 %v1688
  %v1721 = vunpack.c.l.b16 %v1689
  %v1722 = vunpack.c.l.b16 %v1690
  %v1723 = vunpack.c.l.b16 %v1691
  %v1724 = vunpack.c.l.b16 %v1692
  %v1725 = vunpack.c.l.b16 %v1693
  %v1726 = vunpack.c.l.b16 %v1694
  %v1727 = vunpack.c.l.b16 %v1695
  %v1728 = vunpack.c.l.b16 %v1696
  %v1729 = vunpack.c.l.b16 %v1697
  %v1730 = vunpack.c.l.b16 %v1698
  %v1731 = vunpack.c.l.b16 %v1699
  %v1732 = vunpack.c.l.b16 %v1700
  %v1733 = vunpack.c.l.b16 %v1701
  %v1734 = vpack.c.b16 %v1719, %v1718
  %v1735 = vpack.c.b16 %v1721, %v1720
  %v1736 = vpack.c.b16 %v1723, %v1722
  %v1737 = vpack.c.b16 %v1725, %v1724
  %v1738 = vpack.c.b16 %v1727, %v1726
  %v1739 = vpack.c.b16 %v1729, %v1728
  %v1740 = vpack.c.b16 %v1731, %v1730
  %v1741 = vpack.c.b16 %v1733, %v1732
  %1750 = vmatprep.subr.bf16.mxu0 0
  %1751 = vmatpush1.bf16.msra.mxu0 %v1734
  %1752 = vmatprep.subr.bf16.mxu0 0
  %1753 = vmatpush1.bf16.msra.mxu0 %v1735
  %1754 = vmatprep.subr.bf16.mxu0 0
  %1755 = vmatpush1.bf16.msra.mxu0 %v1736
  %1756 = vmatprep.subr.bf16.mxu0 0
  %1757 = vmatpush1.bf16.msra.mxu0 %v1737
  %1758 = vmatprep.subr.bf16.mxu0 0
  %1759 = vmatpush1.bf16.msra.mxu0 %v1738
  %1760 = vmatprep.subr.bf16.mxu0 0
  %1761 = vmatpush1.bf16.msra.mxu0 %v1739
  %1762 = vmatprep.subr.bf16.mxu0 0
  %1763 = vmatpush1.bf16.msra.mxu0 %v1740
  %1764 = vmatprep.subr.bf16.mxu0 0
  %1765 = vmatpush1.bf16.msra.mxu0 %v1741
  %1766 = vmatprep.subr.bf16.mxu0 0
  %1767 = vmatpush1.bf16.msra.mxu0 0
  %1768 = vmatprep.subr.bf16.mxu0 0
  %1769 = vmatpush1.bf16.msra.mxu0 0
  %1770 = vmatprep.subr.bf16.mxu0 0
  %1771 = vmatpush1.bf16.msra.mxu0 0
  %1772 = vmatprep.subr.bf16.mxu0 0
  %1773 = vmatpush1.bf16.msra.mxu0 0
  %1774 = vmatprep.subr.bf16.mxu0 0
  %1775 = vmatpush1.bf16.msra.mxu0 0
  %1776 = vmatprep.subr.bf16.mxu0 0
  %1777 = vmatpush1.bf16.msra.mxu0 0
  %1778 = vmatprep.subr.bf16.mxu0 0
  %1779 = vmatpush1.bf16.msra.mxu0 0
  %1780 = vmatprep.subr.bf16.mxu0 0
  %1781 = vmatpush1.bf16.msra.mxu0 0
  %1782 = vmatprep.mubr.bf16.mxu0 0
  %1783 = vmatmul.mubr.bf16.gmra.mrb[0].mxu0 %v1661
  %v1784 = vpop.f32.mrb[0].mxu0
  %v1785 = vadd.f32 0.0, %v1784
  %v1786 = vpop.f32.mrb[0].mxu0
  %v1787 = vpop.f32.mrb[0].mxu0
  %v1788 = vadd.f32 0.0, %v1787
  %v1789 = vpop.f32.mrb[0].mxu0
  %1790 = vmatprep.mubr.bf16.mxu0 0
  %1791 = vmatmul.mubr.bf16.gmra.mrb[0].mxu0 %v1662
  %v1792 = vpop.f32.mrb[0].mxu0
  %v1793 = vadd.f32 0.0, %v1792
  %v1794 = vpop.f32.mrb[0].mxu0
  %v1795 = vpop.f32.mrb[0].mxu0
  %v1796 = vadd.f32 0.0, %v1795
  %v1797 = vpop.f32.mrb[0].mxu0
  %1798 = vmatprep.mubr.bf16.mxu0 0
  %1799 = vmatmul.mubr.bf16.gmra.mrb[0].mxu0 %v1663
  %v1800 = vpop.f32.mrb[0].mxu0
  %v1801 = vadd.f32 0.0, %v1800
  %v1802 = vpop.f32.mrb[0].mxu0
  %v1803 = vpop.f32.mrb[0].mxu0
  %v1804 = vadd.f32 0.0, %v1803
  %v1805 = vpop.f32.mrb[0].mxu0
  %1806 = vmatprep.mubr.bf16.mxu0 0
  %1807 = vmatmul.mubr.bf16.gmra.mrb[0].mxu0 %v1664
  %v1808 = vpop.f32.mrb[0].mxu0
  %v1809 = vadd.f32 0.0, %v1808
  %v1810 = vpop.f32.mrb[0].mxu0
  %v1811 = vpop.f32.mrb[0].mxu0
  %v1812 = vadd.f32 0.0, %v1811
  %v1813 = vpop.f32.mrb[0].mxu0
  %1814 = vmatprep.mubr.bf16.mxu0 0
  %1815 = vmatmul.mubr.bf16.gmra.mrb[0].mxu0 %v1665
  %v1816 = vpop.f32.mrb[0].mxu0
  %v1817 = vadd.f32 0.0, %v1816
  %v1818 = vpop.f32.mrb[0].mxu0
  %v1819 = vpop.f32.mrb[0].mxu0
  %v1820 = vadd.f32 0.0, %v1819
  %v1821 = vpop.f32.mrb[0].mxu0
  %1822 = vmatprep.mubr.bf16.mxu0 0
  %1823 = vmatmul.mubr.bf16.gmra.mrb[0].mxu0 %v1666
  %v1824 = vpop.f32.mrb[0].mxu0
  %v1825 = vadd.f32 0.0, %v1824
  %v1826 = vpop.f32.mrb[0].mxu0
  %v1827 = vpop.f32.mrb[0].mxu0
  %v1828 = vadd.f32 0.0, %v1827
  %v1829 = vpop.f32.mrb[0].mxu0
  %1830 = vmatprep.mubr.bf16.mxu0 0
  %1831 = vmatmul.mubr.bf16.gmra.mrb[0].mxu0 %v1667
  %v1832 = vpop.f32.mrb[0].mxu0
  %v1833 = vadd.f32 0.0, %v1832
  %v1834 = vpop.f32.mrb[0].mxu0
  %v1835 = vpop.f32.mrb[0].mxu0
  %v1836 = vadd.f32 0.0, %v1835
  %v1837 = vpop.f32.mrb[0].mxu0
  %1838 = vmatprep.mubr.bf16.mxu0 0
  %1839 = vmatmul.mubr.bf16.gmra.mrb[0].mxu0 %v1668
  %v1840 = vpop.f32.mrb[0].mxu0
  %v1841 = vadd.f32 0.0, %v1840
  %v1842 = vpop.f32.mrb[0].mxu0
  %v1843 = vpop.f32.mrb[0].mxu0
  %v1844 = vadd.f32 0.0, %v1843
  %v1845 = vpop.f32.mrb[0].mxu0
  %1846 = vmatprep.mubr.bf16.mxu0 0
  %1847 = vmatmul.mubr.bf16.gmra.mrb[0].mxu0 %v1669
  %v1848 = vpop.f32.mrb[0].mxu0
  %v1849 = vadd.f32 0.0, %v1848
  %v1850 = vpop.f32.mrb[0].mxu0
  %v1851 = vpop.f32.mrb[0].mxu0
  %v1852 = vadd.f32 0.0, %v1851
  %v1853 = vpop.f32.mrb[0].mxu0
  %1854 = vmatprep.mubr.bf16.mxu0 0
  %1855 = vmatmul.mubr.bf16.gmra.mrb[0].mxu0 %v1670
  %v1856 = vpop.f32.mrb[0].mxu0
  %v1857 = vadd.f32 0.0, %v1856
  %v1858 = vpop.f32.mrb[0].mxu0
  %v1859 = vpop.f32.mrb[0].mxu0
  %v1860 = vadd.f32 0.0, %v1859
  %v1861 = vpop.f32.mrb[0].mxu0
  %1862 = vmatprep.mubr.bf16.mxu0 0
  %1863 = vmatmul.mubr.bf16.gmra.mrb[0].mxu0 %v1671
  %v1864 = vpop.f32.mrb[0].mxu0
  %v1865 = vadd.f32 0.0, %v1864
  %v1866 = vpop.f32.mrb[0].mxu0
  %v1867 = vpop.f32.mrb[0].mxu0
  %v1868 = vadd.f32 0.0, %v1867
  %v1869 = vpop.f32.mrb[0].mxu0
  %1870 = vmatprep.mubr.bf16.mxu0 0
  %1871 = vmatmul.mubr.bf16.gmra.mrb[0].mxu0 %v1672
  %v1872 = vpop.f32.mrb[0].mxu0
  %v1873 = vadd.f32 0.0, %v1872
  %v1874 = vpop.f32.mrb[0].mxu0
  %v1875 = vpop.f32.mrb[0].mxu0
  %v1876 = vadd.f32 0.0, %v1875
  %v1877 = vpop.f32.mrb[0].mxu0
  %1878 = vmatprep.mubr.bf16.mxu0 0
  %1879 = vmatmul.mubr.bf16.gmra.mrb[0].mxu0 %v1673
  %v1880 = vpop.f32.mrb[0].mxu0
  %v1881 = vadd.f32 0.0, %v1880
  %v1882 = vpop.f32.mrb[0].mxu0
  %v1883 = vpop.f32.mrb[0].mxu0
  %v1884 = vadd.f32 0.0, %v1883
  %v1885 = vpop.f32.mrb[0].mxu0
  %1886 = vmatprep.mubr.bf16.mxu0 0
  %1887 = vmatmul.mubr.bf16.gmra.mrb[0].mxu0 %v1674
  %v1888 = vpop.f32.mrb[0].mxu0
  %v1889 = vadd.f32 0.0, %v1888
  %v1890 = vpop.f32.mrb[0].mxu0
  %v1891 = vpop.f32.mrb[0].mxu0
  %v1892 = vadd.f32 0.0, %v1891
  %v1893 = vpop.f32.mrb[0].mxu0
  %1894 = vmatprep.mubr.bf16.mxu0 0
  %1895 = vmatmul.mubr.bf16.gmra.mrb[0].mxu0 %v1675
  %v1896 = vpop.f32.mrb[0].mxu0
  %v1897 = vadd.f32 0.0, %v1896
  %v1898 = vpop.f32.mrb[0].mxu0
  %v1899 = vpop.f32.mrb[0].mxu0
  %v1900 = vadd.f32 0.0, %v1899
  %v1901 = vpop.f32.mrb[0].mxu0
  %1902 = vmatprep.mubr.bf16.mxu0 0
  %1903 = vmatmul.mubr.bf16.gmra.mrb[0].mxu0 %v1676
  %v1904 = vpop.f32.mrb[0].mxu0
  %v1905 = vadd.f32 0.0, %v1904
  %v1906 = vpop.f32.mrb[0].mxu0
  %v1907 = vpop.f32.mrb[0].mxu0
  %v1908 = vadd.f32 0.0, %v1907
  %v1909 = vpop.f32.mrb[0].mxu0
  %1910 = vmatprep.mubr.bf16.mxu0 0
  %1911 = vmatmul.mubr.bf16.gmra.mrb[0].mxu0 %v1677
  %v1912 = vpop.f32.mrb[0].mxu0
  %v1913 = vadd.f32 0.0, %v1912
  %v1914 = vpop.f32.mrb[0].mxu0
  %v1915 = vpop.f32.mrb[0].mxu0
  %v1916 = vadd.f32 0.0, %v1915
  %v1917 = vpop.f32.mrb[0].mxu0
  %1918 = vmatprep.mubr.bf16.mxu0 0
  %1919 = vmatmul.mubr.bf16.gmra.mrb[0].mxu0 %v1678
  %v1920 = vpop.f32.mrb[0].mxu0
  %v1921 = vadd.f32 0.0, %v1920
  %v1922 = vpop.f32.mrb[0].mxu0
  %v1923 = vpop.f32.mrb[0].mxu0
  %v1924 = vadd.f32 0.0, %v1923
  %v1925 = vpop.f32.mrb[0].mxu0
  %1926 = vmatprep.mubr.bf16.mxu0 0
  %1927 = vmatmul.mubr.bf16.gmra.mrb[0].mxu0 %v1679
  %v1928 = vpop.f32.mrb[0].mxu0
  %v1929 = vadd.f32 0.0, %v1928
  %v1930 = vpop.f32.mrb[0].mxu0
  %v1931 = vpop.f32.mrb[0].mxu0
  %v1932 = vadd.f32 0.0, %v1931
  %v1933 = vpop.f32.mrb[0].mxu0
  %1934 = vmatprep.mubr.bf16.mxu0 0
  %1935 = vmatmul.mubr.bf16.gmra.mrb[0].mxu0 %v1680
  %v1936 = vpop.f32.mrb[0].mxu0
  %v1937 = vadd.f32 0.0, %v1936
  %v1938 = vpop.f32.mrb[0].mxu0
  %v1939 = vpop.f32.mrb[0].mxu0
  %v1940 = vadd.f32 0.0, %v1939
  %v1941 = vpop.f32.mrb[0].mxu0
  %1942 = vmatprep.mubr.bf16.mxu0 0
  %1943 = vmatmul.mubr.bf16.gmra.mrb[0].mxu0 %v1681
  %v1944 = vpop.f32.mrb[0].mxu0
  %v1945 = vadd.f32 0.0, %v1944
  %v1946 = vpop.f32.mrb[0].mxu0
  %v1947 = vpop.f32.mrb[0].mxu0
  %v1948 = vadd.f32 0.0, %v1947
  %v1949 = vpop.f32.mrb[0].mxu0
  %1950 = vmatprep.mubr.bf16.mxu0 0
  %1951 = vmatmul.mubr.bf16.gmra.mrb[0].mxu0 %v1682
  %v1952 = vpop.f32.mrb[0].mxu0
  %v1953 = vadd.f32 0.0, %v1952
  %v1954 = vpop.f32.mrb[0].mxu0
  %v1955 = vpop.f32.mrb[0].mxu0
  %v1956 = vadd.f32 0.0, %v1955
  %v1957 = vpop.f32.mrb[0].mxu0
  %1958 = vmatprep.mubr.bf16.mxu0 0
  %1959 = vmatmul.mubr.bf16.gmra.mrb[0].mxu0 %v1683
  %v1960 = vpop.f32.mrb[0].mxu0
  %v1961 = vadd.f32 0.0, %v1960
  %v1962 = vpop.f32.mrb[0].mxu0
  %v1963 = vpop.f32.mrb[0].mxu0
  %v1964 = vadd.f32 0.0, %v1963
  %v1965 = vpop.f32.mrb[0].mxu0
  %1966 = vmatprep.mubr.bf16.mxu0 0
  %1967 = vmatmul.mubr.bf16.gmra.mrb[0].mxu0 %v1684
  %v1968 = vpop.f32.mrb[0].mxu0
  %v1969 = vadd.f32 0.0, %v1968
  %v1970 = vpop.f32.mrb[0].mxu0
  %v1971 = vpop.f32.mrb[0].mxu0
  %v1972 = vadd.f32 0.0, %v1971
  %v1973 = vpop.f32.mrb[0].mxu0
  %1974 = vdwg.mxu0
  %v1979 = vunpack.c.l.b16 %v1657
  %v1980 = vunpack.c.l.b16 %v1658
  %v1981 = vunpack.c.l.b16 %v1659
  %v1982 = vunpack.c.l.b16 %v1660
  %v1983 = vpack.c.b16 %v1980, %v1979
  %v1984 = vpack.c.b16 %v1982, %v1981
  %1987 = vmatprep.subr.bf16.mxu0 0
  %1988 = vmatpush1.bf16.msra.mxu0 %v1983
  %1989 = vmatprep.subr.bf16.mxu0 0
  %1990 = vmatpush1.bf16.msra.mxu0 %v1984
  %1991 = vmatprep.subr.bf16.mxu0 0
  %1992 = vmatpush1.bf16.msra.mxu0 0
  %1993 = vmatprep.subr.bf16.mxu0 0
  %1994 = vmatpush1.bf16.msra.mxu0 0
  %1995 = vmatprep.subr.bf16.mxu0 0
  %1996 = vmatpush1.bf16.msra.mxu0 0
  %1997 = vmatprep.subr.bf16.mxu0 0
  %1998 = vmatpush1.bf16.msra.mxu0 0
  %1999 = vmatprep.subr.bf16.mxu0 0
  %2000 = vmatpush1.bf16.msra.mxu0 0
  %2001 = vmatprep.subr.bf16.mxu0 0
  %2002 = vmatpush1.bf16.msra.mxu0 0
  %2003 = vmatprep.subr.bf16.mxu0 0
  %2004 = vmatpush1.bf16.msra.mxu0 0
  %2005 = vmatprep.subr.bf16.mxu0 0
  %2006 = vmatpush1.bf16.msra.mxu0 0
  %2007 = vmatprep.subr.bf16.mxu0 0
  %2008 = vmatpush1.bf16.msra.mxu0 0
  %2009 = vmatprep.subr.bf16.mxu0 0
  %2010 = vmatpush1.bf16.msra.mxu0 0
  %2011 = vmatprep.subr.bf16.mxu0 0
  %2012 = vmatpush1.bf16.msra.mxu0 0
  %2013 = vmatprep.subr.bf16.mxu0 0
  %2014 = vmatpush1.bf16.msra.mxu0 0
  %2015 = vmatprep.subr.bf16.mxu0 0
  %2016 = vmatpush1.bf16.msra.mxu0 0
  %2017 = vmatprep.subr.bf16.mxu0 0
  %2018 = vmatpush1.bf16.msra.mxu0 0
  %2019 = vmatprep.mubr.bf16.mxu0 0
  %2020 = vmatmul.mubr.bf16.gmra.mrb[0].mxu0 %v215
  %v2021 = vpop.f32.mrb[0].mxu0
  %v2022 = vadd.f32 %v1785, %v2021
  %v2023 = vpop.f32.mrb[0].mxu0
  %v2024 = vpop.f32.mrb[0].mxu0
  %v2025 = vadd.f32 %v1788, %v2024
  %v2026 = vpop.f32.mrb[0].mxu0
  %2027 = vmatprep.mubr.bf16.mxu0 0
  %2028 = vmatmul.mubr.bf16.gmra.mrb[0].mxu0 %v218
  %v2029 = vpop.f32.mrb[0].mxu0
  %v2030 = vadd.f32 %v1793, %v2029
  %v2031 = vpop.f32.mrb[0].mxu0
  %v2032 = vpop.f32.mrb[0].mxu0
  %v2033 = vadd.f32 %v1796, %v2032
  %v2034 = vpop.f32.mrb[0].mxu0
  %2035 = vmatprep.mubr.bf16.mxu0 0
  %2036 = vmatmul.mubr.bf16.gmra.mrb[0].mxu0 %v221
  %v2037 = vpop.f32.mrb[0].mxu0
  %v2038 = vadd.f32 %v1801, %v2037
  %v2039 = vpop.f32.mrb[0].mxu0
  %v2040 = vpop.f32.mrb[0].mxu0
  %v2041 = vadd.f32 %v1804, %v2040
  %v2042 = vpop.f32.mrb[0].mxu0
  %2043 = vmatprep.mubr.bf16.mxu0 0
  %2044 = vmatmul.mubr.bf16.gmra.mrb[0].mxu0 %v224
  %v2045 = vpop.f32.mrb[0].mxu0
  %v2046 = vadd.f32 %v1809, %v2045
  %v2047 = vpop.f32.mrb[0].mxu0
  %v2048 = vpop.f32.mrb[0].mxu0
  %v2049 = vadd.f32 %v1812, %v2048
  %v2050 = vpop.f32.mrb[0].mxu0
  %2051 = vmatprep.mubr.bf16.mxu0 0
  %2052 = vmatmul.mubr.bf16.gmra.mrb[0].mxu0 %v227
  %v2053 = vpop.f32.mrb[0].mxu0
  %v2054 = vadd.f32 %v1817, %v2053
  %v2055 = vpop.f32.mrb[0].mxu0
  %v2056 = vpop.f32.mrb[0].mxu0
  %v2057 = vadd.f32 %v1820, %v2056
  %v2058 = vpop.f32.mrb[0].mxu0
  %2059 = vmatprep.mubr.bf16.mxu0 0
  %2060 = vmatmul.mubr.bf16.gmra.mrb[0].mxu0 %v230
  %v2061 = vpop.f32.mrb[0].mxu0
  %v2062 = vadd.f32 %v1825, %v2061
  %v2063 = vpop.f32.mrb[0].mxu0
  %v2064 = vpop.f32.mrb[0].mxu0
  %v2065 = vadd.f32 %v1828, %v2064
  %v2066 = vpop.f32.mrb[0].mxu0
  %2067 = vmatprep.mubr.bf16.mxu0 0
  %2068 = vmatmul.mubr.bf16.gmra.mrb[0].mxu0 %v233
  %v2069 = vpop.f32.mrb[0].mxu0
  %v2070 = vadd.f32 %v1833, %v2069
  %v2071 = vpop.f32.mrb[0].mxu0
  %v2072 = vpop.f32.mrb[0].mxu0
  %v2073 = vadd.f32 %v1836, %v2072
  %v2074 = vpop.f32.mrb[0].mxu0
  %2075 = vmatprep.mubr.bf16.mxu0 0
  %2076 = vmatmul.mubr.bf16.gmra.mrb[0].mxu0 %v236
  %v2077 = vpop.f32.mrb[0].mxu0
  %v2078 = vadd.f32 %v1841, %v2077
  %v2079 = vpop.f32.mrb[0].mxu0
  %v2080 = vpop.f32.mrb[0].mxu0
  %v2081 = vadd.f32 %v1844, %v2080
  %v2082 = vpop.f32.mrb[0].mxu0
  %2083 = vmatprep.mubr.bf16.mxu0 0
  %2084 = vmatmul.mubr.bf16.gmra.mrb[0].mxu0 %v239
  %v2085 = vpop.f32.mrb[0].mxu0
  %v2086 = vadd.f32 %v1849, %v2085
  %v2087 = vpop.f32.mrb[0].mxu0
  %v2088 = vpop.f32.mrb[0].mxu0
  %v2089 = vadd.f32 %v1852, %v2088
  %v2090 = vpop.f32.mrb[0].mxu0
  %2091 = vmatprep.mubr.bf16.mxu0 0
  %2092 = vmatmul.mubr.bf16.gmra.mrb[0].mxu0 %v242
  %v2093 = vpop.f32.mrb[0].mxu0
  %v2094 = vadd.f32 %v1857, %v2093
  %v2095 = vpop.f32.mrb[0].mxu0
  %v2096 = vpop.f32.mrb[0].mxu0
  %v2097 = vadd.f32 %v1860, %v2096
  %v2098 = vpop.f32.mrb[0].mxu0
  %2099 = vmatprep.mubr.bf16.mxu0 0
  %2100 = vmatmul.mubr.bf16.gmra.mrb[0].mxu0 %v245
  %v2101 = vpop.f32.mrb[0].mxu0
  %v2102 = vadd.f32 %v1865, %v2101
  %v2103 = vpop.f32.mrb[0].mxu0
  %v2104 = vpop.f32.mrb[0].mxu0
  %v2105 = vadd.f32 %v1868, %v2104
  %v2106 = vpop.f32.mrb[0].mxu0
  %2107 = vmatprep.mubr.bf16.mxu0 0
  %2108 = vmatmul.mubr.bf16.gmra.mrb[0].mxu0 %v248
  %v2109 = vpop.f32.mrb[0].mxu0
  %v2110 = vadd.f32 %v1873, %v2109
  %v2111 = vpop.f32.mrb[0].mxu0
  %v2112 = vpop.f32.mrb[0].mxu0
  %v2113 = vadd.f32 %v1876, %v2112
  %v2114 = vpop.f32.mrb[0].mxu0
  %2115 = vmatprep.mubr.bf16.mxu0 0
  %2116 = vmatmul.mubr.bf16.gmra.mrb[0].mxu0 %v251
  %v2117 = vpop.f32.mrb[0].mxu0
  %v2118 = vadd.f32 %v1881, %v2117
  %v2119 = vpop.f32.mrb[0].mxu0
  %v2120 = vpop.f32.mrb[0].mxu0
  %v2121 = vadd.f32 %v1884, %v2120
  %v2122 = vpop.f32.mrb[0].mxu0
  %2123 = vmatprep.mubr.bf16.mxu0 0
  %2124 = vmatmul.mubr.bf16.gmra.mrb[0].mxu0 %v254
  %v2125 = vpop.f32.mrb[0].mxu0
  %v2126 = vadd.f32 %v1889, %v2125
  %v2127 = vpop.f32.mrb[0].mxu0
  %v2128 = vpop.f32.mrb[0].mxu0
  %v2129 = vadd.f32 %v1892, %v2128
  %v2130 = vpop.f32.mrb[0].mxu0
  %2131 = vmatprep.mubr.bf16.mxu0 0
  %2132 = vmatmul.mubr.bf16.gmra.mrb[0].mxu0 %v257
  %v2133 = vpop.f32.mrb[0].mxu0
  %v2134 = vadd.f32 %v1897, %v2133
  %v2135 = vpop.f32.mrb[0].mxu0
  %v2136 = vpop.f32.mrb[0].mxu0
  %v2137 = vadd.f32 %v1900, %v2136
  %v2138 = vpop.f32.mrb[0].mxu0
  %2139 = vmatprep.mubr.bf16.mxu0 0
  %2140 = vmatmul.mubr.bf16.gmra.mrb[0].mxu0 %v260
  %v2141 = vpop.f32.mrb[0].mxu0
  %v2142 = vadd.f32 %v1905, %v2141
  %v2143 = vpop.f32.mrb[0].mxu0
  %v2144 = vpop.f32.mrb[0].mxu0
  %v2145 = vadd.f32 %v1908, %v2144
  %v2146 = vpop.f32.mrb[0].mxu0
  %2147 = vmatprep.mubr.bf16.mxu0 0
  %2148 = vmatmul.mubr.bf16.gmra.mrb[0].mxu0 %v263
  %v2149 = vpop.f32.mrb[0].mxu0
  %v2150 = vadd.f32 %v1913, %v2149
  %v2151 = vpop.f32.mrb[0].mxu0
  %v2152 = vpop.f32.mrb[0].mxu0
  %v2153 = vadd.f32 %v1916, %v2152
  %v2154 = vpop.f32.mrb[0].mxu0
  %2155 = vmatprep.mubr.bf16.mxu0 0
  %2156 = vmatmul.mubr.bf16.gmra.mrb[0].mxu0 %v266
  %v2157 = vpop.f32.mrb[0].mxu0
  %v2158 = vadd.f32 %v1921, %v2157
  %v2159 = vpop.f32.mrb[0].mxu0
  %v2160 = vpop.f32.mrb[0].mxu0
  %v2161 = vadd.f32 %v1924, %v2160
  %v2162 = vpop.f32.mrb[0].mxu0
  %2163 = vmatprep.mubr.bf16.mxu0 0
  %2164 = vmatmul.mubr.bf16.gmra.mrb[0].mxu0 %v269
  %v2165 = vpop.f32.mrb[0].mxu0
  %v2166 = vadd.f32 %v1929, %v2165
  %v2167 = vpop.f32.mrb[0].mxu0
  %v2168 = vpop.f32.mrb[0].mxu0
  %v2169 = vadd.f32 %v1932, %v2168
  %v2170 = vpop.f32.mrb[0].mxu0
  %2171 = vmatprep.mubr.bf16.mxu0 0
  %2172 = vmatmul.mubr.bf16.gmra.mrb[0].mxu0 %v272
  %v2173 = vpop.f32.mrb[0].mxu0
  %v2174 = vadd.f32 %v1937, %v2173
  %v2175 = vpop.f32.mrb[0].mxu0
  %v2176 = vpop.f32.mrb[0].mxu0
  %v2177 = vadd.f32 %v1940, %v2176
  %v2178 = vpop.f32.mrb[0].mxu0
  %2179 = vmatprep.mubr.bf16.mxu0 0
  %2180 = vmatmul.mubr.bf16.gmra.mrb[0].mxu0 %v275
  %v2181 = vpop.f32.mrb[0].mxu0
  %v2182 = vadd.f32 %v1945, %v2181
  %v2183 = vpop.f32.mrb[0].mxu0
  %v2184 = vpop.f32.mrb[0].mxu0
  %v2185 = vadd.f32 %v1948, %v2184
  %v2186 = vpop.f32.mrb[0].mxu0
  %2187 = vmatprep.mubr.bf16.mxu0 0
  %2188 = vmatmul.mubr.bf16.gmra.mrb[0].mxu0 %v278
  %v2189 = vpop.f32.mrb[0].mxu0
  %v2190 = vadd.f32 %v1953, %v2189
  %v2191 = vpop.f32.mrb[0].mxu0
  %v2192 = vpop.f32.mrb[0].mxu0
  %v2193 = vadd.f32 %v1956, %v2192
  %v2194 = vpop.f32.mrb[0].mxu0
  %2195 = vmatprep.mubr.bf16.mxu0 0
  %2196 = vmatmul.mubr.bf16.gmra.mrb[0].mxu0 %v281
  %v2197 = vpop.f32.mrb[0].mxu0
  %v2198 = vadd.f32 %v1961, %v2197
  %v2199 = vpop.f32.mrb[0].mxu0
  %v2200 = vpop.f32.mrb[0].mxu0
  %v2201 = vadd.f32 %v1964, %v2200
  %v2202 = vpop.f32.mrb[0].mxu0
  %2203 = vmatprep.mubr.bf16.mxu0 0
  %2204 = vmatmul.mubr.bf16.gmra.mrb[0].mxu0 %v284
  %v2205 = vpop.f32.mrb[0].mxu0
  %v2206 = vadd.f32 %v1969, %v2205
  %v2207 = vpop.f32.mrb[0].mxu0
  %v2208 = vpop.f32.mrb[0].mxu0
  %v2209 = vadd.f32 %v1972, %v2208
  %v2210 = vpop.f32.mrb[0].mxu0
  %2211 = vdwg.mxu0
  %v2212 = vlaneseq
  %v2213 = vshrl.u32 %v2212, 7
  %v2214 = vsub.s32 4, %v2213
  %v2215 = vrot.slane %v72, %v2214
  %v2216 = vadd.f32 %v2022, %v2215
  %v2217 = vadd.f32 %v2025, %v2215
  %v2218 = vadd.f32 %v2030, %v2215
  %v2219 = vadd.f32 %v2033, %v2215
  %v2220 = vadd.f32 %v2038, %v2215
  %v2221 = vadd.f32 %v2041, %v2215
  %v2222 = vadd.f32 %v2046, %v2215
  %v2223 = vadd.f32 %v2049, %v2215
  %v2224 = vadd.f32 %v2054, %v2215
  %v2225 = vadd.f32 %v2057, %v2215
  %v2226 = vadd.f32 %v2062, %v2215
  %v2227 = vadd.f32 %v2065, %v2215
  %v2228 = vadd.f32 %v2070, %v2215
  %v2229 = vadd.f32 %v2073, %v2215
  %v2230 = vadd.f32 %v2078, %v2215
  %v2231 = vadd.f32 %v2081, %v2215
  %v2232 = vadd.f32 %v2086, %v2215
  %v2233 = vadd.f32 %v2089, %v2215
  %v2234 = vadd.f32 %v2094, %v2215
  %v2235 = vadd.f32 %v2097, %v2215
  %v2236 = vadd.f32 %v2102, %v2215
  %v2237 = vadd.f32 %v2105, %v2215
  %v2238 = vadd.f32 %v2110, %v2215
  %v2239 = vadd.f32 %v2113, %v2215
  %v2240 = vadd.f32 %v2118, %v2215
  %v2241 = vadd.f32 %v2121, %v2215
  %v2242 = vadd.f32 %v2126, %v2215
  %v2243 = vadd.f32 %v2129, %v2215
  %v2244 = vadd.f32 %v2134, %v2215
  %v2245 = vadd.f32 %v2137, %v2215
  %v2246 = vadd.f32 %v2142, %v2215
  %v2247 = vadd.f32 %v2145, %v2215
  %v2248 = vadd.f32 %v2150, %v2215
  %v2249 = vadd.f32 %v2153, %v2215
  %v2250 = vadd.f32 %v2158, %v2215
  %v2251 = vadd.f32 %v2161, %v2215
  %v2252 = vadd.f32 %v2166, %v2215
  %v2253 = vadd.f32 %v2169, %v2215
  %v2254 = vadd.f32 %v2174, %v2215
  %v2255 = vadd.f32 %v2177, %v2215
  %v2256 = vadd.f32 %v2182, %v2215
  %v2257 = vadd.f32 %v2185, %v2215
  %v2258 = vadd.f32 %v2190, %v2215
  %v2259 = vadd.f32 %v2193, %v2215
  %v2260 = vadd.f32 %v2198, %v2215
  %v2261 = vadd.f32 %v2201, %v2215
  %v2262 = vadd.f32 %v2206, %v2215
  %v2263 = vadd.f32 %v2209, %v2215
  %v2264 = vmax.f32 %v2216, 0.0
  %v2265 = vmax.f32 %v2217, 0.0
  %v2266 = vmax.f32 %v2218, 0.0
  %v2267 = vmax.f32 %v2219, 0.0
  %v2268 = vmax.f32 %v2220, 0.0
  %v2269 = vmax.f32 %v2221, 0.0
  %v2270 = vmax.f32 %v2222, 0.0
  %v2271 = vmax.f32 %v2223, 0.0
  %v2272 = vmax.f32 %v2224, 0.0
  %v2273 = vmax.f32 %v2225, 0.0
  %v2274 = vmax.f32 %v2226, 0.0
  %v2275 = vmax.f32 %v2227, 0.0
  %v2276 = vmax.f32 %v2228, 0.0
  %v2277 = vmax.f32 %v2229, 0.0
  %v2278 = vmax.f32 %v2230, 0.0
  %v2279 = vmax.f32 %v2231, 0.0
  %v2280 = vmax.f32 %v2232, 0.0
  %v2281 = vmax.f32 %v2233, 0.0
  %v2282 = vmax.f32 %v2234, 0.0
  %v2283 = vmax.f32 %v2235, 0.0
  %v2284 = vmax.f32 %v2236, 0.0
  %v2285 = vmax.f32 %v2237, 0.0
  %v2286 = vmax.f32 %v2238, 0.0
  %v2287 = vmax.f32 %v2239, 0.0
  %v2288 = vmax.f32 %v2240, 0.0
  %v2289 = vmax.f32 %v2241, 0.0
  %v2290 = vmax.f32 %v2242, 0.0
  %v2291 = vmax.f32 %v2243, 0.0
  %v2292 = vmax.f32 %v2244, 0.0
  %v2293 = vmax.f32 %v2245, 0.0
  %v2294 = vmax.f32 %v2246, 0.0
  %v2295 = vmax.f32 %v2247, 0.0
  %v2296 = vmax.f32 %v2248, 0.0
  %v2297 = vmax.f32 %v2249, 0.0
  %v2298 = vmax.f32 %v2250, 0.0
  %v2299 = vmax.f32 %v2251, 0.0
  %v2300 = vmax.f32 %v2252, 0.0
  %v2301 = vmax.f32 %v2253, 0.0
  %v2302 = vmax.f32 %v2254, 0.0
  %v2303 = vmax.f32 %v2255, 0.0
  %v2304 = vmax.f32 %v2256, 0.0
  %v2305 = vmax.f32 %v2257, 0.0
  %v2306 = vmax.f32 %v2258, 0.0
  %v2307 = vmax.f32 %v2259, 0.0
  %v2308 = vmax.f32 %v2260, 0.0
  %v2309 = vmax.f32 %v2261, 0.0
  %v2310 = vmax.f32 %v2262, 0.0
  %v2311 = vmax.f32 %v2263, 0.0
  %s2312 = scalar_lea.vmem %s2, 256
  %v2313 = vld [vmem:[%s2312] sm:$0xf]
  %v2314 = vld [vmem:[%s2312 + $0x4] sm:$0xf]
  %v2315 = vld [vmem:[%s2312 + $0x8] sm:$0xf]
  %v2316 = vld [vmem:[%s2312 + $0xc] sm:$0xf]
  %v2317 = vld [vmem:[%s2312 + $0x10] sm:$0xf]
  %v2318 = vld [vmem:[%s2312 + $0x14] sm:$0xf]
  %v2319 = vld [vmem:[%s2312 + $0x18] sm:$0xf]
  %v2320 = vld [vmem:[%s2312 + $0x1c] sm:$0xf]
  %v2321 = vld [vmem:[%s2312 + $0x20] sm:$0xf]
  %v2322 = vld [vmem:[%s2312 + $0x24] sm:$0xf]
  %v2323 = vld [vmem:[%s2312 + $0x28] sm:$0xf]
  %v2324 = vld [vmem:[%s2312 + $0x2c] sm:$0xf]
  %v2325 = vld [vmem:[%s2312 + $0x30] sm:$0xf]
  %v2326 = vld [vmem:[%s2312 + $0x34] sm:$0xf]
  %v2327 = vld [vmem:[%s2312 + $0x38] sm:$0xf]
  %v2328 = vld [vmem:[%s2312 + $0x3c] sm:$0xf]
  %v2329 = vpack.c.bf16 %v2265, %v2264
  %v2330 = vpack.c.bf16 %v2267, %v2266
  %v2331 = vpack.c.bf16 %v2269, %v2268
  %v2332 = vpack.c.bf16 %v2271, %v2270
  %v2333 = vpack.c.bf16 %v2273, %v2272
  %v2334 = vpack.c.bf16 %v2275, %v2274
  %v2335 = vpack.c.bf16 %v2277, %v2276
  %v2336 = vpack.c.bf16 %v2279, %v2278
  %v2337 = vpack.c.bf16 %v2281, %v2280
  %v2338 = vpack.c.bf16 %v2283, %v2282
  %v2339 = vpack.c.bf16 %v2285, %v2284
  %v2340 = vpack.c.bf16 %v2287, %v2286
  %v2341 = vpack.c.bf16 %v2289, %v2288
  %v2342 = vpack.c.bf16 %v2291, %v2290
  %v2343 = vpack.c.bf16 %v2293, %v2292
  %v2344 = vpack.c.bf16 %v2295, %v2294
  %v2345 = vpack.c.bf16 %v2297, %v2296
  %v2346 = vpack.c.bf16 %v2299, %v2298
  %v2347 = vpack.c.bf16 %v2301, %v2300
  %v2348 = vpack.c.bf16 %v2303, %v2302
  %v2349 = vpack.c.bf16 %v2305, %v2304
  %v2350 = vpack.c.bf16 %v2307, %v2306
  %v2351 = vpack.c.bf16 %v2309, %v2308
  %v2352 = vpack.c.bf16 %v2311, %v2310
  %v2353 = vlaneseq
  %v2354 = vshrl.u32 %v2353, 7
  %v2355 = vsub.s32 5, %v2354
  %v2356 = vrot.slane %v72, %v2355
  %v2373 = vunpack.c.l.b16 %v2313
  %v2374 = vunpack.c.l.b16 %v2314
  %v2375 = vunpack.c.l.b16 %v2315
  %v2376 = vunpack.c.l.b16 %v2316
  %v2377 = vunpack.c.l.b16 %v2317
  %v2378 = vunpack.c.l.b16 %v2318
  %v2379 = vunpack.c.l.b16 %v2319
  %v2380 = vunpack.c.l.b16 %v2320
  %v2381 = vunpack.c.l.b16 %v2321
  %v2382 = vunpack.c.l.b16 %v2322
  %v2383 = vunpack.c.l.b16 %v2323
  %v2384 = vunpack.c.l.b16 %v2324
  %v2385 = vunpack.c.l.b16 %v2325
  %v2386 = vunpack.c.l.b16 %v2326
  %v2387 = vunpack.c.l.b16 %v2327
  %v2388 = vunpack.c.l.b16 %v2328
  %v2389 = vpack.c.b16 %v2374, %v2373
  %v2390 = vpack.c.b16 %v2376, %v2375
  %v2391 = vpack.c.b16 %v2378, %v2377
  %v2392 = vpack.c.b16 %v2380, %v2379
  %v2393 = vpack.c.b16 %v2382, %v2381
  %v2394 = vpack.c.b16 %v2384, %v2383
  %v2395 = vpack.c.b16 %v2386, %v2385
  %v2396 = vpack.c.b16 %v2388, %v2387
  %2405 = vmatprep.subr.bf16.mxu0 0
  %2406 = vmatpush1.bf16.msra.mxu0 %v2389
  %2407 = vmatprep.subr.bf16.mxu0 0
  %2408 = vmatpush1.bf16.msra.mxu0 %v2390
  %2409 = vmatprep.subr.bf16.mxu0 0
  %2410 = vmatpush1.bf16.msra.mxu0 %v2391
  %2411 = vmatprep.subr.bf16.mxu0 0
  %2412 = vmatpush1.bf16.msra.mxu0 %v2392
  %2413 = vmatprep.subr.bf16.mxu0 0
  %2414 = vmatpush1.bf16.msra.mxu0 %v2393
  %2415 = vmatprep.subr.bf16.mxu0 0
  %2416 = vmatpush1.bf16.msra.mxu0 %v2394
  %2417 = vmatprep.subr.bf16.mxu0 0
  %2418 = vmatpush1.bf16.msra.mxu0 %v2395
  %2419 = vmatprep.subr.bf16.mxu0 0
  %2420 = vmatpush1.bf16.msra.mxu0 %v2396
  %2421 = vmatprep.subr.bf16.mxu0 0
  %2422 = vmatpush1.bf16.msra.mxu0 0
  %2423 = vmatprep.subr.bf16.mxu0 0
  %2424 = vmatpush1.bf16.msra.mxu0 0
  %2425 = vmatprep.subr.bf16.mxu0 0
  %2426 = vmatpush1.bf16.msra.mxu0 0
  %2427 = vmatprep.subr.bf16.mxu0 0
  %2428 = vmatpush1.bf16.msra.mxu0 0
  %2429 = vmatprep.subr.bf16.mxu0 0
  %2430 = vmatpush1.bf16.msra.mxu0 0
  %2431 = vmatprep.subr.bf16.mxu0 0
  %2432 = vmatpush1.bf16.msra.mxu0 0
  %2433 = vmatprep.subr.bf16.mxu0 0
  %2434 = vmatpush1.bf16.msra.mxu0 0
  %2435 = vmatprep.subr.bf16.mxu0 0
  %2436 = vmatpush1.bf16.msra.mxu0 0
  %2437 = vmatprep.mubr.bf16.mxu0 0
  %2438 = vmatmul.mubr.bf16.gmra.mrb[0].mxu0 %v2329
  %v2439 = vpop.f32.mrb[0].mxu0
  %v2440 = vadd.f32 %v2356, %v2439
  %v2441 = vpop.f32.mrb[0].mxu0
  %v2442 = vpop.f32.mrb[0].mxu0
  %v2443 = vadd.f32 %v2356, %v2442
  %v2444 = vpop.f32.mrb[0].mxu0
  %2445 = vmatprep.mubr.bf16.mxu0 0
  %2446 = vmatmul.mubr.bf16.gmra.mrb[0].mxu0 %v2330
  %v2447 = vpop.f32.mrb[0].mxu0
  %v2448 = vadd.f32 %v2356, %v2447
  %v2449 = vpop.f32.mrb[0].mxu0
  %v2450 = vpop.f32.mrb[0].mxu0
  %v2451 = vadd.f32 %v2356, %v2450
  %v2452 = vpop.f32.mrb[0].mxu0
  %2453 = vmatprep.mubr.bf16.mxu0 0
  %2454 = vmatmul.mubr.bf16.gmra.mrb[0].mxu0 %v2331
  %v2455 = vpop.f32.mrb[0].mxu0
  %v2456 = vadd.f32 %v2356, %v2455
  %v2457 = vpop.f32.mrb[0].mxu0
  %v2458 = vpop.f32.mrb[0].mxu0
  %v2459 = vadd.f32 %v2356, %v2458
  %v2460 = vpop.f32.mrb[0].mxu0
  %2461 = vmatprep.mubr.bf16.mxu0 0
  %2462 = vmatmul.mubr.bf16.gmra.mrb[0].mxu0 %v2332
  %v2463 = vpop.f32.mrb[0].mxu0
  %v2464 = vadd.f32 %v2356, %v2463
  %v2465 = vpop.f32.mrb[0].mxu0
  %v2466 = vpop.f32.mrb[0].mxu0
  %v2467 = vadd.f32 %v2356, %v2466
  %v2468 = vpop.f32.mrb[0].mxu0
  %2469 = vmatprep.mubr.bf16.mxu0 0
  %2470 = vmatmul.mubr.bf16.gmra.mrb[0].mxu0 %v2333
  %v2471 = vpop.f32.mrb[0].mxu0
  %v2472 = vadd.f32 %v2356, %v2471
  %v2473 = vpop.f32.mrb[0].mxu0
  %v2474 = vpop.f32.mrb[0].mxu0
  %v2475 = vadd.f32 %v2356, %v2474
  %v2476 = vpop.f32.mrb[0].mxu0
  %2477 = vmatprep.mubr.bf16.mxu0 0
  %2478 = vmatmul.mubr.bf16.gmra.mrb[0].mxu0 %v2334
  %v2479 = vpop.f32.mrb[0].mxu0
  %v2480 = vadd.f32 %v2356, %v2479
  %v2481 = vpop.f32.mrb[0].mxu0
  %v2482 = vpop.f32.mrb[0].mxu0
  %v2483 = vadd.f32 %v2356, %v2482
  %v2484 = vpop.f32.mrb[0].mxu0
  %2485 = vmatprep.mubr.bf16.mxu0 0
  %2486 = vmatmul.mubr.bf16.gmra.mrb[0].mxu0 %v2335
  %v2487 = vpop.f32.mrb[0].mxu0
  %v2488 = vadd.f32 %v2356, %v2487
  %v2489 = vpop.f32.mrb[0].mxu0
  %v2490 = vpop.f32.mrb[0].mxu0
  %v2491 = vadd.f32 %v2356, %v2490
  %v2492 = vpop.f32.mrb[0].mxu0
  %2493 = vmatprep.mubr.bf16.mxu0 0
  %2494 = vmatmul.mubr.bf16.gmra.mrb[0].mxu0 %v2336
  %v2495 = vpop.f32.mrb[0].mxu0
  %v2496 = vadd.f32 %v2356, %v2495
  %v2497 = vpop.f32.mrb[0].mxu0
  %v2498 = vpop.f32.mrb[0].mxu0
  %v2499 = vadd.f32 %v2356, %v2498
  %v2500 = vpop.f32.mrb[0].mxu0
  %2501 = vmatprep.mubr.bf16.mxu0 0
  %2502 = vmatmul.mubr.bf16.gmra.mrb[0].mxu0 %v2337
  %v2503 = vpop.f32.mrb[0].mxu0
  %v2504 = vadd.f32 %v2356, %v2503
  %v2505 = vpop.f32.mrb[0].mxu0
  %v2506 = vpop.f32.mrb[0].mxu0
  %v2507 = vadd.f32 %v2356, %v2506
  %v2508 = vpop.f32.mrb[0].mxu0
  %2509 = vmatprep.mubr.bf16.mxu0 0
  %2510 = vmatmul.mubr.bf16.gmra.mrb[0].mxu0 %v2338
  %v2511 = vpop.f32.mrb[0].mxu0
  %v2512 = vadd.f32 %v2356, %v2511
  %v2513 = vpop.f32.mrb[0].mxu0
  %v2514 = vpop.f32.mrb[0].mxu0
  %v2515 = vadd.f32 %v2356, %v2514
  %v2516 = vpop.f32.mrb[0].mxu0
  %2517 = vmatprep.mubr.bf16.mxu0 0
  %2518 = vmatmul.mubr.bf16.gmra.mrb[0].mxu0 %v2339
  %v2519 = vpop.f32.mrb[0].mxu0
  %v2520 = vadd.f32 %v2356, %v2519
  %v2521 = vpop.f32.mrb[0].mxu0
  %v2522 = vpop.f32.mrb[0].mxu0
  %v2523 = vadd.f32 %v2356, %v2522
  %v2524 = vpop.f32.mrb[0].mxu0
  %2525 = vmatprep.mubr.bf16.mxu0 0
  %2526 = vmatmul.mubr.bf16.gmra.mrb[0].mxu0 %v2340
  %v2527 = vpop.f32.mrb[0].mxu0
  %v2528 = vadd.f32 %v2356, %v2527
  %v2529 = vpop.f32.mrb[0].mxu0
  %v2530 = vpop.f32.mrb[0].mxu0
  %v2531 = vadd.f32 %v2356, %v2530
  %v2532 = vpop.f32.mrb[0].mxu0
  %2533 = vmatprep.mubr.bf16.mxu0 0
  %2534 = vmatmul.mubr.bf16.gmra.mrb[0].mxu0 %v2341
  %v2535 = vpop.f32.mrb[0].mxu0
  %v2536 = vadd.f32 %v2356, %v2535
  %v2537 = vpop.f32.mrb[0].mxu0
  %v2538 = vpop.f32.mrb[0].mxu0
  %v2539 = vadd.f32 %v2356, %v2538
  %v2540 = vpop.f32.mrb[0].mxu0
  %2541 = vmatprep.mubr.bf16.mxu0 0
  %2542 = vmatmul.mubr.bf16.gmra.mrb[0].mxu0 %v2342
  %v2543 = vpop.f32.mrb[0].mxu0
  %v2544 = vadd.f32 %v2356, %v2543
  %v2545 = vpop.f32.mrb[0].mxu0
  %v2546 = vpop.f32.mrb[0].mxu0
  %v2547 = vadd.f32 %v2356, %v2546
  %v2548 = vpop.f32.mrb[0].mxu0
  %2549 = vmatprep.mubr.bf16.mxu0 0
  %2550 = vmatmul.mubr.bf16.gmra.mrb[0].mxu0 %v2343
  %v2551 = vpop.f32.mrb[0].mxu0
  %v2552 = vadd.f32 %v2356, %v2551
  %v2553 = vpop.f32.mrb[0].mxu0
  %v2554 = vpop.f32.mrb[0].mxu0
  %v2555 = vadd.f32 %v2356, %v2554
  %v2556 = vpop.f32.mrb[0].mxu0
  %2557 = vmatprep.mubr.bf16.mxu0 0
  %2558 = vmatmul.mubr.bf16.gmra.mrb[0].mxu0 %v2344
  %v2559 = vpop.f32.mrb[0].mxu0
  %v2560 = vadd.f32 %v2356, %v2559
  %v2561 = vpop.f32.mrb[0].mxu0
  %v2562 = vpop.f32.mrb[0].mxu0
  %v2563 = vadd.f32 %v2356, %v2562
  %v2564 = vpop.f32.mrb[0].mxu0
  %2565 = vmatprep.mubr.bf16.mxu0 0
  %2566 = vmatmul.mubr.bf16.gmra.mrb[0].mxu0 %v2345
  %v2567 = vpop.f32.mrb[0].mxu0
  %v2568 = vadd.f32 %v2356, %v2567
  %v2569 = vpop.f32.mrb[0].mxu0
  %v2570 = vpop.f32.mrb[0].mxu0
  %v2571 = vadd.f32 %v2356, %v2570
  %v2572 = vpop.f32.mrb[0].mxu0
  %2573 = vmatprep.mubr.bf16.mxu0 0
  %2574 = vmatmul.mubr.bf16.gmra.mrb[0].mxu0 %v2346
  %v2575 = vpop.f32.mrb[0].mxu0
  %v2576 = vadd.f32 %v2356, %v2575
  %v2577 = vpop.f32.mrb[0].mxu0
  %v2578 = vpop.f32.mrb[0].mxu0
  %v2579 = vadd.f32 %v2356, %v2578
  %v2580 = vpop.f32.mrb[0].mxu0
  %2581 = vmatprep.mubr.bf16.mxu0 0
  %2582 = vmatmul.mubr.bf16.gmra.mrb[0].mxu0 %v2347
  %v2583 = vpop.f32.mrb[0].mxu0
  %v2584 = vadd.f32 %v2356, %v2583
  %v2585 = vpop.f32.mrb[0].mxu0
  %v2586 = vpop.f32.mrb[0].mxu0
  %v2587 = vadd.f32 %v2356, %v2586
  %v2588 = vpop.f32.mrb[0].mxu0
  %2589 = vmatprep.mubr.bf16.mxu0 0
  %2590 = vmatmul.mubr.bf16.gmra.mrb[0].mxu0 %v2348
  %v2591 = vpop.f32.mrb[0].mxu0
  %v2592 = vadd.f32 %v2356, %v2591
  %v2593 = vpop.f32.mrb[0].mxu0
  %v2594 = vpop.f32.mrb[0].mxu0
  %v2595 = vadd.f32 %v2356, %v2594
  %v2596 = vpop.f32.mrb[0].mxu0
  %2597 = vmatprep.mubr.bf16.mxu0 0
  %2598 = vmatmul.mubr.bf16.gmra.mrb[0].mxu0 %v2349
  %v2599 = vpop.f32.mrb[0].mxu0
  %v2600 = vadd.f32 %v2356, %v2599
  %v2601 = vpop.f32.mrb[0].mxu0
  %v2602 = vpop.f32.mrb[0].mxu0
  %v2603 = vadd.f32 %v2356, %v2602
  %v2604 = vpop.f32.mrb[0].mxu0
  %2605 = vmatprep.mubr.bf16.mxu0 0
  %2606 = vmatmul.mubr.bf16.gmra.mrb[0].mxu0 %v2350
  %v2607 = vpop.f32.mrb[0].mxu0
  %v2608 = vadd.f32 %v2356, %v2607
  %v2609 = vpop.f32.mrb[0].mxu0
  %v2610 = vpop.f32.mrb[0].mxu0
  %v2611 = vadd.f32 %v2356, %v2610
  %v2612 = vpop.f32.mrb[0].mxu0
  %2613 = vmatprep.mubr.bf16.mxu0 0
  %2614 = vmatmul.mubr.bf16.gmra.mrb[0].mxu0 %v2351
  %v2615 = vpop.f32.mrb[0].mxu0
  %v2616 = vadd.f32 %v2356, %v2615
  %v2617 = vpop.f32.mrb[0].mxu0
  %v2618 = vpop.f32.mrb[0].mxu0
  %v2619 = vadd.f32 %v2356, %v2618
  %v2620 = vpop.f32.mrb[0].mxu0
  %2621 = vmatprep.mubr.bf16.mxu0 0
  %2622 = vmatmul.mubr.bf16.gmra.mrb[0].mxu0 %v2352
  %v2623 = vpop.f32.mrb[0].mxu0
  %v2624 = vadd.f32 %v2356, %v2623
  %v2625 = vpop.f32.mrb[0].mxu0
  %v2626 = vpop.f32.mrb[0].mxu0
  %v2627 = vadd.f32 %v2356, %v2626
  %v2628 = vpop.f32.mrb[0].mxu0
  %2629 = vdwg.mxu0
  %v2630 = vmax.f32 %v2440, 0.0
  %v2631 = vmax.f32 %v2443, 0.0
  %v2632 = vmax.f32 %v2448, 0.0
  %v2633 = vmax.f32 %v2451, 0.0
  %v2634 = vmax.f32 %v2456, 0.0
  %v2635 = vmax.f32 %v2459, 0.0
  %v2636 = vmax.f32 %v2464, 0.0
  %v2637 = vmax.f32 %v2467, 0.0
  %v2638 = vmax.f32 %v2472, 0.0
  %v2639 = vmax.f32 %v2475, 0.0
  %v2640 = vmax.f32 %v2480, 0.0
  %v2641 = vmax.f32 %v2483, 0.0
  %v2642 = vmax.f32 %v2488, 0.0
  %v2643 = vmax.f32 %v2491, 0.0
  %v2644 = vmax.f32 %v2496, 0.0
  %v2645 = vmax.f32 %v2499, 0.0
  %v2646 = vmax.f32 %v2504, 0.0
  %v2647 = vmax.f32 %v2507, 0.0
  %v2648 = vmax.f32 %v2512, 0.0
  %v2649 = vmax.f32 %v2515, 0.0
  %v2650 = vmax.f32 %v2520, 0.0
  %v2651 = vmax.f32 %v2523, 0.0
  %v2652 = vmax.f32 %v2528, 0.0
  %v2653 = vmax.f32 %v2531, 0.0
  %v2654 = vmax.f32 %v2536, 0.0
  %v2655 = vmax.f32 %v2539, 0.0
  %v2656 = vmax.f32 %v2544, 0.0
  %v2657 = vmax.f32 %v2547, 0.0
  %v2658 = vmax.f32 %v2552, 0.0
  %v2659 = vmax.f32 %v2555, 0.0
  %v2660 = vmax.f32 %v2560, 0.0
  %v2661 = vmax.f32 %v2563, 0.0
  %v2662 = vmax.f32 %v2568, 0.0
  %v2663 = vmax.f32 %v2571, 0.0
  %v2664 = vmax.f32 %v2576, 0.0
  %v2665 = vmax.f32 %v2579, 0.0
  %v2666 = vmax.f32 %v2584, 0.0
  %v2667 = vmax.f32 %v2587, 0.0
  %v2668 = vmax.f32 %v2592, 0.0
  %v2669 = vmax.f32 %v2595, 0.0
  %v2670 = vmax.f32 %v2600, 0.0
  %v2671 = vmax.f32 %v2603, 0.0
  %v2672 = vmax.f32 %v2608, 0.0
  %v2673 = vmax.f32 %v2611, 0.0
  %v2674 = vmax.f32 %v2616, 0.0
  %v2675 = vmax.f32 %v2619, 0.0
  %v2676 = vmax.f32 %v2624, 0.0
  %v2677 = vmax.f32 %v2627, 0.0
  %s2678 = scalar_lea.vmem %s2, 320
  %v2679 = vld [vmem:[%s2678] sm:$0xf]
  %v2680 = vld [vmem:[%s2678 + $0x4] sm:$0xf]
  %v2681 = vld [vmem:[%s2678 + $0x8] sm:$0xf]
  %v2682 = vld [vmem:[%s2678 + $0xc] sm:$0xf]
  %v2683 = vld [vmem:[%s2678 + $0x10] sm:$0xf]
  %v2684 = vld [vmem:[%s2678 + $0x14] sm:$0xf]
  %v2685 = vld [vmem:[%s2678 + $0x18] sm:$0xf]
  %v2686 = vld [vmem:[%s2678 + $0x1c] sm:$0xf]
  %v2687 = vld [vmem:[%s2678 + $0x20] sm:$0xf]
  %v2688 = vld [vmem:[%s2678 + $0x24] sm:$0xf]
  %v2689 = vld [vmem:[%s2678 + $0x28] sm:$0xf]
  %v2690 = vld [vmem:[%s2678 + $0x2c] sm:$0xf]
  %v2691 = vld [vmem:[%s2678 + $0x30] sm:$0xf]
  %v2692 = vld [vmem:[%s2678 + $0x34] sm:$0xf]
  %v2693 = vld [vmem:[%s2678 + $0x38] sm:$0xf]
  %v2694 = vld [vmem:[%s2678 + $0x3c] sm:$0xf]
  %v2695 = vpack.c.bf16 %v2631, %v2630
  %v2696 = vpack.c.bf16 %v2633, %v2632
  %v2697 = vpack.c.bf16 %v2635, %v2634
  %v2698 = vpack.c.bf16 %v2637, %v2636
  %v2699 = vpack.c.bf16 %v2639, %v2638
  %v2700 = vpack.c.bf16 %v2641, %v2640
  %v2701 = vpack.c.bf16 %v2643, %v2642
  %v2702 = vpack.c.bf16 %v2645, %v2644
  %v2703 = vpack.c.bf16 %v2647, %v2646
  %v2704 = vpack.c.bf16 %v2649, %v2648
  %v2705 = vpack.c.bf16 %v2651, %v2650
  %v2706 = vpack.c.bf16 %v2653, %v2652
  %v2707 = vpack.c.bf16 %v2655, %v2654
  %v2708 = vpack.c.bf16 %v2657, %v2656
  %v2709 = vpack.c.bf16 %v2659, %v2658
  %v2710 = vpack.c.bf16 %v2661, %v2660
  %v2711 = vpack.c.bf16 %v2663, %v2662
  %v2712 = vpack.c.bf16 %v2665, %v2664
  %v2713 = vpack.c.bf16 %v2667, %v2666
  %v2714 = vpack.c.bf16 %v2669, %v2668
  %v2715 = vpack.c.bf16 %v2671, %v2670
  %v2716 = vpack.c.bf16 %v2673, %v2672
  %v2717 = vpack.c.bf16 %v2675, %v2674
  %v2718 = vpack.c.bf16 %v2677, %v2676
  %v2719 = vlaneseq
  %v2720 = vshrl.u32 %v2719, 7
  %v2721 = vsub.s32 6, %v2720
  %v2722 = vrot.slane %v72, %v2721
  %v2739 = vunpack.c.l.b16 %v2679
  %v2740 = vunpack.c.l.b16 %v2680
  %v2741 = vunpack.c.l.b16 %v2681
  %v2742 = vunpack.c.l.b16 %v2682
  %v2743 = vunpack.c.l.b16 %v2683
  %v2744 = vunpack.c.l.b16 %v2684
  %v2745 = vunpack.c.l.b16 %v2685
  %v2746 = vunpack.c.l.b16 %v2686
  %v2747 = vunpack.c.l.b16 %v2687
  %v2748 = vunpack.c.l.b16 %v2688
  %v2749 = vunpack.c.l.b16 %v2689
  %v2750 = vunpack.c.l.b16 %v2690
  %v2751 = vunpack.c.l.b16 %v2691
  %v2752 = vunpack.c.l.b16 %v2692
  %v2753 = vunpack.c.l.b16 %v2693
  %v2754 = vunpack.c.l.b16 %v2694
  %v2755 = vpack.c.b16 %v2740, %v2739
  %v2756 = vpack.c.b16 %v2742, %v2741
  %v2757 = vpack.c.b16 %v2744, %v2743
  %v2758 = vpack.c.b16 %v2746, %v2745
  %v2759 = vpack.c.b16 %v2748, %v2747
  %v2760 = vpack.c.b16 %v2750, %v2749
  %v2761 = vpack.c.b16 %v2752, %v2751
  %v2762 = vpack.c.b16 %v2754, %v2753
  %2771 = vmatprep.subr.bf16.mxu0 0
  %2772 = vmatpush1.bf16.msra.mxu0 %v2755
  %2773 = vmatprep.subr.bf16.mxu0 0
  %2774 = vmatpush1.bf16.msra.mxu0 %v2756
  %2775 = vmatprep.subr.bf16.mxu0 0
  %2776 = vmatpush1.bf16.msra.mxu0 %v2757
  %2777 = vmatprep.subr.bf16.mxu0 0
  %2778 = vmatpush1.bf16.msra.mxu0 %v2758
  %2779 = vmatprep.subr.bf16.mxu0 0
  %2780 = vmatpush1.bf16.msra.mxu0 %v2759
  %2781 = vmatprep.subr.bf16.mxu0 0
  %2782 = vmatpush1.bf16.msra.mxu0 %v2760
  %2783 = vmatprep.subr.bf16.mxu0 0
  %2784 = vmatpush1.bf16.msra.mxu0 %v2761
  %2785 = vmatprep.subr.bf16.mxu0 0
  %2786 = vmatpush1.bf16.msra.mxu0 %v2762
  %2787 = vmatprep.subr.bf16.mxu0 0
  %2788 = vmatpush1.bf16.msra.mxu0 0
  %2789 = vmatprep.subr.bf16.mxu0 0
  %2790 = vmatpush1.bf16.msra.mxu0 0
  %2791 = vmatprep.subr.bf16.mxu0 0
  %2792 = vmatpush1.bf16.msra.mxu0 0
  %2793 = vmatprep.subr.bf16.mxu0 0
  %2794 = vmatpush1.bf16.msra.mxu0 0
  %2795 = vmatprep.subr.bf16.mxu0 0
  %2796 = vmatpush1.bf16.msra.mxu0 0
  %2797 = vmatprep.subr.bf16.mxu0 0
  %2798 = vmatpush1.bf16.msra.mxu0 0
  %2799 = vmatprep.subr.bf16.mxu0 0
  %2800 = vmatpush1.bf16.msra.mxu0 0
  %2801 = vmatprep.subr.bf16.mxu0 0
  %2802 = vmatpush1.bf16.msra.mxu0 0
  %2803 = vmatprep.mubr.bf16.mxu0 0
  %2804 = vmatmul.mubr.bf16.gmra.mrb[0].mxu0 %v2695
  %v2805 = vpop.f32.mrb[0].mxu0
  %v2806 = vadd.f32 %v2722, %v2805
  %v2807 = vpop.f32.mrb[0].mxu0
  %v2808 = vpop.f32.mrb[0].mxu0
  %v2809 = vadd.f32 %v2722, %v2808
  %v2810 = vpop.f32.mrb[0].mxu0
  %2811 = vmatprep.mubr.bf16.mxu0 0
  %2812 = vmatmul.mubr.bf16.gmra.mrb[0].mxu0 %v2696
  %v2813 = vpop.f32.mrb[0].mxu0
  %v2814 = vadd.f32 %v2722, %v2813
  %v2815 = vpop.f32.mrb[0].mxu0
  %v2816 = vpop.f32.mrb[0].mxu0
  %v2817 = vadd.f32 %v2722, %v2816
  %v2818 = vpop.f32.mrb[0].mxu0
  %2819 = vmatprep.mubr.bf16.mxu0 0
  %2820 = vmatmul.mubr.bf16.gmra.mrb[0].mxu0 %v2697
  %v2821 = vpop.f32.mrb[0].mxu0
  %v2822 = vadd.f32 %v2722, %v2821
  %v2823 = vpop.f32.mrb[0].mxu0
  %v2824 = vpop.f32.mrb[0].mxu0
  %v2825 = vadd.f32 %v2722, %v2824
  %v2826 = vpop.f32.mrb[0].mxu0
  %2827 = vmatprep.mubr.bf16.mxu0 0
  %2828 = vmatmul.mubr.bf16.gmra.mrb[0].mxu0 %v2698
  %v2829 = vpop.f32.mrb[0].mxu0
  %v2830 = vadd.f32 %v2722, %v2829
  %v2831 = vpop.f32.mrb[0].mxu0
  %v2832 = vpop.f32.mrb[0].mxu0
  %v2833 = vadd.f32 %v2722, %v2832
  %v2834 = vpop.f32.mrb[0].mxu0
  %2835 = vmatprep.mubr.bf16.mxu0 0
  %2836 = vmatmul.mubr.bf16.gmra.mrb[0].mxu0 %v2699
  %v2837 = vpop.f32.mrb[0].mxu0
  %v2838 = vadd.f32 %v2722, %v2837
  %v2839 = vpop.f32.mrb[0].mxu0
  %v2840 = vpop.f32.mrb[0].mxu0
  %v2841 = vadd.f32 %v2722, %v2840
  %v2842 = vpop.f32.mrb[0].mxu0
  %2843 = vmatprep.mubr.bf16.mxu0 0
  %2844 = vmatmul.mubr.bf16.gmra.mrb[0].mxu0 %v2700
  %v2845 = vpop.f32.mrb[0].mxu0
  %v2846 = vadd.f32 %v2722, %v2845
  %v2847 = vpop.f32.mrb[0].mxu0
  %v2848 = vpop.f32.mrb[0].mxu0
  %v2849 = vadd.f32 %v2722, %v2848
  %v2850 = vpop.f32.mrb[0].mxu0
  %2851 = vmatprep.mubr.bf16.mxu0 0
  %2852 = vmatmul.mubr.bf16.gmra.mrb[0].mxu0 %v2701
  %v2853 = vpop.f32.mrb[0].mxu0
  %v2854 = vadd.f32 %v2722, %v2853
  %v2855 = vpop.f32.mrb[0].mxu0
  %v2856 = vpop.f32.mrb[0].mxu0
  %v2857 = vadd.f32 %v2722, %v2856
  %v2858 = vpop.f32.mrb[0].mxu0
  %2859 = vmatprep.mubr.bf16.mxu0 0
  %2860 = vmatmul.mubr.bf16.gmra.mrb[0].mxu0 %v2702
  %v2861 = vpop.f32.mrb[0].mxu0
  %v2862 = vadd.f32 %v2722, %v2861
  %v2863 = vpop.f32.mrb[0].mxu0
  %v2864 = vpop.f32.mrb[0].mxu0
  %v2865 = vadd.f32 %v2722, %v2864
  %v2866 = vpop.f32.mrb[0].mxu0
  %2867 = vmatprep.mubr.bf16.mxu0 0
  %2868 = vmatmul.mubr.bf16.gmra.mrb[0].mxu0 %v2703
  %v2869 = vpop.f32.mrb[0].mxu0
  %v2870 = vadd.f32 %v2722, %v2869
  %v2871 = vpop.f32.mrb[0].mxu0
  %v2872 = vpop.f32.mrb[0].mxu0
  %v2873 = vadd.f32 %v2722, %v2872
  %v2874 = vpop.f32.mrb[0].mxu0
  %2875 = vmatprep.mubr.bf16.mxu0 0
  %2876 = vmatmul.mubr.bf16.gmra.mrb[0].mxu0 %v2704
  %v2877 = vpop.f32.mrb[0].mxu0
  %v2878 = vadd.f32 %v2722, %v2877
  %v2879 = vpop.f32.mrb[0].mxu0
  %v2880 = vpop.f32.mrb[0].mxu0
  %v2881 = vadd.f32 %v2722, %v2880
  %v2882 = vpop.f32.mrb[0].mxu0
  %2883 = vmatprep.mubr.bf16.mxu0 0
  %2884 = vmatmul.mubr.bf16.gmra.mrb[0].mxu0 %v2705
  %v2885 = vpop.f32.mrb[0].mxu0
  %v2886 = vadd.f32 %v2722, %v2885
  %v2887 = vpop.f32.mrb[0].mxu0
  %v2888 = vpop.f32.mrb[0].mxu0
  %v2889 = vadd.f32 %v2722, %v2888
  %v2890 = vpop.f32.mrb[0].mxu0
  %2891 = vmatprep.mubr.bf16.mxu0 0
  %2892 = vmatmul.mubr.bf16.gmra.mrb[0].mxu0 %v2706
  %v2893 = vpop.f32.mrb[0].mxu0
  %v2894 = vadd.f32 %v2722, %v2893
  %v2895 = vpop.f32.mrb[0].mxu0
  %v2896 = vpop.f32.mrb[0].mxu0
  %v2897 = vadd.f32 %v2722, %v2896
  %v2898 = vpop.f32.mrb[0].mxu0
  %2899 = vmatprep.mubr.bf16.mxu0 0
  %2900 = vmatmul.mubr.bf16.gmra.mrb[0].mxu0 %v2707
  %v2901 = vpop.f32.mrb[0].mxu0
  %v2902 = vadd.f32 %v2722, %v2901
  %v2903 = vpop.f32.mrb[0].mxu0
  %v2904 = vpop.f32.mrb[0].mxu0
  %v2905 = vadd.f32 %v2722, %v2904
  %v2906 = vpop.f32.mrb[0].mxu0
  %2907 = vmatprep.mubr.bf16.mxu0 0
  %2908 = vmatmul.mubr.bf16.gmra.mrb[0].mxu0 %v2708
  %v2909 = vpop.f32.mrb[0].mxu0
  %v2910 = vadd.f32 %v2722, %v2909
  %v2911 = vpop.f32.mrb[0].mxu0
  %v2912 = vpop.f32.mrb[0].mxu0
  %v2913 = vadd.f32 %v2722, %v2912
  %v2914 = vpop.f32.mrb[0].mxu0
  %2915 = vmatprep.mubr.bf16.mxu0 0
  %2916 = vmatmul.mubr.bf16.gmra.mrb[0].mxu0 %v2709
  %v2917 = vpop.f32.mrb[0].mxu0
  %v2918 = vadd.f32 %v2722, %v2917
  %v2919 = vpop.f32.mrb[0].mxu0
  %v2920 = vpop.f32.mrb[0].mxu0
  %v2921 = vadd.f32 %v2722, %v2920
  %v2922 = vpop.f32.mrb[0].mxu0
  %2923 = vmatprep.mubr.bf16.mxu0 0
  %2924 = vmatmul.mubr.bf16.gmra.mrb[0].mxu0 %v2710
  %v2925 = vpop.f32.mrb[0].mxu0
  %v2926 = vadd.f32 %v2722, %v2925
  %v2927 = vpop.f32.mrb[0].mxu0
  %v2928 = vpop.f32.mrb[0].mxu0
  %v2929 = vadd.f32 %v2722, %v2928
  %v2930 = vpop.f32.mrb[0].mxu0
  %2931 = vmatprep.mubr.bf16.mxu0 0
  %2932 = vmatmul.mubr.bf16.gmra.mrb[0].mxu0 %v2711
  %v2933 = vpop.f32.mrb[0].mxu0
  %v2934 = vadd.f32 %v2722, %v2933
  %v2935 = vpop.f32.mrb[0].mxu0
  %v2936 = vpop.f32.mrb[0].mxu0
  %v2937 = vadd.f32 %v2722, %v2936
  %v2938 = vpop.f32.mrb[0].mxu0
  %2939 = vmatprep.mubr.bf16.mxu0 0
  %2940 = vmatmul.mubr.bf16.gmra.mrb[0].mxu0 %v2712
  %v2941 = vpop.f32.mrb[0].mxu0
  %v2942 = vadd.f32 %v2722, %v2941
  %v2943 = vpop.f32.mrb[0].mxu0
  %v2944 = vpop.f32.mrb[0].mxu0
  %v2945 = vadd.f32 %v2722, %v2944
  %v2946 = vpop.f32.mrb[0].mxu0
  %2947 = vmatprep.mubr.bf16.mxu0 0
  %2948 = vmatmul.mubr.bf16.gmra.mrb[0].mxu0 %v2713
  %v2949 = vpop.f32.mrb[0].mxu0
  %v2950 = vadd.f32 %v2722, %v2949
  %v2951 = vpop.f32.mrb[0].mxu0
  %v2952 = vpop.f32.mrb[0].mxu0
  %v2953 = vadd.f32 %v2722, %v2952
  %v2954 = vpop.f32.mrb[0].mxu0
  %2955 = vmatprep.mubr.bf16.mxu0 0
  %2956 = vmatmul.mubr.bf16.gmra.mrb[0].mxu0 %v2714
  %v2957 = vpop.f32.mrb[0].mxu0
  %v2958 = vadd.f32 %v2722, %v2957
  %v2959 = vpop.f32.mrb[0].mxu0
  %v2960 = vpop.f32.mrb[0].mxu0
  %v2961 = vadd.f32 %v2722, %v2960
  %v2962 = vpop.f32.mrb[0].mxu0
  %2963 = vmatprep.mubr.bf16.mxu0 0
  %2964 = vmatmul.mubr.bf16.gmra.mrb[0].mxu0 %v2715
  %v2965 = vpop.f32.mrb[0].mxu0
  %v2966 = vadd.f32 %v2722, %v2965
  %v2967 = vpop.f32.mrb[0].mxu0
  %v2968 = vpop.f32.mrb[0].mxu0
  %v2969 = vadd.f32 %v2722, %v2968
  %v2970 = vpop.f32.mrb[0].mxu0
  %2971 = vmatprep.mubr.bf16.mxu0 0
  %2972 = vmatmul.mubr.bf16.gmra.mrb[0].mxu0 %v2716
  %v2973 = vpop.f32.mrb[0].mxu0
  %v2974 = vadd.f32 %v2722, %v2973
  %v2975 = vpop.f32.mrb[0].mxu0
  %v2976 = vpop.f32.mrb[0].mxu0
  %v2977 = vadd.f32 %v2722, %v2976
  %v2978 = vpop.f32.mrb[0].mxu0
  %2979 = vmatprep.mubr.bf16.mxu0 0
  %2980 = vmatmul.mubr.bf16.gmra.mrb[0].mxu0 %v2717
  %v2981 = vpop.f32.mrb[0].mxu0
  %v2982 = vadd.f32 %v2722, %v2981
  %v2983 = vpop.f32.mrb[0].mxu0
  %v2984 = vpop.f32.mrb[0].mxu0
  %v2985 = vadd.f32 %v2722, %v2984
  %v2986 = vpop.f32.mrb[0].mxu0
  %2987 = vmatprep.mubr.bf16.mxu0 0
  %2988 = vmatmul.mubr.bf16.gmra.mrb[0].mxu0 %v2718
  %v2989 = vpop.f32.mrb[0].mxu0
  %v2990 = vadd.f32 %v2722, %v2989
  %v2991 = vpop.f32.mrb[0].mxu0
  %v2992 = vpop.f32.mrb[0].mxu0
  %v2993 = vadd.f32 %v2722, %v2992
  %v2994 = vpop.f32.mrb[0].mxu0
  %2995 = vdwg.mxu0
  %v2996 = vmax.f32 %v2806, 0.0
  %v2997 = vmax.f32 %v2809, 0.0
  %v2998 = vmax.f32 %v2814, 0.0
  %v2999 = vmax.f32 %v2817, 0.0
  %v3000 = vmax.f32 %v2822, 0.0
  %v3001 = vmax.f32 %v2825, 0.0
  %v3002 = vmax.f32 %v2830, 0.0
  %v3003 = vmax.f32 %v2833, 0.0
  %v3004 = vmax.f32 %v2838, 0.0
  %v3005 = vmax.f32 %v2841, 0.0
  %v3006 = vmax.f32 %v2846, 0.0
  %v3007 = vmax.f32 %v2849, 0.0
  %v3008 = vmax.f32 %v2854, 0.0
  %v3009 = vmax.f32 %v2857, 0.0
  %v3010 = vmax.f32 %v2862, 0.0
  %v3011 = vmax.f32 %v2865, 0.0
  %v3012 = vmax.f32 %v2870, 0.0
  %v3013 = vmax.f32 %v2873, 0.0
  %v3014 = vmax.f32 %v2878, 0.0
  %v3015 = vmax.f32 %v2881, 0.0
  %v3016 = vmax.f32 %v2886, 0.0
  %v3017 = vmax.f32 %v2889, 0.0
  %v3018 = vmax.f32 %v2894, 0.0
  %v3019 = vmax.f32 %v2897, 0.0
  %v3020 = vmax.f32 %v2902, 0.0
  %v3021 = vmax.f32 %v2905, 0.0
  %v3022 = vmax.f32 %v2910, 0.0
  %v3023 = vmax.f32 %v2913, 0.0
  %v3024 = vmax.f32 %v2918, 0.0
  %v3025 = vmax.f32 %v2921, 0.0
  %v3026 = vmax.f32 %v2926, 0.0
  %v3027 = vmax.f32 %v2929, 0.0
  %v3028 = vmax.f32 %v2934, 0.0
  %v3029 = vmax.f32 %v2937, 0.0
  %v3030 = vmax.f32 %v2942, 0.0
  %v3031 = vmax.f32 %v2945, 0.0
  %v3032 = vmax.f32 %v2950, 0.0
  %v3033 = vmax.f32 %v2953, 0.0
  %v3034 = vmax.f32 %v2958, 0.0
  %v3035 = vmax.f32 %v2961, 0.0
  %v3036 = vmax.f32 %v2966, 0.0
  %v3037 = vmax.f32 %v2969, 0.0
  %v3038 = vmax.f32 %v2974, 0.0
  %v3039 = vmax.f32 %v2977, 0.0
  %v3040 = vmax.f32 %v2982, 0.0
  %v3041 = vmax.f32 %v2985, 0.0
  %v3042 = vmax.f32 %v2990, 0.0
  %v3043 = vmax.f32 %v2993, 0.0
  %s3044 = scalar_lea.vmem %s2, 384
  %v3045 = vld [vmem:[%s3044] sm:$0xf]
  %v3046 = vld [vmem:[%s3044 + $0x4] sm:$0xf]
  %v3047 = vld [vmem:[%s3044 + $0x8] sm:$0xf]
  %v3048 = vld [vmem:[%s3044 + $0xc] sm:$0xf]
  %v3049 = vld [vmem:[%s3044 + $0x10] sm:$0xf]
  %v3050 = vld [vmem:[%s3044 + $0x14] sm:$0xf]
  %v3051 = vld [vmem:[%s3044 + $0x18] sm:$0xf]
  %v3052 = vld [vmem:[%s3044 + $0x1c] sm:$0xf]
  %v3053 = vld [vmem:[%s3044 + $0x20] sm:$0xf]
  %v3054 = vld [vmem:[%s3044 + $0x24] sm:$0xf]
  %v3055 = vld [vmem:[%s3044 + $0x28] sm:$0xf]
  %v3056 = vld [vmem:[%s3044 + $0x2c] sm:$0xf]
  %v3057 = vld [vmem:[%s3044 + $0x30] sm:$0xf]
  %v3058 = vld [vmem:[%s3044 + $0x34] sm:$0xf]
  %v3059 = vld [vmem:[%s3044 + $0x38] sm:$0xf]
  %v3060 = vld [vmem:[%s3044 + $0x3c] sm:$0xf]
  %v3061 = vpack.c.bf16 %v2997, %v2996
  %v3062 = vpack.c.bf16 %v2999, %v2998
  %v3063 = vpack.c.bf16 %v3001, %v3000
  %v3064 = vpack.c.bf16 %v3003, %v3002
  %v3065 = vpack.c.bf16 %v3005, %v3004
  %v3066 = vpack.c.bf16 %v3007, %v3006
  %v3067 = vpack.c.bf16 %v3009, %v3008
  %v3068 = vpack.c.bf16 %v3011, %v3010
  %v3069 = vpack.c.bf16 %v3013, %v3012
  %v3070 = vpack.c.bf16 %v3015, %v3014
  %v3071 = vpack.c.bf16 %v3017, %v3016
  %v3072 = vpack.c.bf16 %v3019, %v3018
  %v3073 = vpack.c.bf16 %v3021, %v3020
  %v3074 = vpack.c.bf16 %v3023, %v3022
  %v3075 = vpack.c.bf16 %v3025, %v3024
  %v3076 = vpack.c.bf16 %v3027, %v3026
  %v3077 = vpack.c.bf16 %v3029, %v3028
  %v3078 = vpack.c.bf16 %v3031, %v3030
  %v3079 = vpack.c.bf16 %v3033, %v3032
  %v3080 = vpack.c.bf16 %v3035, %v3034
  %v3081 = vpack.c.bf16 %v3037, %v3036
  %v3082 = vpack.c.bf16 %v3039, %v3038
  %v3083 = vpack.c.bf16 %v3041, %v3040
  %v3084 = vpack.c.bf16 %v3043, %v3042
  %v3085 = vlaneseq
  %v3086 = vshrl.u32 %v3085, 7
  %v3087 = vsub.s32 7, %v3086
  %v3088 = vrot.slane %v72, %v3087
  %v3105 = vunpack.c.l.b16 %v3045
  %v3106 = vunpack.c.l.b16 %v3046
  %v3107 = vunpack.c.l.b16 %v3047
  %v3108 = vunpack.c.l.b16 %v3048
  %v3109 = vunpack.c.l.b16 %v3049
  %v3110 = vunpack.c.l.b16 %v3050
  %v3111 = vunpack.c.l.b16 %v3051
  %v3112 = vunpack.c.l.b16 %v3052
  %v3113 = vunpack.c.l.b16 %v3053
  %v3114 = vunpack.c.l.b16 %v3054
  %v3115 = vunpack.c.l.b16 %v3055
  %v3116 = vunpack.c.l.b16 %v3056
  %v3117 = vunpack.c.l.b16 %v3057
  %v3118 = vunpack.c.l.b16 %v3058
  %v3119 = vunpack.c.l.b16 %v3059
  %v3120 = vunpack.c.l.b16 %v3060
  %v3121 = vpack.c.b16 %v3106, %v3105
  %v3122 = vpack.c.b16 %v3108, %v3107
  %v3123 = vpack.c.b16 %v3110, %v3109
  %v3124 = vpack.c.b16 %v3112, %v3111
  %v3125 = vpack.c.b16 %v3114, %v3113
  %v3126 = vpack.c.b16 %v3116, %v3115
  %v3127 = vpack.c.b16 %v3118, %v3117
  %v3128 = vpack.c.b16 %v3120, %v3119
  %3137 = vmatprep.subr.bf16.mxu0 0
  %3138 = vmatpush1.bf16.msra.mxu0 %v3121
  %3139 = vmatprep.subr.bf16.mxu0 0
  %3140 = vmatpush1.bf16.msra.mxu0 %v3122
  %3141 = vmatprep.subr.bf16.mxu0 0
  %3142 = vmatpush1.bf16.msra.mxu0 %v3123
  %3143 = vmatprep.subr.bf16.mxu0 0
  %3144 = vmatpush1.bf16.msra.mxu0 %v3124
  %3145 = vmatprep.subr.bf16.mxu0 0
  %3146 = vmatpush1.bf16.msra.mxu0 %v3125
  %3147 = vmatprep.subr.bf16.mxu0 0
  %3148 = vmatpush1.bf16.msra.mxu0 %v3126
  %3149 = vmatprep.subr.bf16.mxu0 0
  %3150 = vmatpush1.bf16.msra.mxu0 %v3127
  %3151 = vmatprep.subr.bf16.mxu0 0
  %3152 = vmatpush1.bf16.msra.mxu0 %v3128
  %3153 = vmatprep.subr.bf16.mxu0 0
  %3154 = vmatpush1.bf16.msra.mxu0 0
  %3155 = vmatprep.subr.bf16.mxu0 0
  %3156 = vmatpush1.bf16.msra.mxu0 0
  %3157 = vmatprep.subr.bf16.mxu0 0
  %3158 = vmatpush1.bf16.msra.mxu0 0
  %3159 = vmatprep.subr.bf16.mxu0 0
  %3160 = vmatpush1.bf16.msra.mxu0 0
  %3161 = vmatprep.subr.bf16.mxu0 0
  %3162 = vmatpush1.bf16.msra.mxu0 0
  %3163 = vmatprep.subr.bf16.mxu0 0
  %3164 = vmatpush1.bf16.msra.mxu0 0
  %3165 = vmatprep.subr.bf16.mxu0 0
  %3166 = vmatpush1.bf16.msra.mxu0 0
  %3167 = vmatprep.subr.bf16.mxu0 0
  %3168 = vmatpush1.bf16.msra.mxu0 0
  %3169 = vmatprep.mubr.bf16.mxu0 0
  %3170 = vmatmul.mubr.bf16.gmra.mrb[0].mxu0 %v3061
  %v3171 = vpop.f32.mrb[0].mxu0
  %v3172 = vadd.f32 %v3088, %v3171
  %v3173 = vpop.f32.mrb[0].mxu0
  %v3174 = vpop.f32.mrb[0].mxu0
  %v3175 = vadd.f32 %v3088, %v3174
  %v3176 = vpop.f32.mrb[0].mxu0
  %3177 = vmatprep.mubr.bf16.mxu0 0
  %3178 = vmatmul.mubr.bf16.gmra.mrb[0].mxu0 %v3062
  %v3179 = vpop.f32.mrb[0].mxu0
  %v3180 = vadd.f32 %v3088, %v3179
  %v3181 = vpop.f32.mrb[0].mxu0
  %v3182 = vpop.f32.mrb[0].mxu0
  %v3183 = vadd.f32 %v3088, %v3182
  %v3184 = vpop.f32.mrb[0].mxu0
  %3185 = vmatprep.mubr.bf16.mxu0 0
  %3186 = vmatmul.mubr.bf16.gmra.mrb[0].mxu0 %v3063
  %v3187 = vpop.f32.mrb[0].mxu0
  %v3188 = vadd.f32 %v3088, %v3187
  %v3189 = vpop.f32.mrb[0].mxu0
  %v3190 = vpop.f32.mrb[0].mxu0
  %v3191 = vadd.f32 %v3088, %v3190
  %v3192 = vpop.f32.mrb[0].mxu0
  %3193 = vmatprep.mubr.bf16.mxu0 0
  %3194 = vmatmul.mubr.bf16.gmra.mrb[0].mxu0 %v3064
  %v3195 = vpop.f32.mrb[0].mxu0
  %v3196 = vadd.f32 %v3088, %v3195
  %v3197 = vpop.f32.mrb[0].mxu0
  %v3198 = vpop.f32.mrb[0].mxu0
  %v3199 = vadd.f32 %v3088, %v3198
  %v3200 = vpop.f32.mrb[0].mxu0
  %3201 = vmatprep.mubr.bf16.mxu0 0
  %3202 = vmatmul.mubr.bf16.gmra.mrb[0].mxu0 %v3065
  %v3203 = vpop.f32.mrb[0].mxu0
  %v3204 = vadd.f32 %v3088, %v3203
  %v3205 = vpop.f32.mrb[0].mxu0
  %v3206 = vpop.f32.mrb[0].mxu0
  %v3207 = vadd.f32 %v3088, %v3206
  %v3208 = vpop.f32.mrb[0].mxu0
  %3209 = vmatprep.mubr.bf16.mxu0 0
  %3210 = vmatmul.mubr.bf16.gmra.mrb[0].mxu0 %v3066
  %v3211 = vpop.f32.mrb[0].mxu0
  %v3212 = vadd.f32 %v3088, %v3211
  %v3213 = vpop.f32.mrb[0].mxu0
  %v3214 = vpop.f32.mrb[0].mxu0
  %v3215 = vadd.f32 %v3088, %v3214
  %v3216 = vpop.f32.mrb[0].mxu0
  %3217 = vmatprep.mubr.bf16.mxu0 0
  %3218 = vmatmul.mubr.bf16.gmra.mrb[0].mxu0 %v3067
  %v3219 = vpop.f32.mrb[0].mxu0
  %v3220 = vadd.f32 %v3088, %v3219
  %v3221 = vpop.f32.mrb[0].mxu0
  %v3222 = vpop.f32.mrb[0].mxu0
  %v3223 = vadd.f32 %v3088, %v3222
  %v3224 = vpop.f32.mrb[0].mxu0
  %3225 = vmatprep.mubr.bf16.mxu0 0
  %3226 = vmatmul.mubr.bf16.gmra.mrb[0].mxu0 %v3068
  %v3227 = vpop.f32.mrb[0].mxu0
  %v3228 = vadd.f32 %v3088, %v3227
  %v3229 = vpop.f32.mrb[0].mxu0
  %v3230 = vpop.f32.mrb[0].mxu0
  %v3231 = vadd.f32 %v3088, %v3230
  %v3232 = vpop.f32.mrb[0].mxu0
  %3233 = vmatprep.mubr.bf16.mxu0 0
  %3234 = vmatmul.mubr.bf16.gmra.mrb[0].mxu0 %v3069
  %v3235 = vpop.f32.mrb[0].mxu0
  %v3236 = vadd.f32 %v3088, %v3235
  %v3237 = vpop.f32.mrb[0].mxu0
  %v3238 = vpop.f32.mrb[0].mxu0
  %v3239 = vadd.f32 %v3088, %v3238
  %v3240 = vpop.f32.mrb[0].mxu0
  %3241 = vmatprep.mubr.bf16.mxu0 0
  %3242 = vmatmul.mubr.bf16.gmra.mrb[0].mxu0 %v3070
  %v3243 = vpop.f32.mrb[0].mxu0
  %v3244 = vadd.f32 %v3088, %v3243
  %v3245 = vpop.f32.mrb[0].mxu0
  %v3246 = vpop.f32.mrb[0].mxu0
  %v3247 = vadd.f32 %v3088, %v3246
  %v3248 = vpop.f32.mrb[0].mxu0
  %3249 = vmatprep.mubr.bf16.mxu0 0
  %3250 = vmatmul.mubr.bf16.gmra.mrb[0].mxu0 %v3071
  %v3251 = vpop.f32.mrb[0].mxu0
  %v3252 = vadd.f32 %v3088, %v3251
  %v3253 = vpop.f32.mrb[0].mxu0
  %v3254 = vpop.f32.mrb[0].mxu0
  %v3255 = vadd.f32 %v3088, %v3254
  %v3256 = vpop.f32.mrb[0].mxu0
  %3257 = vmatprep.mubr.bf16.mxu0 0
  %3258 = vmatmul.mubr.bf16.gmra.mrb[0].mxu0 %v3072
  %v3259 = vpop.f32.mrb[0].mxu0
  %v3260 = vadd.f32 %v3088, %v3259
  %v3261 = vpop.f32.mrb[0].mxu0
  %v3262 = vpop.f32.mrb[0].mxu0
  %v3263 = vadd.f32 %v3088, %v3262
  %v3264 = vpop.f32.mrb[0].mxu0
  %3265 = vmatprep.mubr.bf16.mxu0 0
  %3266 = vmatmul.mubr.bf16.gmra.mrb[0].mxu0 %v3073
  %v3267 = vpop.f32.mrb[0].mxu0
  %v3268 = vadd.f32 %v3088, %v3267
  %v3269 = vpop.f32.mrb[0].mxu0
  %v3270 = vpop.f32.mrb[0].mxu0
  %v3271 = vadd.f32 %v3088, %v3270
  %v3272 = vpop.f32.mrb[0].mxu0
  %3273 = vmatprep.mubr.bf16.mxu0 0
  %3274 = vmatmul.mubr.bf16.gmra.mrb[0].mxu0 %v3074
  %v3275 = vpop.f32.mrb[0].mxu0
  %v3276 = vadd.f32 %v3088, %v3275
  %v3277 = vpop.f32.mrb[0].mxu0
  %v3278 = vpop.f32.mrb[0].mxu0
  %v3279 = vadd.f32 %v3088, %v3278
  %v3280 = vpop.f32.mrb[0].mxu0
  %3281 = vmatprep.mubr.bf16.mxu0 0
  %3282 = vmatmul.mubr.bf16.gmra.mrb[0].mxu0 %v3075
  %v3283 = vpop.f32.mrb[0].mxu0
  %v3284 = vadd.f32 %v3088, %v3283
  %v3285 = vpop.f32.mrb[0].mxu0
  %v3286 = vpop.f32.mrb[0].mxu0
  %v3287 = vadd.f32 %v3088, %v3286
  %v3288 = vpop.f32.mrb[0].mxu0
  %3289 = vmatprep.mubr.bf16.mxu0 0
  %3290 = vmatmul.mubr.bf16.gmra.mrb[0].mxu0 %v3076
  %v3291 = vpop.f32.mrb[0].mxu0
  %v3292 = vadd.f32 %v3088, %v3291
  %v3293 = vpop.f32.mrb[0].mxu0
  %v3294 = vpop.f32.mrb[0].mxu0
  %v3295 = vadd.f32 %v3088, %v3294
  %v3296 = vpop.f32.mrb[0].mxu0
  %3297 = vmatprep.mubr.bf16.mxu0 0
  %3298 = vmatmul.mubr.bf16.gmra.mrb[0].mxu0 %v3077
  %v3299 = vpop.f32.mrb[0].mxu0
  %v3300 = vadd.f32 %v3088, %v3299
  %v3301 = vpop.f32.mrb[0].mxu0
  %v3302 = vpop.f32.mrb[0].mxu0
  %v3303 = vadd.f32 %v3088, %v3302
  %v3304 = vpop.f32.mrb[0].mxu0
  %3305 = vmatprep.mubr.bf16.mxu0 0
  %3306 = vmatmul.mubr.bf16.gmra.mrb[0].mxu0 %v3078
  %v3307 = vpop.f32.mrb[0].mxu0
  %v3308 = vadd.f32 %v3088, %v3307
  %v3309 = vpop.f32.mrb[0].mxu0
  %v3310 = vpop.f32.mrb[0].mxu0
  %v3311 = vadd.f32 %v3088, %v3310
  %v3312 = vpop.f32.mrb[0].mxu0
  %3313 = vmatprep.mubr.bf16.mxu0 0
  %3314 = vmatmul.mubr.bf16.gmra.mrb[0].mxu0 %v3079
  %v3315 = vpop.f32.mrb[0].mxu0
  %v3316 = vadd.f32 %v3088, %v3315
  %v3317 = vpop.f32.mrb[0].mxu0
  %v3318 = vpop.f32.mrb[0].mxu0
  %v3319 = vadd.f32 %v3088, %v3318
  %v3320 = vpop.f32.mrb[0].mxu0
  %3321 = vmatprep.mubr.bf16.mxu0 0
  %3322 = vmatmul.mubr.bf16.gmra.mrb[0].mxu0 %v3080
  %v3323 = vpop.f32.mrb[0].mxu0
  %v3324 = vadd.f32 %v3088, %v3323
  %v3325 = vpop.f32.mrb[0].mxu0
  %v3326 = vpop.f32.mrb[0].mxu0
  %v3327 = vadd.f32 %v3088, %v3326
  %v3328 = vpop.f32.mrb[0].mxu0
  %3329 = vmatprep.mubr.bf16.mxu0 0
  %3330 = vmatmul.mubr.bf16.gmra.mrb[0].mxu0 %v3081
  %v3331 = vpop.f32.mrb[0].mxu0
  %v3332 = vadd.f32 %v3088, %v3331
  %v3333 = vpop.f32.mrb[0].mxu0
  %v3334 = vpop.f32.mrb[0].mxu0
  %v3335 = vadd.f32 %v3088, %v3334
  %v3336 = vpop.f32.mrb[0].mxu0
  %3337 = vmatprep.mubr.bf16.mxu0 0
  %3338 = vmatmul.mubr.bf16.gmra.mrb[0].mxu0 %v3082
  %v3339 = vpop.f32.mrb[0].mxu0
  %v3340 = vadd.f32 %v3088, %v3339
  %v3341 = vpop.f32.mrb[0].mxu0
  %v3342 = vpop.f32.mrb[0].mxu0
  %v3343 = vadd.f32 %v3088, %v3342
  %v3344 = vpop.f32.mrb[0].mxu0
  %3345 = vmatprep.mubr.bf16.mxu0 0
  %3346 = vmatmul.mubr.bf16.gmra.mrb[0].mxu0 %v3083
  %v3347 = vpop.f32.mrb[0].mxu0
  %v3348 = vadd.f32 %v3088, %v3347
  %v3349 = vpop.f32.mrb[0].mxu0
  %v3350 = vpop.f32.mrb[0].mxu0
  %v3351 = vadd.f32 %v3088, %v3350
  %v3352 = vpop.f32.mrb[0].mxu0
  %3353 = vmatprep.mubr.bf16.mxu0 0
  %3354 = vmatmul.mubr.bf16.gmra.mrb[0].mxu0 %v3084
  %v3355 = vpop.f32.mrb[0].mxu0
  %v3356 = vadd.f32 %v3088, %v3355
  %v3357 = vpop.f32.mrb[0].mxu0
  %v3358 = vpop.f32.mrb[0].mxu0
  %v3359 = vadd.f32 %v3088, %v3358
  %v3360 = vpop.f32.mrb[0].mxu0
  %3361 = vdwg.mxu0
  %v3362 = vmax.f32 %v3172, 0.0
  %v3363 = vmax.f32 %v3175, 0.0
  %v3364 = vmax.f32 %v3180, 0.0
  %v3365 = vmax.f32 %v3183, 0.0
  %v3366 = vmax.f32 %v3188, 0.0
  %v3367 = vmax.f32 %v3191, 0.0
  %v3368 = vmax.f32 %v3196, 0.0
  %v3369 = vmax.f32 %v3199, 0.0
  %v3370 = vmax.f32 %v3204, 0.0
  %v3371 = vmax.f32 %v3207, 0.0
  %v3372 = vmax.f32 %v3212, 0.0
  %v3373 = vmax.f32 %v3215, 0.0
  %v3374 = vmax.f32 %v3220, 0.0
  %v3375 = vmax.f32 %v3223, 0.0
  %v3376 = vmax.f32 %v3228, 0.0
  %v3377 = vmax.f32 %v3231, 0.0
  %v3378 = vmax.f32 %v3236, 0.0
  %v3379 = vmax.f32 %v3239, 0.0
  %v3380 = vmax.f32 %v3244, 0.0
  %v3381 = vmax.f32 %v3247, 0.0
  %v3382 = vmax.f32 %v3252, 0.0
  %v3383 = vmax.f32 %v3255, 0.0
  %v3384 = vmax.f32 %v3260, 0.0
  %v3385 = vmax.f32 %v3263, 0.0
  %v3386 = vmax.f32 %v3268, 0.0
  %v3387 = vmax.f32 %v3271, 0.0
  %v3388 = vmax.f32 %v3276, 0.0
  %v3389 = vmax.f32 %v3279, 0.0
  %v3390 = vmax.f32 %v3284, 0.0
  %v3391 = vmax.f32 %v3287, 0.0
  %v3392 = vmax.f32 %v3292, 0.0
  %v3393 = vmax.f32 %v3295, 0.0
  %v3394 = vmax.f32 %v3300, 0.0
  %v3395 = vmax.f32 %v3303, 0.0
  %v3396 = vmax.f32 %v3308, 0.0
  %v3397 = vmax.f32 %v3311, 0.0
  %v3398 = vmax.f32 %v3316, 0.0
  %v3399 = vmax.f32 %v3319, 0.0
  %v3400 = vmax.f32 %v3324, 0.0
  %v3401 = vmax.f32 %v3327, 0.0
  %v3402 = vmax.f32 %v3332, 0.0
  %v3403 = vmax.f32 %v3335, 0.0
  %v3404 = vmax.f32 %v3340, 0.0
  %v3405 = vmax.f32 %v3343, 0.0
  %v3406 = vmax.f32 %v3348, 0.0
  %v3407 = vmax.f32 %v3351, 0.0
  %v3408 = vmax.f32 %v3356, 0.0
  %v3409 = vmax.f32 %v3359, 0.0
  %v3410 = vld [vmem:[%s4] sm:$0x1]
  %v3411 = vpack.c.bf16 %v3363, %v3362
  %v3412 = vpack.c.bf16 %v3365, %v3364
  %v3413 = vpack.c.bf16 %v3367, %v3366
  %v3414 = vpack.c.bf16 %v3369, %v3368
  %v3415 = vpack.c.bf16 %v3371, %v3370
  %v3416 = vpack.c.bf16 %v3373, %v3372
  %v3417 = vpack.c.bf16 %v3375, %v3374
  %v3418 = vpack.c.bf16 %v3377, %v3376
  %v3419 = vpack.c.bf16 %v3379, %v3378
  %v3420 = vpack.c.bf16 %v3381, %v3380
  %v3421 = vpack.c.bf16 %v3383, %v3382
  %v3422 = vpack.c.bf16 %v3385, %v3384
  %v3423 = vpack.c.bf16 %v3387, %v3386
  %v3424 = vpack.c.bf16 %v3389, %v3388
  %v3425 = vpack.c.bf16 %v3391, %v3390
  %v3426 = vpack.c.bf16 %v3393, %v3392
  %v3427 = vpack.c.bf16 %v3395, %v3394
  %v3428 = vpack.c.bf16 %v3397, %v3396
  %v3429 = vpack.c.bf16 %v3399, %v3398
  %v3430 = vpack.c.bf16 %v3401, %v3400
  %v3431 = vpack.c.bf16 %v3403, %v3402
  %v3432 = vpack.c.bf16 %v3405, %v3404
  %v3433 = vpack.c.bf16 %v3407, %v3406
  %v3434 = vpack.c.bf16 %v3409, %v3408
  %v3435 = vld [vmem:[%s5] sm:$0x3]
  %3437 = vset.pattern.permute.xlu0 0
  %3438 = vperm.xlu0 %3437, %v3435
  %v3439 = vpop.permute.xlu0 %3438
  %3441 = vmatprep.subr.bf16.mxu0 0
  %3442 = vmatpush1.bf16.xpose.msra.mxu0 %v3411
  %3443 = vmatprep.subr.bf16.mxu0 0
  %3444 = vmatpush1.bf16.xpose.msra.mxu0 %v3412
  %3445 = vmatprep.subr.bf16.mxu0 0
  %3446 = vmatpush1.bf16.xpose.msra.mxu0 %v3413
  %3447 = vmatprep.subr.bf16.mxu0 0
  %3448 = vmatpush1.bf16.xpose.msra.mxu0 %v3414
  %3449 = vmatprep.subr.bf16.mxu0 0
  %3450 = vmatpush1.bf16.xpose.msra.mxu0 %v3415
  %3451 = vmatprep.subr.bf16.mxu0 0
  %3452 = vmatpush1.bf16.xpose.msra.mxu0 %v3416
  %3453 = vmatprep.subr.bf16.mxu0 0
  %3454 = vmatpush1.bf16.xpose.msra.mxu0 %v3417
  %3455 = vmatprep.subr.bf16.mxu0 0
  %3456 = vmatpush1.bf16.xpose.msra.mxu0 %v3418
  %3457 = vmatprep.subr.bf16.mxu0 0
  %3458 = vmatpush1.bf16.xpose.msra.mxu0 %v3419
  %3459 = vmatprep.subr.bf16.mxu0 0
  %3460 = vmatpush1.bf16.xpose.msra.mxu0 %v3420
  %3461 = vmatprep.subr.bf16.mxu0 0
  %3462 = vmatpush1.bf16.xpose.msra.mxu0 %v3421
  %3463 = vmatprep.subr.bf16.mxu0 0
  %3464 = vmatpush1.bf16.xpose.msra.mxu0 %v3422
  %3465 = vmatprep.subr.bf16.mxu0 0
  %3466 = vmatpush1.bf16.xpose.msra.mxu0 %v3423
  %3467 = vmatprep.subr.bf16.mxu0 0
  %3468 = vmatpush1.bf16.xpose.msra.mxu0 %v3424
  %3469 = vmatprep.subr.bf16.mxu0 0
  %3470 = vmatpush1.bf16.xpose.msra.mxu0 %v3425
  %3471 = vmatprep.subr.bf16.mxu0 0
  %3472 = vmatpush1.bf16.xpose.msra.mxu0 %v3426
  %3473 = vmatprep.mubr.bf16.mxu0 0
  %3474 = vmatmul.mubr.bf16.gmra.mrb[0].mxu0 %v3410
  %v3475 = vpop.f32.mrb[0].mxu0
  %v3476 = vadd.f32 %v3439, %v3475
  %v3477 = vpop.f32.mrb[0].mxu0
  %v3478 = vadd.f32 %v3439, %v3477
  %v3479 = vpop.f32.mrb[0].mxu0
  %v3480 = vpop.f32.mrb[0].mxu0
  %3481 = vdwg.mxu0
  %3482 = vmatprep.subr.bf16.mxu0 0
  %3483 = vmatpush1.bf16.xpose.msra.mxu0 %v3427
  %3484 = vmatprep.subr.bf16.mxu0 0
  %3485 = vmatpush1.bf16.xpose.msra.mxu0 %v3428
  %3486 = vmatprep.subr.bf16.mxu0 0
  %3487 = vmatpush1.bf16.xpose.msra.mxu0 %v3429
  %3488 = vmatprep.subr.bf16.mxu0 0
  %3489 = vmatpush1.bf16.xpose.msra.mxu0 %v3430
  %3490 = vmatprep.subr.bf16.mxu0 0
  %3491 = vmatpush1.bf16.xpose.msra.mxu0 %v3431
  %3492 = vmatprep.subr.bf16.mxu0 0
  %3493 = vmatpush1.bf16.xpose.msra.mxu0 %v3432
  %3494 = vmatprep.subr.bf16.mxu0 0
  %3495 = vmatpush1.bf16.xpose.msra.mxu0 %v3433
  %3496 = vmatprep.subr.bf16.mxu0 0
  %3497 = vmatpush1.bf16.xpose.msra.mxu0 %v3434
  %3498 = vmatprep.subr.bf16.mxu0 0
  %3499 = vmatpush1.bf16.xpose.msra.mxu0 0
  %3500 = vmatprep.subr.bf16.mxu0 0
  %3501 = vmatpush1.bf16.xpose.msra.mxu0 0
  %3502 = vmatprep.subr.bf16.mxu0 0
  %3503 = vmatpush1.bf16.xpose.msra.mxu0 0
  %3504 = vmatprep.subr.bf16.mxu0 0
  %3505 = vmatpush1.bf16.xpose.msra.mxu0 0
  %3506 = vmatprep.subr.bf16.mxu0 0
  %3507 = vmatpush1.bf16.xpose.msra.mxu0 0
  %3508 = vmatprep.subr.bf16.mxu0 0
  %3509 = vmatpush1.bf16.xpose.msra.mxu0 0
  %3510 = vmatprep.subr.bf16.mxu0 0
  %3511 = vmatpush1.bf16.xpose.msra.mxu0 0
  %3512 = vmatprep.subr.bf16.mxu0 0
  %3513 = vmatpush1.bf16.xpose.msra.mxu0 0
  %3514 = vmatprep.mubr.bf16.mxu0 0
  %3515 = vmatmul.mubr.bf16.gmra.mrb[0].mxu0 %v3410
  %v3516 = vpop.f32.mrb[0].mxu0
  %v3517 = vadd.f32 %v3439, %v3516
  %v3518 = vpop.f32.mrb[0].mxu0
  %v3519 = vpop.f32.mrb[0].mxu0
  %v3520 = vpop.f32.mrb[0].mxu0
  %3521 = vdwg.mxu0
  %v3525 = vcombine.low %v3476, %v3478
  %v3527 = vunpack.c.l.s4 1983009808
  %v3528 = vunpack.c.0.s8 %v3527
  %v3529 = vlaneseq
  %v3530 = vshrl.u32 %v3529, 7
  %v3531 = vsub.s32 %v3528, %v3530
  %v3532 = vrot.slane %v3525, %v3531
  %v3534 = vunpack.c.l.s4 1983009808
  %v3535 = vunpack.c.0.s8 %v3534
  %v3536 = vlaneseq
  %v3537 = vshrl.u32 %v3536, 7
  %v3538 = vsub.s32 %v3535, %v3537
  %v3539 = vrot.slane %v3517, %v3538
  %v3540 = vcombine.low %v3532, %v3539
  %3542 = vst [vmem:[%s6] sm:$0x3f] %v3540
  // Predicated region
  $region26: #{deformation_mlp.1} parent=0 // pred_check
    _
  $region27: #{deformation_mlp.1} parent=0 // pred_check_branch
    %3544 = sbr.rel (0) target = $region29
  $region28: #{deformation_mlp.1} parent=0 // pred_region
    _
  $region29: #{deformation_mlp.1} parent=0 // pred_fallthru
    _
  // Predicated region
  $region30: #{deformation_mlp.1} parent=0 // pred_check
    _
  $region31: #{deformation_mlp.1} parent=0 // pred_check_branch
    %3546 = sbr.rel (0) target = $region33
  $region32: #{deformation_mlp.1} parent=0 // pred_region
    _
  $region33: #{deformation_mlp.1} parent=0 // pred_fallthru
    _

</llo_original>
